<compile_context>
chip_gen: v5e
topology: v5e:2x2
jax: 0.10.0
libtpu: 0.0.40
codegen_flags: <defaults>
</compile_context>

<pallas_src>
import functools
import math

import jax
import jax.numpy as jnp
from jax.experimental import pallas as pl
from jax.experimental.pallas import tpu as pltpu

_SQRT1_2 = 1.0 / math.sqrt(2.0)
_NEG_BIG = -1e30   # large finite "masked" logit bias (no NaN for fully-masked rows)


def _erf_approx(z):
    # Abramowitz & Stegun 7.1.26 (max abs err ~1.5e-7): keeps nn.GELU()'s exact-erf
    # semantics using only exp/mul/where (no reliance on an erf lowering in Mosaic).
    a1, a2, a3, a4, a5 = 0.254829592, -0.284496736, 1.421413741, -1.453152027, 1.061405429
    pp = 0.3275911
    az = jnp.abs(z)
    t = 1.0 / (1.0 + pp * az)
    poly = ((((a5 * t + a4) * t + a3) * t + a2) * t + a1) * t
    y = 1.0 - poly * jnp.exp(-az * az)
    return jnp.where(z < 0.0, -y, y)


def _gelu_exact(z):
    return 0.5 * z * (1.0 + _erf_approx(z * _SQRT1_2))


def _decoder_kernel(x_ref, kpmb_ref,
                    ln1w_ref, ln1b_ref, wqkv_ref, bqkv_ref, wo_ref, bo_ref,
                    ln2w_ref, ln2b_ref, w1_ref, b1_ref, w2_ref, b2_ref,
                    out_ref, *, num_head, head_dim, seq_len, block_batch):
    """One grid step == bt batch elements; projections/FFN run on R = bt*S flat rows,
    attention runs per batch element on (bt, S, S) scores (no cross-batch waste)."""
    hc, d, S, bt = num_head, head_dim, seq_len, block_batch
    emb = hc * d

    x = x_ref[...].astype(jnp.float32)                       # (R, E) residual stream

    # ---- LayerNorm1 (f32, eps=1e-5) ----
    mu1 = jnp.mean(x, axis=-1, keepdims=True)
    xc1 = x - mu1
    var1 = jnp.mean(xc1 * xc1, axis=-1, keepdims=True)
    n1 = xc1 * jax.lax.rsqrt(var1 + 1e-5) * ln1w_ref[...] + ln1b_ref[...]

    # ---- fused QKV projection: one (R,E)x(E,3E) MXU matmul (bf16 in, f32 acc) ----
    qkv = jnp.dot(n1.astype(jnp.bfloat16), wqkv_ref[...],
                  preferred_element_type=jnp.float32) + bqkv_ref[...]        # (R, 3E)
    q = qkv[:, 0:emb]
    k = qkv[:, emb:2 * emb]
    v = qkv[:, 2 * emb:3 * emb]

    # ---- additive attention bias, built once per step (NOT per head):
    # causal (1,S,S) from a tiny in-kernel iota + key-padding bias rows (bt,1,S).
    row_i = jax.lax.broadcasted_iota(jnp.int32, (S, S), 0)
    col_i = jax.lax.broadcasted_iota(jnp.int32, (S, S), 1)
    causal = jnp.where(col_i > row_i, jnp.float32(_NEG_BIG), jnp.float32(0.0))[None]
    bias = kpmb_ref[...] + causal                                            # (bt, S, S)

    scale = jnp.float32(1.0 / math.sqrt(d))

    # ---- attention: static head loop (head slices are static lane slices; robust for
    # head_dim < 128), per-batch (bt,S,S) scores, softmax in f32, bf16 PV matmul.
    ctx_parts = []
    for h in range(hc):
        sl = slice(h * d, (h + 1) * d)
        q_h = q[:, sl].reshape(bt, S, d).astype(jnp.bfloat16)
        k_h = k[:, sl].reshape(bt, S, d).astype(jnp.bfloat16)
        v_h = v[:, sl].reshape(bt, S, d).astype(jnp.bfloat16)
        s_h = jnp.einsum("bqd,bkd->bqk", q_h, k_h,
                         preferred_element_type=jnp.float32)                 # (bt, S, S)
        s_h = s_h * scale + bias          # scale on f32 logits (no pre-cast rounding of Q)
        m = jnp.max(s_h, axis=-1, keepdims=True)
        e = jnp.exp(s_h - m)
        p = e * pl.reciprocal(jnp.sum(e, axis=-1, keepdims=True), approx=True)
        ctx_h = jnp.einsum("bqk,bkd->bqd", p.astype(jnp.bfloat16), v_h,
                           preferred_element_type=jnp.float32)               # (bt, S, d)
        ctx_parts.append(ctx_h.reshape(bt * S, d))
    ctx = jnp.concatenate(ctx_parts, axis=-1)                                # (R, E)

    attn = jnp.dot(ctx.astype(jnp.bfloat16), wo_ref[...],
                   preferred_element_type=jnp.float32) + bo_ref[...]
    h1 = x + attn                                             # residual 1 (dropout == id)

    # ---- LayerNorm2 + FFN (exact-erf GELU) ----
    mu2 = jnp.mean(h1, axis=-1, keepdims=True)
    hc2 = h1 - mu2
    var2 = jnp.mean(hc2 * hc2, axis=-1, keepdims=True)
    n2 = hc2 * jax.lax.rsqrt(var2 + 1e-5) * ln2w_ref[...] + ln2b_ref[...]

    f1 = jnp.dot(n2.astype(jnp.bfloat16), w1_ref[...],
                 preferred_element_type=jnp.float32) + b1_ref[...]           # (R, 4E)
    g = _gelu_exact(f1)
    f2 = jnp.dot(g.astype(jnp.bfloat16), w2_ref[...],
                 preferred_element_type=jnp.float32) + b2_ref[...]           # (R, E)

    out_ref[...] = (h1 + f2).astype(out_ref.dtype)            # residual 2 (dropout == id)


def _pick_block_batch(n, s, *, max_rows=512, target_rows=256):
    """Batch elements per grid step.
       * bt divides n (exact grid)
       * bt <= n // 2 when n >= 2  -> grid has >= 2 steps (feeds both v7x TensorCores)
       * bt * s <= max_rows, preferring (bt*s) % 8 == 0 (legal sublane block)
       * largest bt with bt*s <= target_rows (fills the MXU M dim for the GEMM phases)."""
    cap = n // 2 if n >= 2 else 1
    cands = [c for c in range(1, cap + 1) if n % c == 0 and c * s <= max_rows]
    if not cands:
        cands = [1]
    legal = [c for c in cands if (c * s) % 8 == 0]
    pool = legal if legal else cands
    best = pool[0]
    for c in sorted(pool):
        if c * s <= target_rows:
            best = c
    return best


def _vmem_budget_bytes(rows, e, s, bt, num_head):
    """Explicit VMEM budget derived from actual block sizes (with margin), clamped to
    stay inside v7x's 64 MiB physical VMEM."""
    f4, bf2 = 4, 2
    weights = (3 * e * e + e * e + 4 * e * e + 4 * e * e) * bf2       # bf16 weight blocks
    biases = (3 * e + e + 4 * e + e + 4 * e) * f4
    io = 2 * (rows * e * f4) + 2 * (rows * e * f4) + 2 * (bt * s * f4)
    work = rows * 3 * e * f4 + rows * 4 * e * f4 + 6 * rows * e * f4 + 3 * bt * s * s * f4
    total = 2 * weights + biases + io + 2 * work                      # weights: worst case 2x
    return int(min(64 * 1024 * 1024, max(16 * 1024 * 1024, total)))


def pack_params(params):
    """One-time weight fusion / transpose / bf16 cast, hoisted out of the per-call path."""
    att = params["attn"]
    bf = jnp.bfloat16
    e = params["ln1"]["w"].shape[0]
    return {
        "wqkv": jnp.concatenate([att["q_w"]["w"].T, att["k_w"]["w"].T, att["v_w"]["w"].T],
                                axis=1).astype(bf),                                  # (E, 3E)
        "bqkv": jnp.concatenate([att["q_w"]["b"], att["k_w"]["b"], att["v_w"]["b"]]
                                ).reshape(1, 3 * e).astype(jnp.float32),
        "wo": att["linear"]["w"].T.astype(bf),
        "bo": att["linear"]["b"].reshape(1, e).astype(jnp.float32),
        "w1": params["fnn"]["linear1"]["w"].T.astype(bf),                            # (E, 4E)
        "b1": params["fnn"]["linear1"]["b"].reshape(1, 4 * e).astype(jnp.float32),
        "w2": params["fnn"]["linear2"]["w"].T.astype(bf),                            # (4E, E)
        "b2": params["fnn"]["linear2"]["b"].reshape(1, e).astype(jnp.float32),
        "ln1w": params["ln1"]["w"].reshape(1, e).astype(jnp.float32),
        "ln1b": params["ln1"]["b"].reshape(1, e).astype(jnp.float32),
        "ln2w": params["ln2"]["w"].reshape(1, e).astype(jnp.float32),
        "ln2b": params["ln2"]["b"].reshape(1, e).astype(jnp.float32),
    }


def decoder_forward(hidden_state, key, value, packed, num_head, key_padding_mask=None):
    """Pallas implementation of Decoder.forward (eval mode, is_encoder_decoder=False)."""
    # TODO(synk): is_encoder_decoder=True cross-attention branch not implemented (module
    # default is False); `key`/`value` accepted for signature parity only — the reference
    # MyMultiHeadAttention projects Q, K and V all from `query`.
    del key, value
    N, S, E = hidden_state.shape
    if E % num_head != 0:
        raise ValueError("could not find a equal dim to all heads")
    d = E // num_head

    bt = _pick_block_batch(N, S)
    grid_steps = N // bt
    R = bt * S

    x_flat = hidden_state.reshape(N * S, E)

    if key_padding_mask is None:
        kpm_bias = jnp.zeros((N, 1, S), jnp.float32)
    else:
        kpm_bias = jnp.where(key_padding_mask.astype(bool),
                             jnp.float32(_NEG_BIG), jnp.float32(0.0)).reshape(N, 1, S)

    kernel = functools.partial(_decoder_kernel, num_head=num_head, head_dim=d,
                               seq_len=S, block_batch=bt)

    def weight_spec(shape, single_buffer):
        # Constant index_map => fetched once. Single-buffer when supported so weight
        # operands are not held twice in VMEM (they never change block index).
        if single_buffer and hasattr(pl, "Buffered"):
            return pl.BlockSpec(shape, lambda g: (0, 0), pipeline_mode=pl.Buffered(1))
        return pl.BlockSpec(shape, lambda g: (0, 0))

    def run(single_buffer_weights):
        def wspec(shape):
            return weight_spec(shape, single_buffer_weights)
        return pl.pallas_call(
            kernel,
            out_shape=jax.ShapeDtypeStruct((N * S, E), hidden_state.dtype),
            grid=(grid_steps,),
            in_specs=[
                pl.BlockSpec((R, E), lambda g: (g, 0)),         # hidden_state rows
                pl.BlockSpec((bt, 1, S), lambda g: (g, 0, 0)),  # key-padding bias rows
                wspec((1, E)), wspec((1, E)),                   # LayerNorm1 gamma / beta
                wspec((E, 3 * E)), wspec((1, 3 * E)),           # fused QKV weight / bias
                wspec((E, E)), wspec((1, E)),                   # attention output projection
                wspec((1, E)), wspec((1, E)),                   # LayerNorm2 gamma / beta
                wspec((E, 4 * E)), wspec((1, 4 * E)),           # FFN linear1
                wspec((4 * E, E)), wspec((1, E)),               # FFN linear2
            ],
            out_specs=pl.BlockSpec((R, E), lambda g: (g, 0)),
            compiler_params=pltpu.CompilerParams(
                dimension_semantics=("parallel",),              # >= 2 steps => both v7x TCs
                vmem_limit_bytes=_vmem_budget_bytes(R, E, S, bt, num_head),
            ),
        )(x_flat, kpm_bias,
          packed["ln1w"], packed["ln1b"], packed["wqkv"], packed["bqkv"],
          packed["wo"], packed["bo"], packed["ln2w"], packed["ln2b"],
          packed["w1"], packed["b1"], packed["w2"], packed["b2"])

    try:
        out_flat = run(True)
    except Exception:
        # Fallback for jax builds without single-buffer pipeline_mode support.
        out_flat = run(False)
    return out_flat.reshape(N, S, E)


def _reference_decoder(hidden_state, params, num_head, key_padding_mask=None):
    """Pure-JAX f32 reference mirroring PyTorch Decoder.forward (eval mode)."""
    N, S, E = hidden_state.shape
    d = E // num_head

    def layernorm(h, p):
        mu = jnp.mean(h, axis=-1, keepdims=True)
        var = jnp.mean((h - mu) ** 2, axis=-1, keepdims=True)
        return (h - mu) / jnp.sqrt(var + 1e-5) * p["w"] + p["b"]

    def lin(h, p):
        return h @ p["w"].T + p["b"]

    def mha(q_in, p, kpm, attn_mask):
        Q = lin(q_in, p["q_w"]).reshape(N, S, num_head, d).transpose(0, 2, 1, 3)
        K = lin(q_in, p["k_w"]).reshape(N, S, num_head, d).transpose(0, 2, 1, 3)
        V = lin(q_in, p["v_w"]).reshape(N, S, num_head, d).transpose(0, 2, 1, 3)
        s = jnp.einsum("nhqd,nhkd->nhqk", Q, K)
        if kpm is not None:
            s = jnp.where(kpm[:, None, None, :], -jnp.inf, s)
        if attn_mask is not None:
            s = jnp.where(attn_mask[None, None, :, :], -jnp.inf, s)
        w = jax.nn.softmax(s / math.sqrt(d), axis=-1)
        o = jnp.einsum("nhqk,nhkd->nhqd", w, V).transpose(0, 2, 1, 3).reshape(N, S, E)
        return lin(o, p["linear"])

    residual = hidden_state
    n1 = layernorm(hidden_state, params["ln1"])
    causal = jnp.triu(jnp.ones((S, S), jnp.bool_), k=1)
    attn = mha(n1, params["attn"], key_padding_mask, causal)
    r1 = residual + attn
    n2 = layernorm(r1, params["ln2"])
    f = lin(jax.nn.gelu(lin(n2, params["fnn"]["linear1"]), approximate=False),
            params["fnn"]["linear2"])
    return r1 + f


def init_params(rng, emb_dim):
    """torch.nn.Linear-style U(-1/sqrt(in), 1/sqrt(in)); LN affine made non-trivial."""
    def linear(k, out_d, in_d):
        kw, kb = jax.random.split(k)
        bound = 1.0 / math.sqrt(in_d)
        return {"w": jax.random.uniform(kw, (out_d, in_d), jnp.float32, -bound, bound),
                "b": jax.random.uniform(kb, (out_d,), jnp.float32, -bound, bound)}

    keys = jax.random.split(rng, 10)
    return {
        "attn": {
            "q_w": linear(keys[0], emb_dim, emb_dim),
            "k_w": linear(keys[1], emb_dim, emb_dim),
            "v_w": linear(keys[2], emb_dim, emb_dim),
            "linear": linear(keys[3], emb_dim, emb_dim),
        },
        "fnn": {
            "linear1": linear(keys[4], 4 * emb_dim, emb_dim),
            "linear2": linear(keys[5], emb_dim, 4 * emb_dim),
        },
        "ln1": {"w": 1.0 + 0.1 * jax.random.normal(keys[6], (emb_dim,), jnp.float32),
                "b": 0.1 * jax.random.normal(keys[7], (emb_dim,), jnp.float32)},
        "ln2": {"w": 1.0 + 0.1 * jax.random.normal(keys[8], (emb_dim,), jnp.float32),
                "b": 0.1 * jax.random.normal(keys[9], (emb_dim,), jnp.float32)},
    }


if __name__ == "__main__":
    N, S, E, H = 2, 8, 32, 4     # batch, seq_len, hidden_size, num_head

    root = jax.random.PRNGKey(0)
    kx, kp = jax.random.split(root)
    hidden = jax.random.normal(kx, (N, S, E), jnp.float32)
    params = init_params(kp, E)
    packed = pack_params(params)          # one-time weight fusion, off the per-call path

    # Mask out the last two key positions of batch element 1.
    key_padding_mask = jnp.zeros((N, S), jnp.bool_).at[1, -2:].set(True)

    out = decoder_forward(hidden, hidden, hidden, packed, H,
                          key_padding_mask=key_padding_mask)
    out = jax.block_until_ready(out)

    ref = _reference_decoder(hidden, params, H, key_padding_mask=key_padding_mask)
    assert out.shape == (N, S, E)
    assert not bool(jnp.any(jnp.isnan(out)))
    assert jnp.allclose(out, ref, atol=3e-2, rtol=3e-2), (
        f"mismatch vs reference: max abs diff {float(jnp.max(jnp.abs(out - ref)))}")

    print("KERNEL_OK")
</pallas_src>

<mosaic_0001>
module attributes {stable_mosaic.version = 11 : i64} {
  func.func @_decoder_kernel(%arg0: i32, %arg1: memref<8x32xf32, #tpu.memory_space<vmem>>, %arg2: memref<1x1x8xf32, #tpu.memory_space<vmem>>, %arg3: memref<1x32xf32, #tpu.memory_space<vmem>>, %arg4: memref<1x32xf32, #tpu.memory_space<vmem>>, %arg5: memref<32x96xbf16, #tpu.memory_space<vmem>>, %arg6: memref<1x96xf32, #tpu.memory_space<vmem>>, %arg7: memref<32x32xbf16, #tpu.memory_space<vmem>>, %arg8: memref<1x32xf32, #tpu.memory_space<vmem>>, %arg9: memref<1x32xf32, #tpu.memory_space<vmem>>, %arg10: memref<1x32xf32, #tpu.memory_space<vmem>>, %arg11: memref<32x128xbf16, #tpu.memory_space<vmem>>, %arg12: memref<1x128xf32, #tpu.memory_space<vmem>>, %arg13: memref<128x32xbf16, #tpu.memory_space<vmem>>, %arg14: memref<1x32xf32, #tpu.memory_space<vmem>>, %arg15: memref<8x32xf32, #tpu.memory_space<vmem>>) attributes {dimension_semantics = [#tpu.dimension_semantics<parallel>], iteration_bounds = array<i64: 2>, scalar_prefetch = 0 : i64, scratch_operands = 0 : i64, tpu.core_type = #tpu.core_type<tc>, window_params = [{transform_indices = @transform_0, window_bounds = array<i64: 8, 32>}, {transform_indices = @transform_1, window_bounds = array<i64: 1, 1, 8>}, {pipeline_mode = #tpu.pipeline_mode<synchronous>, transform_indices = @transform_2, window_bounds = array<i64: 1, 32>}, {pipeline_mode = #tpu.pipeline_mode<synchronous>, transform_indices = @transform_3, window_bounds = array<i64: 1, 32>}, {pipeline_mode = #tpu.pipeline_mode<synchronous>, transform_indices = @transform_4, window_bounds = array<i64: 32, 96>}, {pipeline_mode = #tpu.pipeline_mode<synchronous>, transform_indices = @transform_5, window_bounds = array<i64: 1, 96>}, {pipeline_mode = #tpu.pipeline_mode<synchronous>, transform_indices = @transform_6, window_bounds = array<i64: 32, 32>}, {pipeline_mode = #tpu.pipeline_mode<synchronous>, transform_indices = @transform_7, window_bounds = array<i64: 1, 32>}, {pipeline_mode = #tpu.pipeline_mode<synchronous>, transform_indices = @transform_8, window_bounds = array<i64: 1, 32>}, {pipeline_mode = #tpu.pipeline_mode<synchronous>, transform_indices = @transform_9, window_bounds = array<i64: 1, 32>}, {pipeline_mode = #tpu.pipeline_mode<synchronous>, transform_indices = @transform_10, window_bounds = array<i64: 32, 128>}, {pipeline_mode = #tpu.pipeline_mode<synchronous>, transform_indices = @transform_11, window_bounds = array<i64: 1, 128>}, {pipeline_mode = #tpu.pipeline_mode<synchronous>, transform_indices = @transform_12, window_bounds = array<i64: 128, 32>}, {pipeline_mode = #tpu.pipeline_mode<synchronous>, transform_indices = @transform_13, window_bounds = array<i64: 1, 32>}, {transform_indices = @transform_14, window_bounds = array<i64: 8, 32>}]} {
    %c0 = arith.constant 0 : index
    %c0_0 = arith.constant 0 : index
    %0 = vector.load %arg1[%c0, %c0_0] : memref<8x32xf32, #tpu.memory_space<vmem>>, vector<8x32xf32>
    %cst = arith.constant dense<0.000000e+00> : vector<8xf32>
    %1 = vector.multi_reduction <add>, %0, %cst [1] : vector<8x32xf32> to vector<8xf32>
    %2 = vector.shape_cast %1 : vector<8xf32> to vector<8x1xf32>
    %cst_1 = arith.constant 3.200000e+01 : f32
    %3 = vector.broadcast %cst_1 : f32 to vector<8x1xf32>
    %4 = arith.divf %2, %3 : vector<8x1xf32>
    %5 = vector.broadcast %4 : vector<8x1xf32> to vector<8x32xf32>
    %6 = arith.subf %0, %5 : vector<8x32xf32>
    %7 = arith.mulf %6, %6 : vector<8x32xf32>
    %cst_2 = arith.constant dense<0.000000e+00> : vector<8xf32>
    %8 = vector.multi_reduction <add>, %7, %cst_2 [1] : vector<8x32xf32> to vector<8xf32>
    %9 = vector.shape_cast %8 : vector<8xf32> to vector<8x1xf32>
    %cst_3 = arith.constant 3.200000e+01 : f32
    %10 = vector.broadcast %cst_3 : f32 to vector<8x1xf32>
    %11 = arith.divf %9, %10 : vector<8x1xf32>
    %cst_4 = arith.constant 9.99999974E-6 : f32
    %12 = vector.broadcast %cst_4 : f32 to vector<8x1xf32>
    %13 = arith.addf %11, %12 : vector<8x1xf32>
    %14 = math.rsqrt %13 : vector<8x1xf32>
    %15 = vector.broadcast %14 : vector<8x1xf32> to vector<8x32xf32>
    %16 = arith.mulf %6, %15 : vector<8x32xf32>
    %c0_5 = arith.constant 0 : index
    %c0_6 = arith.constant 0 : index
    %17 = vector.load %arg3[%c0_5, %c0_6] : memref<1x32xf32, #tpu.memory_space<vmem>>, vector<1x32xf32>
    %18 = vector.broadcast %17 : vector<1x32xf32> to vector<8x32xf32>
    %19 = arith.mulf %16, %18 : vector<8x32xf32>
    %c0_7 = arith.constant 0 : index
    %c0_8 = arith.constant 0 : index
    %20 = vector.load %arg4[%c0_7, %c0_8] : memref<1x32xf32, #tpu.memory_space<vmem>>, vector<1x32xf32>
    %21 = vector.broadcast %20 : vector<1x32xf32> to vector<8x32xf32>
    %22 = arith.addf %19, %21 : vector<8x32xf32>
    %23 = arith.truncf %22 : vector<8x32xf32> to vector<8x32xbf16>
    %c0_9 = arith.constant 0 : index
    %c0_10 = arith.constant 0 : index
    %24 = vector.load %arg5[%c0_9, %c0_10] : memref<32x96xbf16, #tpu.memory_space<vmem>>, vector<32x96xbf16>
    %cst_11 = arith.constant dense<0.000000e+00> : vector<8x96xf32>
    %25 = tpu.matmul %23, %24, %cst_11 {dimension_numbers = #tpu.dot_dimension_numbers<[1], [0], [0], [1], [0, 0, 1, 1], [], []>} : vector<8x32xbf16>, vector<32x96xbf16>, vector<8x96xf32> -> vector<8x96xf32>
    %c0_12 = arith.constant 0 : index
    %c0_13 = arith.constant 0 : index
    %26 = vector.load %arg6[%c0_12, %c0_13] : memref<1x96xf32, #tpu.memory_space<vmem>>, vector<1x96xf32>
    %27 = vector.broadcast %26 : vector<1x96xf32> to vector<8x96xf32>
    %28 = arith.addf %25, %27 : vector<8x96xf32>
    %29 = vector.extract_strided_slice %28 {offsets = [0, 0], sizes = [8, 32], strides = [1, 1]} : vector<8x96xf32> to vector<8x32xf32>
    %30 = vector.extract_strided_slice %28 {offsets = [0, 32], sizes = [8, 32], strides = [1, 1]} : vector<8x96xf32> to vector<8x32xf32>
    %31 = vector.extract_strided_slice %28 {offsets = [0, 64], sizes = [8, 32], strides = [1, 1]} : vector<8x96xf32> to vector<8x32xf32>
    %32 = tpu.iota {dimensions = array<i32: 0>} : vector<8x8xi32>
    %33 = tpu.iota {dimensions = array<i32: 1>} : vector<8x8xi32>
    %34 = arith.cmpi sgt, %33, %32 : vector<8x8xi32>
    %cst_14 = arith.constant -1.000000e+30 : f32
    %cst_15 = arith.constant 0.000000e+00 : f32
    %35 = vector.broadcast %cst_14 : f32 to vector<8x8xf32>
    %36 = vector.broadcast %cst_15 : f32 to vector<8x8xf32>
    %37 = arith.select %34, %35, %36 : vector<8x8xi1>, vector<8x8xf32>
    %38 = vector.shape_cast %37 : vector<8x8xf32> to vector<1x8x8xf32>
    %c0_16 = arith.constant 0 : index
    %c0_17 = arith.constant 0 : index
    %c0_18 = arith.constant 0 : index
    %39 = vector.load %arg2[%c0_16, %c0_17, %c0_18] : memref<1x1x8xf32, #tpu.memory_space<vmem>>, vector<1x1x8xf32>
    %40 = vector.broadcast %39 : vector<1x1x8xf32> to vector<1x8x8xf32>
    %41 = arith.addf %40, %38 : vector<1x8x8xf32>
    %42 = vector.extract_strided_slice %29 {offsets = [0, 0], sizes = [8, 8], strides = [1, 1]} : vector<8x32xf32> to vector<8x8xf32>
    %43 = vector.shape_cast %42 : vector<8x8xf32> to vector<1x8x8xf32>
    %44 = arith.truncf %43 : vector<1x8x8xf32> to vector<1x8x8xbf16>
    %45 = vector.extract_strided_slice %30 {offsets = [0, 0], sizes = [8, 8], strides = [1, 1]} : vector<8x32xf32> to vector<8x8xf32>
    %46 = vector.shape_cast %45 : vector<8x8xf32> to vector<1x8x8xf32>
    %47 = arith.truncf %46 : vector<1x8x8xf32> to vector<1x8x8xbf16>
    %48 = vector.extract_strided_slice %31 {offsets = [0, 0], sizes = [8, 8], strides = [1, 1]} : vector<8x32xf32> to vector<8x8xf32>
    %49 = vector.shape_cast %48 : vector<8x8xf32> to vector<1x8x8xf32>
    %50 = arith.truncf %49 : vector<1x8x8xf32> to vector<1x8x8xbf16>
    "tpu.trace_start"() <{level = 10 : i32, message = "bqd,bkd->bqk"}> : () -> ()
    %cst_19 = arith.constant dense<0.000000e+00> : vector<1x8x8xf32>
    %51 = tpu.matmul %44, %47, %cst_19 {dimension_numbers = #tpu.dot_dimension_numbers<[2], [2], [1], [1], [0, 0, 0, 1, 1, 1], [0], [0]>} : vector<1x8x8xbf16>, vector<1x8x8xbf16>, vector<1x8x8xf32> -> vector<1x8x8xf32>
    "tpu.trace_stop"() : () -> ()
    %cst_20 = arith.constant 0.353553385 : f32
    %52 = vector.broadcast %cst_20 : f32 to vector<1x8x8xf32>
    %53 = arith.mulf %51, %52 : vector<1x8x8xf32>
    %54 = arith.addf %53, %41 : vector<1x8x8xf32>
    %cst_21 = arith.constant dense<0xFF800000> : vector<1x8xf32>
    %55 = vector.multi_reduction <maximumf>, %54, %cst_21 [2] : vector<1x8x8xf32> to vector<1x8xf32>
    %56 = vector.shape_cast %55 : vector<1x8xf32> to vector<1x8x1xf32>
    %57 = vector.broadcast %56 : vector<1x8x1xf32> to vector<1x8x8xf32>
    %58 = arith.subf %54, %57 : vector<1x8x8xf32>
    %59 = math.exp %58 : vector<1x8x8xf32>
    %cst_22 = arith.constant dense<0.000000e+00> : vector<1x8xf32>
    %60 = vector.multi_reduction <add>, %59, %cst_22 [2] : vector<1x8x8xf32> to vector<1x8xf32>
    %61 = vector.shape_cast %60 : vector<1x8xf32> to vector<1x8x1xf32>
    %62 = tpu.reciprocal %61 {approx = true} : vector<1x8x1xf32> -> vector<1x8x1xf32>
    %63 = vector.broadcast %62 : vector<1x8x1xf32> to vector<1x8x8xf32>
    %64 = arith.mulf %59, %63 : vector<1x8x8xf32>
    %65 = arith.truncf %64 : vector<1x8x8xf32> to vector<1x8x8xbf16>
    "tpu.trace_start"() <{level = 10 : i32, message = "bqk,bkd->bqd"}> : () -> ()
    %cst_23 = arith.constant dense<0.000000e+00> : vector<1x8x8xf32>
    %66 = tpu.matmul %65, %50, %cst_23 {dimension_numbers = #tpu.dot_dimension_numbers<[2], [1], [1], [2], [0, 0, 0, 1, 1, 2], [0], [0]>} : vector<1x8x8xbf16>, vector<1x8x8xbf16>, vector<1x8x8xf32> -> vector<1x8x8xf32>
    "tpu.trace_stop"() : () -> ()
    %67 = vector.shape_cast %66 : vector<1x8x8xf32> to vector<8x8xf32>
    %68 = vector.extract_strided_slice %29 {offsets = [0, 8], sizes = [8, 8], strides = [1, 1]} : vector<8x32xf32> to vector<8x8xf32>
    %69 = vector.shape_cast %68 : vector<8x8xf32> to vector<1x8x8xf32>
    %70 = arith.truncf %69 : vector<1x8x8xf32> to vector<1x8x8xbf16>
    %71 = vector.extract_strided_slice %30 {offsets = [0, 8], sizes = [8, 8], strides = [1, 1]} : vector<8x32xf32> to vector<8x8xf32>
    %72 = vector.shape_cast %71 : vector<8x8xf32> to vector<1x8x8xf32>
    %73 = arith.truncf %72 : vector<1x8x8xf32> to vector<1x8x8xbf16>
    %74 = vector.extract_strided_slice %31 {offsets = [0, 8], sizes = [8, 8], strides = [1, 1]} : vector<8x32xf32> to vector<8x8xf32>
    %75 = vector.shape_cast %74 : vector<8x8xf32> to vector<1x8x8xf32>
    %76 = arith.truncf %75 : vector<1x8x8xf32> to vector<1x8x8xbf16>
    "tpu.trace_start"() <{level = 10 : i32, message = "bqd,bkd->bqk"}> : () -> ()
    %cst_24 = arith.constant dense<0.000000e+00> : vector<1x8x8xf32>
    %77 = tpu.matmul %70, %73, %cst_24 {dimension_numbers = #tpu.dot_dimension_numbers<[2], [2], [1], [1], [0, 0, 0, 1, 1, 1], [0], [0]>} : vector<1x8x8xbf16>, vector<1x8x8xbf16>, vector<1x8x8xf32> -> vector<1x8x8xf32>
    "tpu.trace_stop"() : () -> ()
    %cst_25 = arith.constant 0.353553385 : f32
    %78 = vector.broadcast %cst_25 : f32 to vector<1x8x8xf32>
    %79 = arith.mulf %77, %78 : vector<1x8x8xf32>
    %80 = arith.addf %79, %41 : vector<1x8x8xf32>
    %cst_26 = arith.constant dense<0xFF800000> : vector<1x8xf32>
    %81 = vector.multi_reduction <maximumf>, %80, %cst_26 [2] : vector<1x8x8xf32> to vector<1x8xf32>
    %82 = vector.shape_cast %81 : vector<1x8xf32> to vector<1x8x1xf32>
    %83 = vector.broadcast %82 : vector<1x8x1xf32> to vector<1x8x8xf32>
    %84 = arith.subf %80, %83 : vector<1x8x8xf32>
    %85 = math.exp %84 : vector<1x8x8xf32>
    %cst_27 = arith.constant dense<0.000000e+00> : vector<1x8xf32>
    %86 = vector.multi_reduction <add>, %85, %cst_27 [2] : vector<1x8x8xf32> to vector<1x8xf32>
    %87 = vector.shape_cast %86 : vector<1x8xf32> to vector<1x8x1xf32>
    %88 = tpu.reciprocal %87 {approx = true} : vector<1x8x1xf32> -> vector<1x8x1xf32>
    %89 = vector.broadcast %88 : vector<1x8x1xf32> to vector<1x8x8xf32>
    %90 = arith.mulf %85, %89 : vector<1x8x8xf32>
    %91 = arith.truncf %90 : vector<1x8x8xf32> to vector<1x8x8xbf16>
    "tpu.trace_start"() <{level = 10 : i32, message = "bqk,bkd->bqd"}> : () -> ()
    %cst_28 = arith.constant dense<0.000000e+00> : vector<1x8x8xf32>
    %92 = tpu.matmul %91, %76, %cst_28 {dimension_numbers = #tpu.dot_dimension_numbers<[2], [1], [1], [2], [0, 0, 0, 1, 1, 2], [0], [0]>} : vector<1x8x8xbf16>, vector<1x8x8xbf16>, vector<1x8x8xf32> -> vector<1x8x8xf32>
    "tpu.trace_stop"() : () -> ()
    %93 = vector.shape_cast %92 : vector<1x8x8xf32> to vector<8x8xf32>
    %94 = vector.extract_strided_slice %29 {offsets = [0, 16], sizes = [8, 8], strides = [1, 1]} : vector<8x32xf32> to vector<8x8xf32>
    %95 = vector.shape_cast %94 : vector<8x8xf32> to vector<1x8x8xf32>
    %96 = arith.truncf %95 : vector<1x8x8xf32> to vector<1x8x8xbf16>
    %97 = vector.extract_strided_slice %30 {offsets = [0, 16], sizes = [8, 8], strides = [1, 1]} : vector<8x32xf32> to vector<8x8xf32>
    %98 = vector.shape_cast %97 : vector<8x8xf32> to vector<1x8x8xf32>
    %99 = arith.truncf %98 : vector<1x8x8xf32> to vector<1x8x8xbf16>
    %100 = vector.extract_strided_slice %31 {offsets = [0, 16], sizes = [8, 8], strides = [1, 1]} : vector<8x32xf32> to vector<8x8xf32>
    %101 = vector.shape_cast %100 : vector<8x8xf32> to vector<1x8x8xf32>
    %102 = arith.truncf %101 : vector<1x8x8xf32> to vector<1x8x8xbf16>
    "tpu.trace_start"() <{level = 10 : i32, message = "bqd,bkd->bqk"}> : () -> ()
    %cst_29 = arith.constant dense<0.000000e+00> : vector<1x8x8xf32>
    %103 = tpu.matmul %96, %99, %cst_29 {dimension_numbers = #tpu.dot_dimension_numbers<[2], [2], [1], [1], [0, 0, 0, 1, 1, 1], [0], [0]>} : vector<1x8x8xbf16>, vector<1x8x8xbf16>, vector<1x8x8xf32> -> vector<1x8x8xf32>
    "tpu.trace_stop"() : () -> ()
    %cst_30 = arith.constant 0.353553385 : f32
    %104 = vector.broadcast %cst_30 : f32 to vector<1x8x8xf32>
    %105 = arith.mulf %103, %104 : vector<1x8x8xf32>
    %106 = arith.addf %105, %41 : vector<1x8x8xf32>
    %cst_31 = arith.constant dense<0xFF800000> : vector<1x8xf32>
    %107 = vector.multi_reduction <maximumf>, %106, %cst_31 [2] : vector<1x8x8xf32> to vector<1x8xf32>
    %108 = vector.shape_cast %107 : vector<1x8xf32> to vector<1x8x1xf32>
    %109 = vector.broadcast %108 : vector<1x8x1xf32> to vector<1x8x8xf32>
    %110 = arith.subf %106, %109 : vector<1x8x8xf32>
    %111 = math.exp %110 : vector<1x8x8xf32>
    %cst_32 = arith.constant dense<0.000000e+00> : vector<1x8xf32>
    %112 = vector.multi_reduction <add>, %111, %cst_32 [2] : vector<1x8x8xf32> to vector<1x8xf32>
    %113 = vector.shape_cast %112 : vector<1x8xf32> to vector<1x8x1xf32>
    %114 = tpu.reciprocal %113 {approx = true} : vector<1x8x1xf32> -> vector<1x8x1xf32>
    %115 = vector.broadcast %114 : vector<1x8x1xf32> to vector<1x8x8xf32>
    %116 = arith.mulf %111, %115 : vector<1x8x8xf32>
    %117 = arith.truncf %116 : vector<1x8x8xf32> to vector<1x8x8xbf16>
    "tpu.trace_start"() <{level = 10 : i32, message = "bqk,bkd->bqd"}> : () -> ()
    %cst_33 = arith.constant dense<0.000000e+00> : vector<1x8x8xf32>
    %118 = tpu.matmul %117, %102, %cst_33 {dimension_numbers = #tpu.dot_dimension_numbers<[2], [1], [1], [2], [0, 0, 0, 1, 1, 2], [0], [0]>} : vector<1x8x8xbf16>, vector<1x8x8xbf16>, vector<1x8x8xf32> -> vector<1x8x8xf32>
    "tpu.trace_stop"() : () -> ()
    %119 = vector.shape_cast %118 : vector<1x8x8xf32> to vector<8x8xf32>
    %120 = vector.extract_strided_slice %29 {offsets = [0, 24], sizes = [8, 8], strides = [1, 1]} : vector<8x32xf32> to vector<8x8xf32>
    %121 = vector.shape_cast %120 : vector<8x8xf32> to vector<1x8x8xf32>
    %122 = arith.truncf %121 : vector<1x8x8xf32> to vector<1x8x8xbf16>
    %123 = vector.extract_strided_slice %30 {offsets = [0, 24], sizes = [8, 8], strides = [1, 1]} : vector<8x32xf32> to vector<8x8xf32>
    %124 = vector.shape_cast %123 : vector<8x8xf32> to vector<1x8x8xf32>
    %125 = arith.truncf %124 : vector<1x8x8xf32> to vector<1x8x8xbf16>
    %126 = vector.extract_strided_slice %31 {offsets = [0, 24], sizes = [8, 8], strides = [1, 1]} : vector<8x32xf32> to vector<8x8xf32>
    %127 = vector.shape_cast %126 : vector<8x8xf32> to vector<1x8x8xf32>
    %128 = arith.truncf %127 : vector<1x8x8xf32> to vector<1x8x8xbf16>
    "tpu.trace_start"() <{level = 10 : i32, message = "bqd,bkd->bqk"}> : () -> ()
    %cst_34 = arith.constant dense<0.000000e+00> : vector<1x8x8xf32>
    %129 = tpu.matmul %122, %125, %cst_34 {dimension_numbers = #tpu.dot_dimension_numbers<[2], [2], [1], [1], [0, 0, 0, 1, 1, 1], [0], [0]>} : vector<1x8x8xbf16>, vector<1x8x8xbf16>, vector<1x8x8xf32> -> vector<1x8x8xf32>
    "tpu.trace_stop"() : () -> ()
    %cst_35 = arith.constant 0.353553385 : f32
    %130 = vector.broadcast %cst_35 : f32 to vector<1x8x8xf32>
    %131 = arith.mulf %129, %130 : vector<1x8x8xf32>
    %132 = arith.addf %131, %41 : vector<1x8x8xf32>
    %cst_36 = arith.constant dense<0xFF800000> : vector<1x8xf32>
    %133 = vector.multi_reduction <maximumf>, %132, %cst_36 [2] : vector<1x8x8xf32> to vector<1x8xf32>
    %134 = vector.shape_cast %133 : vector<1x8xf32> to vector<1x8x1xf32>
    %135 = vector.broadcast %134 : vector<1x8x1xf32> to vector<1x8x8xf32>
    %136 = arith.subf %132, %135 : vector<1x8x8xf32>
    %137 = math.exp %136 : vector<1x8x8xf32>
    %cst_37 = arith.constant dense<0.000000e+00> : vector<1x8xf32>
    %138 = vector.multi_reduction <add>, %137, %cst_37 [2] : vector<1x8x8xf32> to vector<1x8xf32>
    %139 = vector.shape_cast %138 : vector<1x8xf32> to vector<1x8x1xf32>
    %140 = tpu.reciprocal %139 {approx = true} : vector<1x8x1xf32> -> vector<1x8x1xf32>
    %141 = vector.broadcast %140 : vector<1x8x1xf32> to vector<1x8x8xf32>
    %142 = arith.mulf %137, %141 : vector<1x8x8xf32>
    %143 = arith.truncf %142 : vector<1x8x8xf32> to vector<1x8x8xbf16>
    "tpu.trace_start"() <{level = 10 : i32, message = "bqk,bkd->bqd"}> : () -> ()
    %cst_38 = arith.constant dense<0.000000e+00> : vector<1x8x8xf32>
    %144 = tpu.matmul %143, %128, %cst_38 {dimension_numbers = #tpu.dot_dimension_numbers<[2], [1], [1], [2], [0, 0, 0, 1, 1, 2], [0], [0]>} : vector<1x8x8xbf16>, vector<1x8x8xbf16>, vector<1x8x8xf32> -> vector<1x8x8xf32>
    "tpu.trace_stop"() : () -> ()
    %145 = vector.shape_cast %144 : vector<1x8x8xf32> to vector<8x8xf32>
    %146 = tpu.concatenate %67, %93, %119, %145 in 1 : vector<8x8xf32>, vector<8x8xf32>, vector<8x8xf32>, vector<8x8xf32> -> vector<8x32xf32>
    %147 = arith.truncf %146 : vector<8x32xf32> to vector<8x32xbf16>
    %c0_39 = arith.constant 0 : index
    %c0_40 = arith.constant 0 : index
    %148 = vector.load %arg7[%c0_39, %c0_40] : memref<32x32xbf16, #tpu.memory_space<vmem>>, vector<32x32xbf16>
    %cst_41 = arith.constant dense<0.000000e+00> : vector<8x32xf32>
    %149 = tpu.matmul %147, %148, %cst_41 {dimension_numbers = #tpu.dot_dimension_numbers<[1], [0], [0], [1], [0, 0, 1, 1], [], []>} : vector<8x32xbf16>, vector<32x32xbf16>, vector<8x32xf32> -> vector<8x32xf32>
    %c0_42 = arith.constant 0 : index
    %c0_43 = arith.constant 0 : index
    %150 = vector.load %arg8[%c0_42, %c0_43] : memref<1x32xf32, #tpu.memory_space<vmem>>, vector<1x32xf32>
    %151 = vector.broadcast %150 : vector<1x32xf32> to vector<8x32xf32>
    %152 = arith.addf %149, %151 : vector<8x32xf32>
    %153 = arith.addf %0, %152 : vector<8x32xf32>
    %cst_44 = arith.constant dense<0.000000e+00> : vector<8xf32>
    %154 = vector.multi_reduction <add>, %153, %cst_44 [1] : vector<8x32xf32> to vector<8xf32>
    %155 = vector.shape_cast %154 : vector<8xf32> to vector<8x1xf32>
    %cst_45 = arith.constant 3.200000e+01 : f32
    %156 = vector.broadcast %cst_45 : f32 to vector<8x1xf32>
    %157 = arith.divf %155, %156 : vector<8x1xf32>
    %158 = vector.broadcast %157 : vector<8x1xf32> to vector<8x32xf32>
    %159 = arith.subf %153, %158 : vector<8x32xf32>
    %160 = arith.mulf %159, %159 : vector<8x32xf32>
    %cst_46 = arith.constant dense<0.000000e+00> : vector<8xf32>
    %161 = vector.multi_reduction <add>, %160, %cst_46 [1] : vector<8x32xf32> to vector<8xf32>
    %162 = vector.shape_cast %161 : vector<8xf32> to vector<8x1xf32>
    %cst_47 = arith.constant 3.200000e+01 : f32
    %163 = vector.broadcast %cst_47 : f32 to vector<8x1xf32>
    %164 = arith.divf %162, %163 : vector<8x1xf32>
    %cst_48 = arith.constant 9.99999974E-6 : f32
    %165 = vector.broadcast %cst_48 : f32 to vector<8x1xf32>
    %166 = arith.addf %164, %165 : vector<8x1xf32>
    %167 = math.rsqrt %166 : vector<8x1xf32>
    %168 = vector.broadcast %167 : vector<8x1xf32> to vector<8x32xf32>
    %169 = arith.mulf %159, %168 : vector<8x32xf32>
    %c0_49 = arith.constant 0 : index
    %c0_50 = arith.constant 0 : index
    %170 = vector.load %arg9[%c0_49, %c0_50] : memref<1x32xf32, #tpu.memory_space<vmem>>, vector<1x32xf32>
    %171 = vector.broadcast %170 : vector<1x32xf32> to vector<8x32xf32>
    %172 = arith.mulf %169, %171 : vector<8x32xf32>
    %c0_51 = arith.constant 0 : index
    %c0_52 = arith.constant 0 : index
    %173 = vector.load %arg10[%c0_51, %c0_52] : memref<1x32xf32, #tpu.memory_space<vmem>>, vector<1x32xf32>
    %174 = vector.broadcast %173 : vector<1x32xf32> to vector<8x32xf32>
    %175 = arith.addf %172, %174 : vector<8x32xf32>
    %176 = arith.truncf %175 : vector<8x32xf32> to vector<8x32xbf16>
    %c0_53 = arith.constant 0 : index
    %c0_54 = arith.constant 0 : index
    %177 = vector.load %arg11[%c0_53, %c0_54] : memref<32x128xbf16, #tpu.memory_space<vmem>>, vector<32x128xbf16>
    %cst_55 = arith.constant dense<0.000000e+00> : vector<8x128xf32>
    %178 = tpu.matmul %176, %177, %cst_55 {dimension_numbers = #tpu.dot_dimension_numbers<[1], [0], [0], [1], [0, 0, 1, 1], [], []>} : vector<8x32xbf16>, vector<32x128xbf16>, vector<8x128xf32> -> vector<8x128xf32>
    %c0_56 = arith.constant 0 : index
    %c0_57 = arith.constant 0 : index
    %179 = vector.load %arg12[%c0_56, %c0_57] : memref<1x128xf32, #tpu.memory_space<vmem>>, vector<1x128xf32>
    %180 = vector.broadcast %179 : vector<1x128xf32> to vector<8x128xf32>
    %181 = arith.addf %178, %180 : vector<8x128xf32>
    %cst_58 = arith.constant 5.000000e-01 : f32
    %182 = vector.broadcast %cst_58 : f32 to vector<8x128xf32>
    %183 = arith.mulf %182, %181 : vector<8x128xf32>
    %cst_59 = arith.constant 0.707106769 : f32
    %184 = vector.broadcast %cst_59 : f32 to vector<8x128xf32>
    %185 = arith.mulf %181, %184 : vector<8x128xf32>
    %186 = math.absf %185 : vector<8x128xf32>
    %cst_60 = arith.constant 0.327591091 : f32
    %187 = vector.broadcast %cst_60 : f32 to vector<8x128xf32>
    %188 = arith.mulf %187, %186 : vector<8x128xf32>
    %cst_61 = arith.constant 1.000000e+00 : f32
    %189 = vector.broadcast %cst_61 : f32 to vector<8x128xf32>
    %190 = arith.addf %189, %188 : vector<8x128xf32>
    %cst_62 = arith.constant 1.000000e+00 : f32
    %191 = vector.broadcast %cst_62 : f32 to vector<8x128xf32>
    %192 = arith.divf %191, %190 : vector<8x128xf32>
    %cst_63 = arith.constant 1.06140542 : f32
    %193 = vector.broadcast %cst_63 : f32 to vector<8x128xf32>
    %194 = arith.mulf %193, %192 : vector<8x128xf32>
    %cst_64 = arith.constant -1.45315206 : f32
    %195 = vector.broadcast %cst_64 : f32 to vector<8x128xf32>
    %196 = arith.addf %194, %195 : vector<8x128xf32>
    %197 = arith.mulf %196, %192 : vector<8x128xf32>
    %cst_65 = arith.constant 1.42141378 : f32
    %198 = vector.broadcast %cst_65 : f32 to vector<8x128xf32>
    %199 = arith.addf %197, %198 : vector<8x128xf32>
    %200 = arith.mulf %199, %192 : vector<8x128xf32>
    %cst_66 = arith.constant -0.284496725 : f32
    %201 = vector.broadcast %cst_66 : f32 to vector<8x128xf32>
    %202 = arith.addf %200, %201 : vector<8x128xf32>
    %203 = arith.mulf %202, %192 : vector<8x128xf32>
    %cst_67 = arith.constant 0.254829586 : f32
    %204 = vector.broadcast %cst_67 : f32 to vector<8x128xf32>
    %205 = arith.addf %203, %204 : vector<8x128xf32>
    %206 = arith.mulf %205, %192 : vector<8x128xf32>
    %cst_68 = arith.constant 0.000000e+00 : f32
    %207 = vector.broadcast %cst_68 : f32 to vector<8x128xf32>
    %208 = arith.subf %207, %186 : vector<8x128xf32>
    %209 = arith.mulf %208, %186 : vector<8x128xf32>
    %210 = math.exp %209 : vector<8x128xf32>
    %211 = arith.mulf %206, %210 : vector<8x128xf32>
    %cst_69 = arith.constant 1.000000e+00 : f32
    %212 = vector.broadcast %cst_69 : f32 to vector<8x128xf32>
    %213 = arith.subf %212, %211 : vector<8x128xf32>
    %cst_70 = arith.constant 0.000000e+00 : f32
    %214 = vector.broadcast %cst_70 : f32 to vector<8x128xf32>
    %215 = arith.cmpf olt, %185, %214 : vector<8x128xf32>
    %cst_71 = arith.constant 0.000000e+00 : f32
    %216 = vector.broadcast %cst_71 : f32 to vector<8x128xf32>
    %217 = arith.subf %216, %213 : vector<8x128xf32>
    %218 = arith.select %215, %217, %213 : vector<8x128xi1>, vector<8x128xf32>
    %cst_72 = arith.constant 1.000000e+00 : f32
    %219 = vector.broadcast %cst_72 : f32 to vector<8x128xf32>
    %220 = arith.addf %219, %218 : vector<8x128xf32>
    %221 = arith.mulf %183, %220 : vector<8x128xf32>
    %222 = arith.truncf %221 : vector<8x128xf32> to vector<8x128xbf16>
    %c0_73 = arith.constant 0 : index
    %c0_74 = arith.constant 0 : index
    %223 = vector.load %arg13[%c0_73, %c0_74] : memref<128x32xbf16, #tpu.memory_space<vmem>>, vector<128x32xbf16>
    %cst_75 = arith.constant dense<0.000000e+00> : vector<8x32xf32>
    %224 = tpu.matmul %222, %223, %cst_75 {dimension_numbers = #tpu.dot_dimension_numbers<[1], [0], [0], [1], [0, 0, 1, 1], [], []>} : vector<8x128xbf16>, vector<128x32xbf16>, vector<8x32xf32> -> vector<8x32xf32>
    %c0_76 = arith.constant 0 : index
    %c0_77 = arith.constant 0 : index
    %225 = vector.load %arg14[%c0_76, %c0_77] : memref<1x32xf32, #tpu.memory_space<vmem>>, vector<1x32xf32>
    %226 = vector.broadcast %225 : vector<1x32xf32> to vector<8x32xf32>
    %227 = arith.addf %224, %226 : vector<8x32xf32>
    %228 = arith.addf %153, %227 : vector<8x32xf32>
    %c0_78 = arith.constant 0 : index
    %c0_79 = arith.constant 0 : index
    %229 = vector.load %arg15[%c0_78, %c0_79] : memref<8x32xf32, #tpu.memory_space<vmem>>, vector<8x32xf32>
    tpu.vector_store %arg15[%c0_78, %c0_79], %228 {strides = array<i32>} : memref<8x32xf32, #tpu.memory_space<vmem>>, vector<8x32xf32>,
    return
  }
  func.func @transform_0(%arg0: i32) -> (i32, i32) {
    %c0_i32 = arith.constant 0 : i32
    %c0_i32_0 = arith.constant 0 : i32
    return %arg0, %c0_i32 : i32, i32
  }
  func.func @transform_1(%arg0: i32) -> (i32, i32, i32) {
    %c0_i32 = arith.constant 0 : i32
    %c0_i32_0 = arith.constant 0 : i32
    %c0_i32_1 = arith.constant 0 : i32
    return %arg0, %c0_i32, %c0_i32_0 : i32, i32, i32
  }
  func.func @transform_2(%arg0: i32) -> (i32, i32) {
    %c0_i32 = arith.constant 0 : i32
    %c0_i32_0 = arith.constant 0 : i32
    %c0_i32_1 = arith.constant 0 : i32
    return %c0_i32, %c0_i32_0 : i32, i32
  }
  func.func @transform_3(%arg0: i32) -> (i32, i32) {
    %c0_i32 = arith.constant 0 : i32
    %c0_i32_0 = arith.constant 0 : i32
    %c0_i32_1 = arith.constant 0 : i32
    return %c0_i32, %c0_i32_0 : i32, i32
  }
  func.func @transform_4(%arg0: i32) -> (i32, i32) {
    %c0_i32 = arith.constant 0 : i32
    %c0_i32_0 = arith.constant 0 : i32
    %c0_i32_1 = arith.constant 0 : i32
    return %c0_i32, %c0_i32_0 : i32, i32
  }
  func.func @transform_5(%arg0: i32) -> (i32, i32) {
    %c0_i32 = arith.constant 0 : i32
    %c0_i32_0 = arith.constant 0 : i32
    %c0_i32_1 = arith.constant 0 : i32
    return %c0_i32, %c0_i32_0 : i32, i32
  }
  func.func @transform_6(%arg0: i32) -> (i32, i32) {
    %c0_i32 = arith.constant 0 : i32
    %c0_i32_0 = arith.constant 0 : i32
    %c0_i32_1 = arith.constant 0 : i32
    return %c0_i32, %c0_i32_0 : i32, i32
  }
  func.func @transform_7(%arg0: i32) -> (i32, i32) {
    %c0_i32 = arith.constant 0 : i32
    %c0_i32_0 = arith.constant 0 : i32
    %c0_i32_1 = arith.constant 0 : i32
    return %c0_i32, %c0_i32_0 : i32, i32
  }
  func.func @transform_8(%arg0: i32) -> (i32, i32) {
    %c0_i32 = arith.constant 0 : i32
    %c0_i32_0 = arith.constant 0 : i32
    %c0_i32_1 = arith.constant 0 : i32
    return %c0_i32, %c0_i32_0 : i32, i32
  }
  func.func @transform_9(%arg0: i32) -> (i32, i32) {
    %c0_i32 = arith.constant 0 : i32
    %c0_i32_0 = arith.constant 0 : i32
    %c0_i32_1 = arith.constant 0 : i32
    return %c0_i32, %c0_i32_0 : i32, i32
  }
  func.func @transform_10(%arg0: i32) -> (i32, i32) {
    %c0_i32 = arith.constant 0 : i32
    %c0_i32_0 = arith.constant 0 : i32
    %c0_i32_1 = arith.constant 0 : i32
    return %c0_i32, %c0_i32_0 : i32, i32
  }
  func.func @transform_11(%arg0: i32) -> (i32, i32) {
    %c0_i32 = arith.constant 0 : i32
    %c0_i32_0 = arith.constant 0 : i32
    %c0_i32_1 = arith.constant 0 : i32
    return %c0_i32, %c0_i32_0 : i32, i32
  }
  func.func @transform_12(%arg0: i32) -> (i32, i32) {
    %c0_i32 = arith.constant 0 : i32
    %c0_i32_0 = arith.constant 0 : i32
    %c0_i32_1 = arith.constant 0 : i32
    return %c0_i32, %c0_i32_0 : i32, i32
  }
  func.func @transform_13(%arg0: i32) -> (i32, i32) {
    %c0_i32 = arith.constant 0 : i32
    %c0_i32_0 = arith.constant 0 : i32
    %c0_i32_1 = arith.constant 0 : i32
    return %c0_i32, %c0_i32_0 : i32, i32
  }
  func.func @transform_14(%arg0: i32) -> (i32, i32) {
    %c0_i32 = arith.constant 0 : i32
    %c0_i32_0 = arith.constant 0 : i32
    return %arg0, %c0_i32 : i32, i32
  }
}

module attributes {stable_mosaic.version = 11 : i64} {
  func.func @_decoder_kernel(%arg0: i32, %arg1: memref<8x32xf32, #tpu.memory_space<vmem>>, %arg2: memref<1x1x8xf32, #tpu.memory_space<vmem>>, %arg3: memref<1x32xf32, #tpu.memory_space<vmem>>, %arg4: memref<1x32xf32, #tpu.memory_space<vmem>>, %arg5: memref<32x96xbf16, #tpu.memory_space<vmem>>, %arg6: memref<1x96xf32, #tpu.memory_space<vmem>>, %arg7: memref<32x32xbf16, #tpu.memory_space<vmem>>, %arg8: memref<1x32xf32, #tpu.memory_space<vmem>>, %arg9: memref<1x32xf32, #tpu.memory_space<vmem>>, %arg10: memref<1x32xf32, #tpu.memory_space<vmem>>, %arg11: memref<32x128xbf16, #tpu.memory_space<vmem>>, %arg12: memref<1x128xf32, #tpu.memory_space<vmem>>, %arg13: memref<128x32xbf16, #tpu.memory_space<vmem>>, %arg14: memref<1x32xf32, #tpu.memory_space<vmem>>, %arg15: memref<8x32xf32, #tpu.memory_space<vmem>>) attributes {dimension_semantics = [#tpu.dimension_semantics<parallel>], iteration_bounds = array<i64: 2>, scalar_prefetch = 0 : i64, scratch_operands = 0 : i64, tpu.core_type = #tpu.core_type<tc>, window_params = [{transform_indices = @transform_0, window_bounds = array<i64: 8, 32>}, {transform_indices = @transform_1, window_bounds = array<i64: 1, 1, 8>}, {pipeline_mode = #tpu.pipeline_mode<synchronous>, transform_indices = @transform_2, window_bounds = array<i64: 1, 32>}, {pipeline_mode = #tpu.pipeline_mode<synchronous>, transform_indices = @transform_3, window_bounds = array<i64: 1, 32>}, {pipeline_mode = #tpu.pipeline_mode<synchronous>, transform_indices = @transform_4, window_bounds = array<i64: 32, 96>}, {pipeline_mode = #tpu.pipeline_mode<synchronous>, transform_indices = @transform_5, window_bounds = array<i64: 1, 96>}, {pipeline_mode = #tpu.pipeline_mode<synchronous>, transform_indices = @transform_6, window_bounds = array<i64: 32, 32>}, {pipeline_mode = #tpu.pipeline_mode<synchronous>, transform_indices = @transform_7, window_bounds = array<i64: 1, 32>}, {pipeline_mode = #tpu.pipeline_mode<synchronous>, transform_indices = @transform_8, window_bounds = array<i64: 1, 32>}, {pipeline_mode = #tpu.pipeline_mode<synchronous>, transform_indices = @transform_9, window_bounds = array<i64: 1, 32>}, {pipeline_mode = #tpu.pipeline_mode<synchronous>, transform_indices = @transform_10, window_bounds = array<i64: 32, 128>}, {pipeline_mode = #tpu.pipeline_mode<synchronous>, transform_indices = @transform_11, window_bounds = array<i64: 1, 128>}, {pipeline_mode = #tpu.pipeline_mode<synchronous>, transform_indices = @transform_12, window_bounds = array<i64: 128, 32>}, {pipeline_mode = #tpu.pipeline_mode<synchronous>, transform_indices = @transform_13, window_bounds = array<i64: 1, 32>}, {transform_indices = @transform_14, window_bounds = array<i64: 8, 32>}]} {
    %c0 = arith.constant 0 : index
    %c0_0 = arith.constant 0 : index
    %0 = vector.load %arg1[%c0, %c0_0] : memref<8x32xf32, #tpu.memory_space<vmem>>, vector<8x32xf32>
    %cst = arith.constant dense<0.000000e+00> : vector<8xf32>
    %1 = vector.multi_reduction <add>, %0, %cst [1] : vector<8x32xf32> to vector<8xf32>
    %2 = vector.shape_cast %1 : vector<8xf32> to vector<8x1xf32>
    %cst_1 = arith.constant 3.200000e+01 : f32
    %3 = vector.broadcast %cst_1 : f32 to vector<8x1xf32>
    %4 = arith.divf %2, %3 : vector<8x1xf32>
    %5 = vector.broadcast %4 : vector<8x1xf32> to vector<8x32xf32>
    %6 = arith.subf %0, %5 : vector<8x32xf32>
    %7 = arith.mulf %6, %6 : vector<8x32xf32>
    %cst_2 = arith.constant dense<0.000000e+00> : vector<8xf32>
    %8 = vector.multi_reduction <add>, %7, %cst_2 [1] : vector<8x32xf32> to vector<8xf32>
    %9 = vector.shape_cast %8 : vector<8xf32> to vector<8x1xf32>
    %cst_3 = arith.constant 3.200000e+01 : f32
    %10 = vector.broadcast %cst_3 : f32 to vector<8x1xf32>
    %11 = arith.divf %9, %10 : vector<8x1xf32>
    %cst_4 = arith.constant 9.99999974E-6 : f32
    %12 = vector.broadcast %cst_4 : f32 to vector<8x1xf32>
    %13 = arith.addf %11, %12 : vector<8x1xf32>
    %14 = math.rsqrt %13 : vector<8x1xf32>
    %15 = vector.broadcast %14 : vector<8x1xf32> to vector<8x32xf32>
    %16 = arith.mulf %6, %15 : vector<8x32xf32>
    %c0_5 = arith.constant 0 : index
    %c0_6 = arith.constant 0 : index
    %17 = vector.load %arg3[%c0_5, %c0_6] : memref<1x32xf32, #tpu.memory_space<vmem>>, vector<1x32xf32>
    %18 = vector.broadcast %17 : vector<1x32xf32> to vector<8x32xf32>
    %19 = arith.mulf %16, %18 : vector<8x32xf32>
    %c0_7 = arith.constant 0 : index
    %c0_8 = arith.constant 0 : index
    %20 = vector.load %arg4[%c0_7, %c0_8] : memref<1x32xf32, #tpu.memory_space<vmem>>, vector<1x32xf32>
    %21 = vector.broadcast %20 : vector<1x32xf32> to vector<8x32xf32>
    %22 = arith.addf %19, %21 : vector<8x32xf32>
    %23 = arith.truncf %22 : vector<8x32xf32> to vector<8x32xbf16>
    %c0_9 = arith.constant 0 : index
    %c0_10 = arith.constant 0 : index
    %24 = vector.load %arg5[%c0_9, %c0_10] : memref<32x96xbf16, #tpu.memory_space<vmem>>, vector<32x96xbf16>
    %cst_11 = arith.constant dense<0.000000e+00> : vector<8x96xf32>
    %25 = tpu.matmul %23, %24, %cst_11 {dimension_numbers = #tpu.dot_dimension_numbers<[1], [0], [0], [1], [0, 0, 1, 1], [], []>} : vector<8x32xbf16>, vector<32x96xbf16>, vector<8x96xf32> -> vector<8x96xf32>
    %c0_12 = arith.constant 0 : index
    %c0_13 = arith.constant 0 : index
    %26 = vector.load %arg6[%c0_12, %c0_13] : memref<1x96xf32, #tpu.memory_space<vmem>>, vector<1x96xf32>
    %27 = vector.broadcast %26 : vector<1x96xf32> to vector<8x96xf32>
    %28 = arith.addf %25, %27 : vector<8x96xf32>
    %29 = vector.extract_strided_slice %28 {offsets = [0, 0], sizes = [8, 32], strides = [1, 1]} : vector<8x96xf32> to vector<8x32xf32>
    %30 = vector.extract_strided_slice %28 {offsets = [0, 32], sizes = [8, 32], strides = [1, 1]} : vector<8x96xf32> to vector<8x32xf32>
    %31 = vector.extract_strided_slice %28 {offsets = [0, 64], sizes = [8, 32], strides = [1, 1]} : vector<8x96xf32> to vector<8x32xf32>
    %32 = tpu.iota {dimensions = array<i32: 0>} : vector<8x8xi32>
    %33 = tpu.iota {dimensions = array<i32: 1>} : vector<8x8xi32>
    %34 = arith.cmpi sgt, %33, %32 : vector<8x8xi32>
    %cst_14 = arith.constant -1.000000e+30 : f32
    %cst_15 = arith.constant 0.000000e+00 : f32
    %35 = vector.broadcast %cst_14 : f32 to vector<8x8xf32>
    %36 = vector.broadcast %cst_15 : f32 to vector<8x8xf32>
    %37 = arith.select %34, %35, %36 : vector<8x8xi1>, vector<8x8xf32>
    %38 = vector.shape_cast %37 : vector<8x8xf32> to vector<1x8x8xf32>
    %c0_16 = arith.constant 0 : index
    %c0_17 = arith.constant 0 : index
    %c0_18 = arith.constant 0 : index
    %39 = vector.load %arg2[%c0_16, %c0_17, %c0_18] : memref<1x1x8xf32, #tpu.memory_space<vmem>>, vector<1x1x8xf32>
    %40 = vector.broadcast %39 : vector<1x1x8xf32> to vector<1x8x8xf32>
    %41 = arith.addf %40, %38 : vector<1x8x8xf32>
    %42 = vector.extract_strided_slice %29 {offsets = [0, 0], sizes = [8, 8], strides = [1, 1]} : vector<8x32xf32> to vector<8x8xf32>
    %43 = vector.shape_cast %42 : vector<8x8xf32> to vector<1x8x8xf32>
    %44 = arith.truncf %43 : vector<1x8x8xf32> to vector<1x8x8xbf16>
    %45 = vector.extract_strided_slice %30 {offsets = [0, 0], sizes = [8, 8], strides = [1, 1]} : vector<8x32xf32> to vector<8x8xf32>
    %46 = vector.shape_cast %45 : vector<8x8xf32> to vector<1x8x8xf32>
    %47 = arith.truncf %46 : vector<1x8x8xf32> to vector<1x8x8xbf16>
    %48 = vector.extract_strided_slice %31 {offsets = [0, 0], sizes = [8, 8], strides = [1, 1]} : vector<8x32xf32> to vector<8x8xf32>
    %49 = vector.shape_cast %48 : vector<8x8xf32> to vector<1x8x8xf32>
    %50 = arith.truncf %49 : vector<1x8x8xf32> to vector<1x8x8xbf16>
    "tpu.trace_start"() <{level = 10 : i32, message = "bqd,bkd->bqk"}> : () -> ()
    %cst_19 = arith.constant dense<0.000000e+00> : vector<1x8x8xf32>
    %51 = tpu.matmul %44, %47, %cst_19 {dimension_numbers = #tpu.dot_dimension_numbers<[2], [2], [1], [1], [0, 0, 0, 1, 1, 1], [0], [0]>} : vector<1x8x8xbf16>, vector<1x8x8xbf16>, vector<1x8x8xf32> -> vector<1x8x8xf32>
    "tpu.trace_stop"() : () -> ()
    %cst_20 = arith.constant 0.353553385 : f32
    %52 = vector.broadcast %cst_20 : f32 to vector<1x8x8xf32>
    %53 = arith.mulf %51, %52 : vector<1x8x8xf32>
    %54 = arith.addf %53, %41 : vector<1x8x8xf32>
    %cst_21 = arith.constant dense<0xFF800000> : vector<1x8xf32>
    %55 = vector.multi_reduction <maximumf>, %54, %cst_21 [2] : vector<1x8x8xf32> to vector<1x8xf32>
    %56 = vector.shape_cast %55 : vector<1x8xf32> to vector<1x8x1xf32>
    %57 = vector.broadcast %56 : vector<1x8x1xf32> to vector<1x8x8xf32>
    %58 = arith.subf %54, %57 : vector<1x8x8xf32>
    %59 = math.exp %58 : vector<1x8x8xf32>
    %cst_22 = arith.constant dense<0.000000e+00> : vector<1x8xf32>
    %60 = vector.multi_reduction <add>, %59, %cst_22 [2] : vector<1x8x8xf32> to vector<1x8xf32>
    %61 = vector.shape_cast %60 : vector<1x8xf32> to vector<1x8x1xf32>
    %62 = tpu.reciprocal %61 {approx = true} : vector<1x8x1xf32> -> vector<1x8x1xf32>
    %63 = vector.broadcast %62 : vector<1x8x1xf32> to vector<1x8x8xf32>
    %64 = arith.mulf %59, %63 : vector<1x8x8xf32>
    %65 = arith.truncf %64 : vector<1x8x8xf32> to vector<1x8x8xbf16>
    "tpu.trace_start"() <{level = 10 : i32, message = "bqk,bkd->bqd"}> : () -> ()
    %cst_23 = arith.constant dense<0.000000e+00> : vector<1x8x8xf32>
    %66 = tpu.matmul %65, %50, %cst_23 {dimension_numbers = #tpu.dot_dimension_numbers<[2], [1], [1], [2], [0, 0, 0, 1, 1, 2], [0], [0]>} : vector<1x8x8xbf16>, vector<1x8x8xbf16>, vector<1x8x8xf32> -> vector<1x8x8xf32>
    "tpu.trace_stop"() : () -> ()
    %67 = vector.shape_cast %66 : vector<1x8x8xf32> to vector<8x8xf32>
    %68 = vector.extract_strided_slice %29 {offsets = [0, 8], sizes = [8, 8], strides = [1, 1]} : vector<8x32xf32> to vector<8x8xf32>
    %69 = vector.shape_cast %68 : vector<8x8xf32> to vector<1x8x8xf32>
    %70 = arith.truncf %69 : vector<1x8x8xf32> to vector<1x8x8xbf16>
    %71 = vector.extract_strided_slice %30 {offsets = [0, 8], sizes = [8, 8], strides = [1, 1]} : vector<8x32xf32> to vector<8x8xf32>
    %72 = vector.shape_cast %71 : vector<8x8xf32> to vector<1x8x8xf32>
    %73 = arith.truncf %72 : vector<1x8x8xf32> to vector<1x8x8xbf16>
    %74 = vector.extract_strided_slice %31 {offsets = [0, 8], sizes = [8, 8], strides = [1, 1]} : vector<8x32xf32> to vector<8x8xf32>
    %75 = vector.shape_cast %74 : vector<8x8xf32> to vector<1x8x8xf32>
    %76 = arith.truncf %75 : vector<1x8x8xf32> to vector<1x8x8xbf16>
    "tpu.trace_start"() <{level = 10 : i32, message = "bqd,bkd->bqk"}> : () -> ()
    %cst_24 = arith.constant dense<0.000000e+00> : vector<1x8x8xf32>
    %77 = tpu.matmul %70, %73, %cst_24 {dimension_numbers = #tpu.dot_dimension_numbers<[2], [2], [1], [1], [0, 0, 0, 1, 1, 1], [0], [0]>} : vector<1x8x8xbf16>, vector<1x8x8xbf16>, vector<1x8x8xf32> -> vector<1x8x8xf32>
    "tpu.trace_stop"() : () -> ()
    %cst_25 = arith.constant 0.353553385 : f32
    %78 = vector.broadcast %cst_25 : f32 to vector<1x8x8xf32>
    %79 = arith.mulf %77, %78 : vector<1x8x8xf32>
    %80 = arith.addf %79, %41 : vector<1x8x8xf32>
    %cst_26 = arith.constant dense<0xFF800000> : vector<1x8xf32>
    %81 = vector.multi_reduction <maximumf>, %80, %cst_26 [2] : vector<1x8x8xf32> to vector<1x8xf32>
    %82 = vector.shape_cast %81 : vector<1x8xf32> to vector<1x8x1xf32>
    %83 = vector.broadcast %82 : vector<1x8x1xf32> to vector<1x8x8xf32>
    %84 = arith.subf %80, %83 : vector<1x8x8xf32>
    %85 = math.exp %84 : vector<1x8x8xf32>
    %cst_27 = arith.constant dense<0.000000e+00> : vector<1x8xf32>
    %86 = vector.multi_reduction <add>, %85, %cst_27 [2] : vector<1x8x8xf32> to vector<1x8xf32>
    %87 = vector.shape_cast %86 : vector<1x8xf32> to vector<1x8x1xf32>
    %88 = tpu.reciprocal %87 {approx = true} : vector<1x8x1xf32> -> vector<1x8x1xf32>
    %89 = vector.broadcast %88 : vector<1x8x1xf32> to vector<1x8x8xf32>
    %90 = arith.mulf %85, %89 : vector<1x8x8xf32>
    %91 = arith.truncf %90 : vector<1x8x8xf32> to vector<1x8x8xbf16>
    "tpu.trace_start"() <{level = 10 : i32, message = "bqk,bkd->bqd"}> : () -> ()
    %cst_28 = arith.constant dense<0.000000e+00> : vector<1x8x8xf32>
    %92 = tpu.matmul %91, %76, %cst_28 {dimension_numbers = #tpu.dot_dimension_numbers<[2], [1], [1], [2], [0, 0, 0, 1, 1, 2], [0], [0]>} : vector<1x8x8xbf16>, vector<1x8x8xbf16>, vector<1x8x8xf32> -> vector<1x8x8xf32>
    "tpu.trace_stop"() : () -> ()
    %93 = vector.shape_cast %92 : vector<1x8x8xf32> to vector<8x8xf32>
    %94 = vector.extract_strided_slice %29 {offsets = [0, 16], sizes = [8, 8], strides = [1, 1]} : vector<8x32xf32> to vector<8x8xf32>
    %95 = vector.shape_cast %94 : vector<8x8xf32> to vector<1x8x8xf32>
    %96 = arith.truncf %95 : vector<1x8x8xf32> to vector<1x8x8xbf16>
    %97 = vector.extract_strided_slice %30 {offsets = [0, 16], sizes = [8, 8], strides = [1, 1]} : vector<8x32xf32> to vector<8x8xf32>
    %98 = vector.shape_cast %97 : vector<8x8xf32> to vector<1x8x8xf32>
    %99 = arith.truncf %98 : vector<1x8x8xf32> to vector<1x8x8xbf16>
    %100 = vector.extract_strided_slice %31 {offsets = [0, 16], sizes = [8, 8], strides = [1, 1]} : vector<8x32xf32> to vector<8x8xf32>
    %101 = vector.shape_cast %100 : vector<8x8xf32> to vector<1x8x8xf32>
    %102 = arith.truncf %101 : vector<1x8x8xf32> to vector<1x8x8xbf16>
    "tpu.trace_start"() <{level = 10 : i32, message = "bqd,bkd->bqk"}> : () -> ()
    %cst_29 = arith.constant dense<0.000000e+00> : vector<1x8x8xf32>
    %103 = tpu.matmul %96, %99, %cst_29 {dimension_numbers = #tpu.dot_dimension_numbers<[2], [2], [1], [1], [0, 0, 0, 1, 1, 1], [0], [0]>} : vector<1x8x8xbf16>, vector<1x8x8xbf16>, vector<1x8x8xf32> -> vector<1x8x8xf32>
    "tpu.trace_stop"() : () -> ()
    %cst_30 = arith.constant 0.353553385 : f32
    %104 = vector.broadcast %cst_30 : f32 to vector<1x8x8xf32>
    %105 = arith.mulf %103, %104 : vector<1x8x8xf32>
    %106 = arith.addf %105, %41 : vector<1x8x8xf32>
    %cst_31 = arith.constant dense<0xFF800000> : vector<1x8xf32>
    %107 = vector.multi_reduction <maximumf>, %106, %cst_31 [2] : vector<1x8x8xf32> to vector<1x8xf32>
    %108 = vector.shape_cast %107 : vector<1x8xf32> to vector<1x8x1xf32>
    %109 = vector.broadcast %108 : vector<1x8x1xf32> to vector<1x8x8xf32>
    %110 = arith.subf %106, %109 : vector<1x8x8xf32>
    %111 = math.exp %110 : vector<1x8x8xf32>
    %cst_32 = arith.constant dense<0.000000e+00> : vector<1x8xf32>
    %112 = vector.multi_reduction <add>, %111, %cst_32 [2] : vector<1x8x8xf32> to vector<1x8xf32>
    %113 = vector.shape_cast %112 : vector<1x8xf32> to vector<1x8x1xf32>
    %114 = tpu.reciprocal %113 {approx = true} : vector<1x8x1xf32> -> vector<1x8x1xf32>
    %115 = vector.broadcast %114 : vector<1x8x1xf32> to vector<1x8x8xf32>
    %116 = arith.mulf %111, %115 : vector<1x8x8xf32>
    %117 = arith.truncf %116 : vector<1x8x8xf32> to vector<1x8x8xbf16>
    "tpu.trace_start"() <{level = 10 : i32, message = "bqk,bkd->bqd"}> : () -> ()
    %cst_33 = arith.constant dense<0.000000e+00> : vector<1x8x8xf32>
    %118 = tpu.matmul %117, %102, %cst_33 {dimension_numbers = #tpu.dot_dimension_numbers<[2], [1], [1], [2], [0, 0, 0, 1, 1, 2], [0], [0]>} : vector<1x8x8xbf16>, vector<1x8x8xbf16>, vector<1x8x8xf32> -> vector<1x8x8xf32>
    "tpu.trace_stop"() : () -> ()
    %119 = vector.shape_cast %118 : vector<1x8x8xf32> to vector<8x8xf32>
    %120 = vector.extract_strided_slice %29 {offsets = [0, 24], sizes = [8, 8], strides = [1, 1]} : vector<8x32xf32> to vector<8x8xf32>
    %121 = vector.shape_cast %120 : vector<8x8xf32> to vector<1x8x8xf32>
    %122 = arith.truncf %121 : vector<1x8x8xf32> to vector<1x8x8xbf16>
    %123 = vector.extract_strided_slice %30 {offsets = [0, 24], sizes = [8, 8], strides = [1, 1]} : vector<8x32xf32> to vector<8x8xf32>
    %124 = vector.shape_cast %123 : vector<8x8xf32> to vector<1x8x8xf32>
    %125 = arith.truncf %124 : vector<1x8x8xf32> to vector<1x8x8xbf16>
    %126 = vector.extract_strided_slice %31 {offsets = [0, 24], sizes = [8, 8], strides = [1, 1]} : vector<8x32xf32> to vector<8x8xf32>
    %127 = vector.shape_cast %126 : vector<8x8xf32> to vector<1x8x8xf32>
    %128 = arith.truncf %127 : vector<1x8x8xf32> to vector<1x8x8xbf16>
    "tpu.trace_start"() <{level = 10 : i32, message = "bqd,bkd->bqk"}> : () -> ()
    %cst_34 = arith.constant dense<0.000000e+00> : vector<1x8x8xf32>
    %129 = tpu.matmul %122, %125, %cst_34 {dimension_numbers = #tpu.dot_dimension_numbers<[2], [2], [1], [1], [0, 0, 0, 1, 1, 1], [0], [0]>} : vector<1x8x8xbf16>, vector<1x8x8xbf16>, vector<1x8x8xf32> -> vector<1x8x8xf32>
    "tpu.trace_stop"() : () -> ()
    %cst_35 = arith.constant 0.353553385 : f32
    %130 = vector.broadcast %cst_35 : f32 to vector<1x8x8xf32>
    %131 = arith.mulf %129, %130 : vector<1x8x8xf32>
    %132 = arith.addf %131, %41 : vector<1x8x8xf32>
    %cst_36 = arith.constant dense<0xFF800000> : vector<1x8xf32>
    %133 = vector.multi_reduction <maximumf>, %132, %cst_36 [2] : vector<1x8x8xf32> to vector<1x8xf32>
    %134 = vector.shape_cast %133 : vector<1x8xf32> to vector<1x8x1xf32>
    %135 = vector.broadcast %134 : vector<1x8x1xf32> to vector<1x8x8xf32>
    %136 = arith.subf %132, %135 : vector<1x8x8xf32>
    %137 = math.exp %136 : vector<1x8x8xf32>
    %cst_37 = arith.constant dense<0.000000e+00> : vector<1x8xf32>
    %138 = vector.multi_reduction <add>, %137, %cst_37 [2] : vector<1x8x8xf32> to vector<1x8xf32>
    %139 = vector.shape_cast %138 : vector<1x8xf32> to vector<1x8x1xf32>
    %140 = tpu.reciprocal %139 {approx = true} : vector<1x8x1xf32> -> vector<1x8x1xf32>
    %141 = vector.broadcast %140 : vector<1x8x1xf32> to vector<1x8x8xf32>
    %142 = arith.mulf %137, %141 : vector<1x8x8xf32>
    %143 = arith.truncf %142 : vector<1x8x8xf32> to vector<1x8x8xbf16>
    "tpu.trace_start"() <{level = 10 : i32, message = "bqk,bkd->bqd"}> : () -> ()
    %cst_38 = arith.constant dense<0.000000e+00> : vector<1x8x8xf32>
    %144 = tpu.matmul %143, %128, %cst_38 {dimension_numbers = #tpu.dot_dimension_numbers<[2], [1], [1], [2], [0, 0, 0, 1, 1, 2], [0], [0]>} : vector<1x8x8xbf16>, vector<1x8x8xbf16>, vector<1x8x8xf32> -> vector<1x8x8xf32>
    "tpu.trace_stop"() : () -> ()
    %145 = vector.shape_cast %144 : vector<1x8x8xf32> to vector<8x8xf32>
    %146 = tpu.concatenate %67, %93, %119, %145 in 1 : vector<8x8xf32>, vector<8x8xf32>, vector<8x8xf32>, vector<8x8xf32> -> vector<8x32xf32>
    %147 = arith.truncf %146 : vector<8x32xf32> to vector<8x32xbf16>
    %c0_39 = arith.constant 0 : index
    %c0_40 = arith.constant 0 : index
    %148 = vector.load %arg7[%c0_39, %c0_40] : memref<32x32xbf16, #tpu.memory_space<vmem>>, vector<32x32xbf16>
    %cst_41 = arith.constant dense<0.000000e+00> : vector<8x32xf32>
    %149 = tpu.matmul %147, %148, %cst_41 {dimension_numbers = #tpu.dot_dimension_numbers<[1], [0], [0], [1], [0, 0, 1, 1], [], []>} : vector<8x32xbf16>, vector<32x32xbf16>, vector<8x32xf32> -> vector<8x32xf32>
    %c0_42 = arith.constant 0 : index
    %c0_43 = arith.constant 0 : index
    %150 = vector.load %arg8[%c0_42, %c0_43] : memref<1x32xf32, #tpu.memory_space<vmem>>, vector<1x32xf32>
    %151 = vector.broadcast %150 : vector<1x32xf32> to vector<8x32xf32>
    %152 = arith.addf %149, %151 : vector<8x32xf32>
    %153 = arith.addf %0, %152 : vector<8x32xf32>
    %cst_44 = arith.constant dense<0.000000e+00> : vector<8xf32>
    %154 = vector.multi_reduction <add>, %153, %cst_44 [1] : vector<8x32xf32> to vector<8xf32>
    %155 = vector.shape_cast %154 : vector<8xf32> to vector<8x1xf32>
    %cst_45 = arith.constant 3.200000e+01 : f32
    %156 = vector.broadcast %cst_45 : f32 to vector<8x1xf32>
    %157 = arith.divf %155, %156 : vector<8x1xf32>
    %158 = vector.broadcast %157 : vector<8x1xf32> to vector<8x32xf32>
    %159 = arith.subf %153, %158 : vector<8x32xf32>
    %160 = arith.mulf %159, %159 : vector<8x32xf32>
    %cst_46 = arith.constant dense<0.000000e+00> : vector<8xf32>
    %161 = vector.multi_reduction <add>, %160, %cst_46 [1] : vector<8x32xf32> to vector<8xf32>
    %162 = vector.shape_cast %161 : vector<8xf32> to vector<8x1xf32>
    %cst_47 = arith.constant 3.200000e+01 : f32
    %163 = vector.broadcast %cst_47 : f32 to vector<8x1xf32>
    %164 = arith.divf %162, %163 : vector<8x1xf32>
    %cst_48 = arith.constant 9.99999974E-6 : f32
    %165 = vector.broadcast %cst_48 : f32 to vector<8x1xf32>
    %166 = arith.addf %164, %165 : vector<8x1xf32>
    %167 = math.rsqrt %166 : vector<8x1xf32>
    %168 = vector.broadcast %167 : vector<8x1xf32> to vector<8x32xf32>
    %169 = arith.mulf %159, %168 : vector<8x32xf32>
    %c0_49 = arith.constant 0 : index
    %c0_50 = arith.constant 0 : index
    %170 = vector.load %arg9[%c0_49, %c0_50] : memref<1x32xf32, #tpu.memory_space<vmem>>, vector<1x32xf32>
    %171 = vector.broadcast %170 : vector<1x32xf32> to vector<8x32xf32>
    %172 = arith.mulf %169, %171 : vector<8x32xf32>
    %c0_51 = arith.constant 0 : index
    %c0_52 = arith.constant 0 : index
    %173 = vector.load %arg10[%c0_51, %c0_52] : memref<1x32xf32, #tpu.memory_space<vmem>>, vector<1x32xf32>
    %174 = vector.broadcast %173 : vector<1x32xf32> to vector<8x32xf32>
    %175 = arith.addf %172, %174 : vector<8x32xf32>
    %176 = arith.truncf %175 : vector<8x32xf32> to vector<8x32xbf16>
    %c0_53 = arith.constant 0 : index
    %c0_54 = arith.constant 0 : index
    %177 = vector.load %arg11[%c0_53, %c0_54] : memref<32x128xbf16, #tpu.memory_space<vmem>>, vector<32x128xbf16>
    %cst_55 = arith.constant dense<0.000000e+00> : vector<8x128xf32>
    %178 = tpu.matmul %176, %177, %cst_55 {dimension_numbers = #tpu.dot_dimension_numbers<[1], [0], [0], [1], [0, 0, 1, 1], [], []>} : vector<8x32xbf16>, vector<32x128xbf16>, vector<8x128xf32> -> vector<8x128xf32>
    %c0_56 = arith.constant 0 : index
    %c0_57 = arith.constant 0 : index
    %179 = vector.load %arg12[%c0_56, %c0_57] : memref<1x128xf32, #tpu.memory_space<vmem>>, vector<1x128xf32>
    %180 = vector.broadcast %179 : vector<1x128xf32> to vector<8x128xf32>
    %181 = arith.addf %178, %180 : vector<8x128xf32>
    %cst_58 = arith.constant 5.000000e-01 : f32
    %182 = vector.broadcast %cst_58 : f32 to vector<8x128xf32>
    %183 = arith.mulf %182, %181 : vector<8x128xf32>
    %cst_59 = arith.constant 0.707106769 : f32
    %184 = vector.broadcast %cst_59 : f32 to vector<8x128xf32>
    %185 = arith.mulf %181, %184 : vector<8x128xf32>
    %186 = math.absf %185 : vector<8x128xf32>
    %cst_60 = arith.constant 0.327591091 : f32
    %187 = vector.broadcast %cst_60 : f32 to vector<8x128xf32>
    %188 = arith.mulf %187, %186 : vector<8x128xf32>
    %cst_61 = arith.constant 1.000000e+00 : f32
    %189 = vector.broadcast %cst_61 : f32 to vector<8x128xf32>
    %190 = arith.addf %189, %188 : vector<8x128xf32>
    %cst_62 = arith.constant 1.000000e+00 : f32
    %191 = vector.broadcast %cst_62 : f32 to vector<8x128xf32>
    %192 = arith.divf %191, %190 : vector<8x128xf32>
    %cst_63 = arith.constant 1.06140542 : f32
    %193 = vector.broadcast %cst_63 : f32 to vector<8x128xf32>
    %194 = arith.mulf %193, %192 : vector<8x128xf32>
    %cst_64 = arith.constant -1.45315206 : f32
    %195 = vector.broadcast %cst_64 : f32 to vector<8x128xf32>
    %196 = arith.addf %194, %195 : vector<8x128xf32>
    %197 = arith.mulf %196, %192 : vector<8x128xf32>
    %cst_65 = arith.constant 1.42141378 : f32
    %198 = vector.broadcast %cst_65 : f32 to vector<8x128xf32>
    %199 = arith.addf %197, %198 : vector<8x128xf32>
    %200 = arith.mulf %199, %192 : vector<8x128xf32>
    %cst_66 = arith.constant -0.284496725 : f32
    %201 = vector.broadcast %cst_66 : f32 to vector<8x128xf32>
    %202 = arith.addf %200, %201 : vector<8x128xf32>
    %203 = arith.mulf %202, %192 : vector<8x128xf32>
    %cst_67 = arith.constant 0.254829586 : f32
    %204 = vector.broadcast %cst_67 : f32 to vector<8x128xf32>
    %205 = arith.addf %203, %204 : vector<8x128xf32>
    %206 = arith.mulf %205, %192 : vector<8x128xf32>
    %cst_68 = arith.constant 0.000000e+00 : f32
    %207 = vector.broadcast %cst_68 : f32 to vector<8x128xf32>
    %208 = arith.subf %207, %186 : vector<8x128xf32>
    %209 = arith.mulf %208, %186 : vector<8x128xf32>
    %210 = math.exp %209 : vector<8x128xf32>
    %211 = arith.mulf %206, %210 : vector<8x128xf32>
    %cst_69 = arith.constant 1.000000e+00 : f32
    %212 = vector.broadcast %cst_69 : f32 to vector<8x128xf32>
    %213 = arith.subf %212, %211 : vector<8x128xf32>
    %cst_70 = arith.constant 0.000000e+00 : f32
    %214 = vector.broadcast %cst_70 : f32 to vector<8x128xf32>
    %215 = arith.cmpf olt, %185, %214 : vector<8x128xf32>
    %cst_71 = arith.constant 0.000000e+00 : f32
    %216 = vector.broadcast %cst_71 : f32 to vector<8x128xf32>
    %217 = arith.subf %216, %213 : vector<8x128xf32>
    %218 = arith.select %215, %217, %213 : vector<8x128xi1>, vector<8x128xf32>
    %cst_72 = arith.constant 1.000000e+00 : f32
    %219 = vector.broadcast %cst_72 : f32 to vector<8x128xf32>
    %220 = arith.addf %219, %218 : vector<8x128xf32>
    %221 = arith.mulf %183, %220 : vector<8x128xf32>
    %222 = arith.truncf %221 : vector<8x128xf32> to vector<8x128xbf16>
    %c0_73 = arith.constant 0 : index
    %c0_74 = arith.constant 0 : index
    %223 = vector.load %arg13[%c0_73, %c0_74] : memref<128x32xbf16, #tpu.memory_space<vmem>>, vector<128x32xbf16>
    %cst_75 = arith.constant dense<0.000000e+00> : vector<8x32xf32>
    %224 = tpu.matmul %222, %223, %cst_75 {dimension_numbers = #tpu.dot_dimension_numbers<[1], [0], [0], [1], [0, 0, 1, 1], [], []>} : vector<8x128xbf16>, vector<128x32xbf16>, vector<8x32xf32> -> vector<8x32xf32>
    %c0_76 = arith.constant 0 : index
    %c0_77 = arith.constant 0 : index
    %225 = vector.load %arg14[%c0_76, %c0_77] : memref<1x32xf32, #tpu.memory_space<vmem>>, vector<1x32xf32>
    %226 = vector.broadcast %225 : vector<1x32xf32> to vector<8x32xf32>
    %227 = arith.addf %224, %226 : vector<8x32xf32>
    %228 = arith.addf %153, %227 : vector<8x32xf32>
    %c0_78 = arith.constant 0 : index
    %c0_79 = arith.constant 0 : index
    %229 = vector.load %arg15[%c0_78, %c0_79] : memref<8x32xf32, #tpu.memory_space<vmem>>, vector<8x32xf32>
    tpu.vector_store %arg15[%c0_78, %c0_79], %228 {strides = array<i32>} : memref<8x32xf32, #tpu.memory_space<vmem>>, vector<8x32xf32>,
    return
  }
  func.func @transform_0(%arg0: i32) -> (i32, i32) {
    %c0_i32 = arith.constant 0 : i32
    %c0_i32_0 = arith.constant 0 : i32
    return %arg0, %c0_i32 : i32, i32
  }
  func.func @transform_1(%arg0: i32) -> (i32, i32, i32) {
    %c0_i32 = arith.constant 0 : i32
    %c0_i32_0 = arith.constant 0 : i32
    %c0_i32_1 = arith.constant 0 : i32
    return %arg0, %c0_i32, %c0_i32_0 : i32, i32, i32
  }
  func.func @transform_2(%arg0: i32) -> (i32, i32) {
    %c0_i32 = arith.constant 0 : i32
    %c0_i32_0 = arith.constant 0 : i32
    %c0_i32_1 = arith.constant 0 : i32
    return %c0_i32, %c0_i32_0 : i32, i32
  }
  func.func @transform_3(%arg0: i32) -> (i32, i32) {
    %c0_i32 = arith.constant 0 : i32
    %c0_i32_0 = arith.constant 0 : i32
    %c0_i32_1 = arith.constant 0 : i32
    return %c0_i32, %c0_i32_0 : i32, i32
  }
  func.func @transform_4(%arg0: i32) -> (i32, i32) {
    %c0_i32 = arith.constant 0 : i32
    %c0_i32_0 = arith.constant 0 : i32
    %c0_i32_1 = arith.constant 0 : i32
    return %c0_i32, %c0_i32_0 : i32, i32
  }
  func.func @transform_5(%arg0: i32) -> (i32, i32) {
    %c0_i32 = arith.constant 0 : i32
    %c0_i32_0 = arith.constant 0 : i32
    %c0_i32_1 = arith.constant 0 : i32
    return %c0_i32, %c0_i32_0 : i32, i32
  }
  func.func @transform_6(%arg0: i32) -> (i32, i32) {
    %c0_i32 = arith.constant 0 : i32
    %c0_i32_0 = arith.constant 0 : i32
    %c0_i32_1 = arith.constant 0 : i32
    return %c0_i32, %c0_i32_0 : i32, i32
  }
  func.func @transform_7(%arg0: i32) -> (i32, i32) {
    %c0_i32 = arith.constant 0 : i32
    %c0_i32_0 = arith.constant 0 : i32
    %c0_i32_1 = arith.constant 0 : i32
    return %c0_i32, %c0_i32_0 : i32, i32
  }
  func.func @transform_8(%arg0: i32) -> (i32, i32) {
    %c0_i32 = arith.constant 0 : i32
    %c0_i32_0 = arith.constant 0 : i32
    %c0_i32_1 = arith.constant 0 : i32
    return %c0_i32, %c0_i32_0 : i32, i32
  }
  func.func @transform_9(%arg0: i32) -> (i32, i32) {
    %c0_i32 = arith.constant 0 : i32
    %c0_i32_0 = arith.constant 0 : i32
    %c0_i32_1 = arith.constant 0 : i32
    return %c0_i32, %c0_i32_0 : i32, i32
  }
  func.func @transform_10(%arg0: i32) -> (i32, i32) {
    %c0_i32 = arith.constant 0 : i32
    %c0_i32_0 = arith.constant 0 : i32
    %c0_i32_1 = arith.constant 0 : i32
    return %c0_i32, %c0_i32_0 : i32, i32
  }
  func.func @transform_11(%arg0: i32) -> (i32, i32) {
    %c0_i32 = arith.constant 0 : i32
    %c0_i32_0 = arith.constant 0 : i32
    %c0_i32_1 = arith.constant 0 : i32
    return %c0_i32, %c0_i32_0 : i32, i32
  }
  func.func @transform_12(%arg0: i32) -> (i32, i32) {
    %c0_i32 = arith.constant 0 : i32
    %c0_i32_0 = arith.constant 0 : i32
    %c0_i32_1 = arith.constant 0 : i32
    return %c0_i32, %c0_i32_0 : i32, i32
  }
  func.func @transform_13(%arg0: i32) -> (i32, i32) {
    %c0_i32 = arith.constant 0 : i32
    %c0_i32_0 = arith.constant 0 : i32
    %c0_i32_1 = arith.constant 0 : i32
    return %c0_i32, %c0_i32_0 : i32, i32
  }
  func.func @transform_14(%arg0: i32) -> (i32, i32) {
    %c0_i32 = arith.constant 0 : i32
    %c0_i32_0 = arith.constant 0 : i32
    return %arg0, %c0_i32 : i32, i32
  }
}

</mosaic_0001>

<llo_original>
// kernel: tpu_custom_call.1
$region0: #{tpu_custom_call.1}
  #allocation0 [shape = 'u32[]', space=smem, size = 0x4, offset = 0x4, fixed_abs, tag = 'smem constant byte address 0x4 - core index']
  #allocation1 [shape = 'u32[72,128]{1,0:T(1,128)}', space=vmem, size = 0x9000, scoped, tag = 'internal scratch']
  %s0 = inlined_call_operand.vmem [shape: f32[16,32], index: 0, kind: input, shape index: {}]
  %s1 = inlined_call_operand.vmem [shape: f32[2,1,8], index: 1, kind: input, shape index: {}]
  %s2 = inlined_call_operand.vmem [shape: f32[1,32], index: 2, kind: input, shape index: {}]
  %s3 = inlined_call_operand.vmem [shape: f32[1,32], index: 3, kind: input, shape index: {}]
  %s4 = inlined_call_operand.vmem [shape: bf16[32,96], index: 4, kind: input, shape index: {}]
  %s5 = inlined_call_operand.vmem [shape: f32[1,96], index: 5, kind: input, shape index: {}]
  %s6 = inlined_call_operand.vmem [shape: bf16[32,32], index: 6, kind: input, shape index: {}]
  %s7 = inlined_call_operand.vmem [shape: f32[1,32], index: 7, kind: input, shape index: {}]
  %s8 = inlined_call_operand.vmem [shape: f32[1,32], index: 8, kind: input, shape index: {}]
  %s9 = inlined_call_operand.vmem [shape: f32[1,32], index: 9, kind: input, shape index: {}]
  %s10 = inlined_call_operand.vmem [shape: bf16[32,128], index: 10, kind: input, shape index: {}]
  %s11 = inlined_call_operand.vmem [shape: f32[1,128], index: 11, kind: input, shape index: {}]
  %s12 = inlined_call_operand.vmem [shape: bf16[128,32], index: 12, kind: input, shape index: {}]
  %s13 = inlined_call_operand.vmem [shape: f32[1,32], index: 13, kind: input, shape index: {}]
  %s14 = inlined_call_operand.hbm [shape: f32[16,32], index: 14, kind: output, shape index: {}]
  %s15 = sld [smem:[#allocation0]]
  $region89: #{tpu_custom_call.1} parent=0
    _
  %s17 = ssub.s32 1, %s15
  %s18 = scalar_select 0, %s17, %s15
  $region1: #{tpu_custom_call.1} parent=0
    #allocation2 [shape = 'u8[8192]{0}', space=vmem, size = 0x2000, scoped, tag = 'output window, operand 0']
    #allocation3 [shape = 's32[2]{0}', space=sflag, size = 0x8, scoped, tag = 'scoped memory for tpu_custom_call.1']
    %19 = vsyncpa [#allocation3], 0
    %s20 = scalar_lea.sflag [#allocation3], 1
    %21 = vsyncpa %s20, 0
    loop: start=0, step=1, limit=4
    $region2: #{tpu_custom_call.1} parent=1 // loop_pre_header
      _
    $region3: #{tpu_custom_call.1} parent=1 // loop_header
      %s23 = sphi 0, %s27
      %p24 = scmp.ge.s32.totalorder %s23, 4
      %s33 = sphi 0, %s35
      %s36 = sphi 0, %s33
      %s37 = sphi 0, %s36
      %s53 = sphi 0, %s37
      %s59 = sphi 0, %s61
      %s62 = sphi 0, %s59
      %s63 = sphi 0, %s62
      %s79 = sphi 0, %s63
      %s83 = sphi 0, %s83
      %s85 = sphi 0, %s83
      %s86 = sphi 0, %s85
      %s100 = sphi 0, %s86
      %s104 = sphi 0, %s104
      %s106 = sphi 0, %s104
      %s107 = sphi 0, %s106
      %s121 = sphi 0, %s107
      %s125 = sphi 0, %s125
      %s127 = sphi 0, %s125
      %s128 = sphi 0, %s127
      %s142 = sphi 0, %s128
      %s146 = sphi 0, %s146
      %s148 = sphi 0, %s146
      %s149 = sphi 0, %s148
      %s163 = sphi 0, %s149
      %s167 = sphi 0, %s167
      %s169 = sphi 0, %s167
      %s170 = sphi 0, %s169
      %s184 = sphi 0, %s170
      %s188 = sphi 0, %s188
      %s190 = sphi 0, %s188
      %s191 = sphi 0, %s190
      %s205 = sphi 0, %s191
      %s209 = sphi 0, %s209
      %s211 = sphi 0, %s209
      %s212 = sphi 0, %s211
      %s226 = sphi 0, %s212
      %s230 = sphi 0, %s230
      %s232 = sphi 0, %s230
      %s233 = sphi 0, %s232
      %s247 = sphi 0, %s233
      %s251 = sphi 0, %s251
      %s253 = sphi 0, %s251
      %s254 = sphi 0, %s253
      %s268 = sphi 0, %s254
      %s272 = sphi 0, %s272
      %s274 = sphi 0, %s272
      %s275 = sphi 0, %s274
      %s289 = sphi 0, %s275
      %s293 = sphi 0, %s293
      %s295 = sphi 0, %s293
      %s296 = sphi 0, %s295
      %s310 = sphi 0, %s296
      %s314 = sphi 0, %s314
      %s316 = sphi 0, %s314
      %s317 = sphi 0, %s316
      %s331 = sphi 0, %s317
      %s337 = sphi 0, %s339
      %s340 = sphi 0, %s337
      %s341 = sphi 0, %s340
      %s357 = sphi 0, %s341
    $region4: #{tpu_custom_call.1} parent=1 // loop_header_branch
      %26 = sbr.rel (%p24) target = $region8
    $region5: #{tpu_custom_call.1} parent=1 // loop_body
      %s28 = ssub.s32 %s23, 1
      %s29 = ssub.s32 %s23, 2
      %s30 = sadd.s32 %s23, 1
      %s31 = ssub.s32 %s23, %s30
      %p32 = scmp.eq.s32.totalorder %s31, 0
      %s34 = sadd.s32 %s33, 1
      %s35 = scalar_select %p32, %s33, %s34
      %p38 = pneg %p32
      %p39 = scmp.eq.s32.totalorder %s23, 1
      %p40 = por %p38, %p39
      %p41 = scmp.ne.s32.totalorder %s33, %s36
      %p42 = scmp.eq.s32.totalorder %s23, 0
      %p43 = por %p41, %p42
      %p44 = scmp.ne.s32.totalorder %s33, %s36
      %p45 = scmp.eq.s32.totalorder %s28, 1
      %p46 = por %p44, %p45
      %p47 = scmp.ne.s32.totalorder %s36, %s37
      %p48 = scmp.eq.s32.totalorder %s28, 0
      %p49 = por %p47, %p48
      %p50 = scmp.ne.s32.totalorder %s36, %s37
      %p51 = scmp.eq.s32.totalorder %s29, 1
      %p52 = por %p50, %p51
      %p54 = scmp.ne.s32.totalorder %s37, %s53
      %p55 = scmp.eq.s32.totalorder %s29, 0
      %p56 = por %p54, %p55
      %s57 = ssub.s32 %s23, %s30
      %p58 = scmp.eq.s32.totalorder %s57, 0
      %s60 = sadd.s32 %s59, 1
      %s61 = scalar_select %p58, %s59, %s60
      %p64 = pneg %p58
      %p65 = scmp.eq.s32.totalorder %s23, 1
      %p66 = por %p64, %p65
      %p67 = scmp.ne.s32.totalorder %s59, %s62
      %p68 = scmp.eq.s32.totalorder %s23, 0
      %p69 = por %p67, %p68
      %p70 = scmp.ne.s32.totalorder %s59, %s62
      %p71 = scmp.eq.s32.totalorder %s28, 1
      %p72 = por %p70, %p71
      %p73 = scmp.ne.s32.totalorder %s62, %s63
      %p74 = scmp.eq.s32.totalorder %s28, 0
      %p75 = por %p73, %p74
      %p76 = scmp.ne.s32.totalorder %s62, %s63
      %p77 = scmp.eq.s32.totalorder %s29, 1
      %p78 = por %p76, %p77
      %p80 = scmp.ne.s32.totalorder %s63, %s79
      %p81 = scmp.eq.s32.totalorder %s29, 0
      %p82 = por %p80, %p81
      %s84 = sadd.s32 %s83, 1
      %p87 = scmp.eq.s32.totalorder %s23, 1
      %p88 = scmp.ne.s32.totalorder %s83, %s85
      %p89 = scmp.eq.s32.totalorder %s23, 0
      %p90 = por %p88, %p89
      %p91 = scmp.ne.s32.totalorder %s83, %s85
      %p92 = scmp.eq.s32.totalorder %s28, 1
      %p93 = por %p91, %p92
      %p94 = scmp.ne.s32.totalorder %s85, %s86
      %p95 = scmp.eq.s32.totalorder %s28, 0
      %p96 = por %p94, %p95
      %p97 = scmp.ne.s32.totalorder %s85, %s86
      %p98 = scmp.eq.s32.totalorder %s29, 1
      %p99 = por %p97, %p98
      %p101 = scmp.ne.s32.totalorder %s86, %s100
      %p102 = scmp.eq.s32.totalorder %s29, 0
      %p103 = por %p101, %p102
      %s105 = sadd.s32 %s104, 1
      %p108 = scmp.eq.s32.totalorder %s23, 1
      %p109 = scmp.ne.s32.totalorder %s104, %s106
      %p110 = scmp.eq.s32.totalorder %s23, 0
      %p111 = por %p109, %p110
      %p112 = scmp.ne.s32.totalorder %s104, %s106
      %p113 = scmp.eq.s32.totalorder %s28, 1
      %p114 = por %p112, %p113
      %p115 = scmp.ne.s32.totalorder %s106, %s107
      %p116 = scmp.eq.s32.totalorder %s28, 0
      %p117 = por %p115, %p116
      %p118 = scmp.ne.s32.totalorder %s106, %s107
      %p119 = scmp.eq.s32.totalorder %s29, 1
      %p120 = por %p118, %p119
      %p122 = scmp.ne.s32.totalorder %s107, %s121
      %p123 = scmp.eq.s32.totalorder %s29, 0
      %p124 = por %p122, %p123
      %s126 = sadd.s32 %s125, 1
      %p129 = scmp.eq.s32.totalorder %s23, 1
      %p130 = scmp.ne.s32.totalorder %s125, %s127
      %p131 = scmp.eq.s32.totalorder %s23, 0
      %p132 = por %p130, %p131
      %p133 = scmp.ne.s32.totalorder %s125, %s127
      %p134 = scmp.eq.s32.totalorder %s28, 1
      %p135 = por %p133, %p134
      %p136 = scmp.ne.s32.totalorder %s127, %s128
      %p137 = scmp.eq.s32.totalorder %s28, 0
      %p138 = por %p136, %p137
      %p139 = scmp.ne.s32.totalorder %s127, %s128
      %p140 = scmp.eq.s32.totalorder %s29, 1
      %p141 = por %p139, %p140
      %p143 = scmp.ne.s32.totalorder %s128, %s142
      %p144 = scmp.eq.s32.totalorder %s29, 0
      %p145 = por %p143, %p144
      %s147 = sadd.s32 %s146, 1
      %p150 = scmp.eq.s32.totalorder %s23, 1
      %p151 = scmp.ne.s32.totalorder %s146, %s148
      %p152 = scmp.eq.s32.totalorder %s23, 0
      %p153 = por %p151, %p152
      %p154 = scmp.ne.s32.totalorder %s146, %s148
      %p155 = scmp.eq.s32.totalorder %s28, 1
      %p156 = por %p154, %p155
      %p157 = scmp.ne.s32.totalorder %s148, %s149
      %p158 = scmp.eq.s32.totalorder %s28, 0
      %p159 = por %p157, %p158
      %p160 = scmp.ne.s32.totalorder %s148, %s149
      %p161 = scmp.eq.s32.totalorder %s29, 1
      %p162 = por %p160, %p161
      %p164 = scmp.ne.s32.totalorder %s149, %s163
      %p165 = scmp.eq.s32.totalorder %s29, 0
      %p166 = por %p164, %p165
      %s168 = sadd.s32 %s167, 1
      %p171 = scmp.eq.s32.totalorder %s23, 1
      %p172 = scmp.ne.s32.totalorder %s167, %s169
      %p173 = scmp.eq.s32.totalorder %s23, 0
      %p174 = por %p172, %p173
      %p175 = scmp.ne.s32.totalorder %s167, %s169
      %p176 = scmp.eq.s32.totalorder %s28, 1
      %p177 = por %p175, %p176
      %p178 = scmp.ne.s32.totalorder %s169, %s170
      %p179 = scmp.eq.s32.totalorder %s28, 0
      %p180 = por %p178, %p179
      %p181 = scmp.ne.s32.totalorder %s169, %s170
      %p182 = scmp.eq.s32.totalorder %s29, 1
      %p183 = por %p181, %p182
      %p185 = scmp.ne.s32.totalorder %s170, %s184
      %p186 = scmp.eq.s32.totalorder %s29, 0
      %p187 = por %p185, %p186
      %s189 = sadd.s32 %s188, 1
      %p192 = scmp.eq.s32.totalorder %s23, 1
      %p193 = scmp.ne.s32.totalorder %s188, %s190
      %p194 = scmp.eq.s32.totalorder %s23, 0
      %p195 = por %p193, %p194
      %p196 = scmp.ne.s32.totalorder %s188, %s190
      %p197 = scmp.eq.s32.totalorder %s28, 1
      %p198 = por %p196, %p197
      %p199 = scmp.ne.s32.totalorder %s190, %s191
      %p200 = scmp.eq.s32.totalorder %s28, 0
      %p201 = por %p199, %p200
      %p202 = scmp.ne.s32.totalorder %s190, %s191
      %p203 = scmp.eq.s32.totalorder %s29, 1
      %p204 = por %p202, %p203
      %p206 = scmp.ne.s32.totalorder %s191, %s205
      %p207 = scmp.eq.s32.totalorder %s29, 0
      %p208 = por %p206, %p207
      %s210 = sadd.s32 %s209, 1
      %p213 = scmp.eq.s32.totalorder %s23, 1
      %p214 = scmp.ne.s32.totalorder %s209, %s211
      %p215 = scmp.eq.s32.totalorder %s23, 0
      %p216 = por %p214, %p215
      %p217 = scmp.ne.s32.totalorder %s209, %s211
      %p218 = scmp.eq.s32.totalorder %s28, 1
      %p219 = por %p217, %p218
      %p220 = scmp.ne.s32.totalorder %s211, %s212
      %p221 = scmp.eq.s32.totalorder %s28, 0
      %p222 = por %p220, %p221
      %p223 = scmp.ne.s32.totalorder %s211, %s212
      %p224 = scmp.eq.s32.totalorder %s29, 1
      %p225 = por %p223, %p224
      %p227 = scmp.ne.s32.totalorder %s212, %s226
      %p228 = scmp.eq.s32.totalorder %s29, 0
      %p229 = por %p227, %p228
      %s231 = sadd.s32 %s230, 1
      %p234 = scmp.eq.s32.totalorder %s23, 1
      %p235 = scmp.ne.s32.totalorder %s230, %s232
      %p236 = scmp.eq.s32.totalorder %s23, 0
      %p237 = por %p235, %p236
      %p238 = scmp.ne.s32.totalorder %s230, %s232
      %p239 = scmp.eq.s32.totalorder %s28, 1
      %p240 = por %p238, %p239
      %p241 = scmp.ne.s32.totalorder %s232, %s233
      %p242 = scmp.eq.s32.totalorder %s28, 0
      %p243 = por %p241, %p242
      %p244 = scmp.ne.s32.totalorder %s232, %s233
      %p245 = scmp.eq.s32.totalorder %s29, 1
      %p246 = por %p244, %p245
      %p248 = scmp.ne.s32.totalorder %s233, %s247
      %p249 = scmp.eq.s32.totalorder %s29, 0
      %p250 = por %p248, %p249
      %s252 = sadd.s32 %s251, 1
      %p255 = scmp.eq.s32.totalorder %s23, 1
      %p256 = scmp.ne.s32.totalorder %s251, %s253
      %p257 = scmp.eq.s32.totalorder %s23, 0
      %p258 = por %p256, %p257
      %p259 = scmp.ne.s32.totalorder %s251, %s253
      %p260 = scmp.eq.s32.totalorder %s28, 1
      %p261 = por %p259, %p260
      %p262 = scmp.ne.s32.totalorder %s253, %s254
      %p263 = scmp.eq.s32.totalorder %s28, 0
      %p264 = por %p262, %p263
      %p265 = scmp.ne.s32.totalorder %s253, %s254
      %p266 = scmp.eq.s32.totalorder %s29, 1
      %p267 = por %p265, %p266
      %p269 = scmp.ne.s32.totalorder %s254, %s268
      %p270 = scmp.eq.s32.totalorder %s29, 0
      %p271 = por %p269, %p270
      %s273 = sadd.s32 %s272, 1
      %p276 = scmp.eq.s32.totalorder %s23, 1
      %p277 = scmp.ne.s32.totalorder %s272, %s274
      %p278 = scmp.eq.s32.totalorder %s23, 0
      %p279 = por %p277, %p278
      %p280 = scmp.ne.s32.totalorder %s272, %s274
      %p281 = scmp.eq.s32.totalorder %s28, 1
      %p282 = por %p280, %p281
      %p283 = scmp.ne.s32.totalorder %s274, %s275
      %p284 = scmp.eq.s32.totalorder %s28, 0
      %p285 = por %p283, %p284
      %p286 = scmp.ne.s32.totalorder %s274, %s275
      %p287 = scmp.eq.s32.totalorder %s29, 1
      %p288 = por %p286, %p287
      %p290 = scmp.ne.s32.totalorder %s275, %s289
      %p291 = scmp.eq.s32.totalorder %s29, 0
      %p292 = por %p290, %p291
      %s294 = sadd.s32 %s293, 1
      %p297 = scmp.eq.s32.totalorder %s23, 1
      %p298 = scmp.ne.s32.totalorder %s293, %s295
      %p299 = scmp.eq.s32.totalorder %s23, 0
      %p300 = por %p298, %p299
      %p301 = scmp.ne.s32.totalorder %s293, %s295
      %p302 = scmp.eq.s32.totalorder %s28, 1
      %p303 = por %p301, %p302
      %p304 = scmp.ne.s32.totalorder %s295, %s296
      %p305 = scmp.eq.s32.totalorder %s28, 0
      %p306 = por %p304, %p305
      %p307 = scmp.ne.s32.totalorder %s295, %s296
      %p308 = scmp.eq.s32.totalorder %s29, 1
      %p309 = por %p307, %p308
      %p311 = scmp.ne.s32.totalorder %s296, %s310
      %p312 = scmp.eq.s32.totalorder %s29, 0
      %p313 = por %p311, %p312
      %s315 = sadd.s32 %s314, 1
      %p318 = scmp.eq.s32.totalorder %s23, 1
      %p319 = scmp.ne.s32.totalorder %s314, %s316
      %p320 = scmp.eq.s32.totalorder %s23, 0
      %p321 = por %p319, %p320
      %p322 = scmp.ne.s32.totalorder %s314, %s316
      %p323 = scmp.eq.s32.totalorder %s28, 1
      %p324 = por %p322, %p323
      %p325 = scmp.ne.s32.totalorder %s316, %s317
      %p326 = scmp.eq.s32.totalorder %s28, 0
      %p327 = por %p325, %p326
      %p328 = scmp.ne.s32.totalorder %s316, %s317
      %p329 = scmp.eq.s32.totalorder %s29, 1
      %p330 = por %p328, %p329
      %p332 = scmp.ne.s32.totalorder %s317, %s331
      %p333 = scmp.eq.s32.totalorder %s29, 0
      %p334 = por %p332, %p333
      %s335 = ssub.s32 %s23, %s30
      %p336 = scmp.eq.s32.totalorder %s335, 0
      %s338 = sadd.s32 %s337, 1
      %s339 = scalar_select %p336, %s337, %s338
      %p342 = pneg %p336
      %p343 = scmp.eq.s32.totalorder %s23, 1
      %p344 = por %p342, %p343
      %p345 = scmp.ne.s32.totalorder %s337, %s340
      %p346 = scmp.eq.s32.totalorder %s23, 0
      %p347 = por %p345, %p346
      %p348 = scmp.ne.s32.totalorder %s337, %s340
      %p349 = scmp.eq.s32.totalorder %s28, 1
      %p350 = por %p348, %p349
      %p351 = scmp.ne.s32.totalorder %s340, %s341
      %p352 = scmp.eq.s32.totalorder %s28, 0
      %p353 = por %p351, %p352
      %p354 = scmp.ne.s32.totalorder %s340, %s341
      %p355 = scmp.eq.s32.totalorder %s29, 1
      %p356 = por %p354, %p355
      %p358 = scmp.ne.s32.totalorder %s341, %s357
      %p359 = scmp.eq.s32.totalorder %s29, 0
      %p360 = por %p358, %p359
      %p361 = scmp.le.s32.totalorder 1, %s23
      %p362 = scmp.lt.s32.totalorder %s23, 3
      %p363 = pnand %p361, %p362
      %p364 = pneg %p363
      // Predicated region
      $region9: #{tpu_custom_call.1} parent=5 // pred_check
        _
      $region10: #{tpu_custom_call.1} parent=5 // pred_check_branch
        %366 = sbr.rel (%p363) target = $region12
      $region11: #{tpu_custom_call.1} parent=5 // pred_region
        %s367 = ssub.s32 %s23, 1
        // Predicated region
        $region13: #{tpu_custom_call.1} parent=11 // pred_check
          %p368 = pneg %p96
        $region14: #{tpu_custom_call.1} parent=11 // pred_check_branch
          %370 = sbr.rel (%p368) target = $region16
        $region15: #{tpu_custom_call.1} parent=11 // pred_region
          _
        $region16: #{tpu_custom_call.1} parent=11 // pred_fallthru
          _
        // Predicated region
        $region17: #{tpu_custom_call.1} parent=11 // pred_check
          %p371 = pneg %p117
        $region18: #{tpu_custom_call.1} parent=11 // pred_check_branch
          %373 = sbr.rel (%p371) target = $region20
        $region19: #{tpu_custom_call.1} parent=11 // pred_region
          _
        $region20: #{tpu_custom_call.1} parent=11 // pred_fallthru
          _
        // Predicated region
        $region21: #{tpu_custom_call.1} parent=11 // pred_check
          %p374 = pneg %p138
        $region22: #{tpu_custom_call.1} parent=11 // pred_check_branch
          %376 = sbr.rel (%p374) target = $region24
        $region23: #{tpu_custom_call.1} parent=11 // pred_region
          _
        $region24: #{tpu_custom_call.1} parent=11 // pred_fallthru
          _
        // Predicated region
        $region25: #{tpu_custom_call.1} parent=11 // pred_check
          %p377 = pneg %p159
        $region26: #{tpu_custom_call.1} parent=11 // pred_check_branch
          %379 = sbr.rel (%p377) target = $region28
        $region27: #{tpu_custom_call.1} parent=11 // pred_region
          _
        $region28: #{tpu_custom_call.1} parent=11 // pred_fallthru
          _
        // Predicated region
        $region29: #{tpu_custom_call.1} parent=11 // pred_check
          %p380 = pneg %p180
        $region30: #{tpu_custom_call.1} parent=11 // pred_check_branch
          %382 = sbr.rel (%p380) target = $region32
        $region31: #{tpu_custom_call.1} parent=11 // pred_region
          _
        $region32: #{tpu_custom_call.1} parent=11 // pred_fallthru
          _
        // Predicated region
        $region33: #{tpu_custom_call.1} parent=11 // pred_check
          %p383 = pneg %p201
        $region34: #{tpu_custom_call.1} parent=11 // pred_check_branch
          %385 = sbr.rel (%p383) target = $region36
        $region35: #{tpu_custom_call.1} parent=11 // pred_region
          _
        $region36: #{tpu_custom_call.1} parent=11 // pred_fallthru
          _
        // Predicated region
        $region37: #{tpu_custom_call.1} parent=11 // pred_check
          %p386 = pneg %p222
        $region38: #{tpu_custom_call.1} parent=11 // pred_check_branch
          %388 = sbr.rel (%p386) target = $region40
        $region39: #{tpu_custom_call.1} parent=11 // pred_region
          _
        $region40: #{tpu_custom_call.1} parent=11 // pred_fallthru
          _
        // Predicated region
        $region41: #{tpu_custom_call.1} parent=11 // pred_check
          %p389 = pneg %p243
        $region42: #{tpu_custom_call.1} parent=11 // pred_check_branch
          %391 = sbr.rel (%p389) target = $region44
        $region43: #{tpu_custom_call.1} parent=11 // pred_region
          _
        $region44: #{tpu_custom_call.1} parent=11 // pred_fallthru
          _
        // Predicated region
        $region45: #{tpu_custom_call.1} parent=11 // pred_check
          %p392 = pneg %p264
        $region46: #{tpu_custom_call.1} parent=11 // pred_check_branch
          %394 = sbr.rel (%p392) target = $region48
        $region47: #{tpu_custom_call.1} parent=11 // pred_region
          _
        $region48: #{tpu_custom_call.1} parent=11 // pred_fallthru
          _
        // Predicated region
        $region49: #{tpu_custom_call.1} parent=11 // pred_check
          %p395 = pneg %p285
        $region50: #{tpu_custom_call.1} parent=11 // pred_check_branch
          %397 = sbr.rel (%p395) target = $region52
        $region51: #{tpu_custom_call.1} parent=11 // pred_region
          _
        $region52: #{tpu_custom_call.1} parent=11 // pred_fallthru
          _
        // Predicated region
        $region53: #{tpu_custom_call.1} parent=11 // pred_check
          %p398 = pneg %p306
        $region54: #{tpu_custom_call.1} parent=11 // pred_check_branch
          %400 = sbr.rel (%p398) target = $region56
        $region55: #{tpu_custom_call.1} parent=11 // pred_region
          _
        $region56: #{tpu_custom_call.1} parent=11 // pred_fallthru
          _
        // Predicated region
        $region57: #{tpu_custom_call.1} parent=11 // pred_check
          %p401 = pneg %p327
        $region58: #{tpu_custom_call.1} parent=11 // pred_check_branch
          %403 = sbr.rel (%p401) target = $region60
        $region59: #{tpu_custom_call.1} parent=11 // pred_region
          _
        $region60: #{tpu_custom_call.1} parent=11 // pred_fallthru
          _
      $region12: #{tpu_custom_call.1} parent=5 // pred_fallthru
        _
      %p404 = scmp.lt.s32.totalorder %s23, 2
      // Predicated region
      $region61: #{tpu_custom_call.1} parent=5 // pred_check
        %p405 = pneg %p404
      $region62: #{tpu_custom_call.1} parent=5 // pred_check_branch
        %407 = sbr.rel (%p405) target = $region64
      $region63: #{tpu_custom_call.1} parent=5 // pred_region
        // Predicated region
        $region65: #{tpu_custom_call.1} parent=63 // pred_check
          %p408 = pneg %p43
        $region66: #{tpu_custom_call.1} parent=63 // pred_check_branch
          %410 = sbr.rel (%p408) target = $region68
        $region67: #{tpu_custom_call.1} parent=63 // pred_region
          %p411 = scmp.lt.s32.totalorder %s23, 1
          %s412 = scalar_select %p411, %s23, 1
          %s413 = smul.addr %s412, 8
          %s414 = scalar_lea.vmem %s0, %s413
        $region68: #{tpu_custom_call.1} parent=63 // pred_fallthru
          _
        // Predicated region
        $region69: #{tpu_custom_call.1} parent=63 // pred_check
          %p415 = pneg %p69
        $region70: #{tpu_custom_call.1} parent=63 // pred_check_branch
          %417 = sbr.rel (%p415) target = $region72
        $region71: #{tpu_custom_call.1} parent=63 // pred_region
          %p418 = scmp.lt.s32.totalorder %s23, 1
          %s419 = scalar_select %p418, %s23, 1
          %s420 = scalar_lea.vmem %s1, %s419
        $region72: #{tpu_custom_call.1} parent=63 // pred_fallthru
          _
      $region64: #{tpu_custom_call.1} parent=5 // pred_fallthru
        _
      %p421 = scmp.le.s32.totalorder 1, %s23
      %p422 = scmp.lt.s32.totalorder %s23, 3
      %p423 = pnand %p421, %p422
      %p424 = pneg %p423
      // Predicated region
      $region73: #{tpu_custom_call.1} parent=5 // pred_check
        _
      $region74: #{tpu_custom_call.1} parent=5 // pred_check_branch
        %426 = sbr.rel (%p423) target = $region76
      $region75: #{tpu_custom_call.1} parent=5 // pred_region
        %s427 = ssub.s32 %s23, 1
        %p428 = scmp.lt.s32.totalorder %s28, 1
        %s429 = scalar_select %p428, %s28, 1
        %s430 = smul.addr %s429, 8
        %s431 = scalar_lea.vmem %s0, %s430
        %p432 = pneg %p49
        %p433 = pneg %p46
        %p434 = scmp.lt.s32.totalorder %s28, 1
        %s435 = scalar_select %p434, %s28, 1
        %s436 = scalar_lea.vmem %s1, %s435
        %p437 = pneg %p75
        %p438 = pneg %p72
        %p439 = pneg %p96
        %p440 = pneg %p93
        %p441 = pneg %p117
        %p442 = pneg %p114
        %p443 = pneg %p138
        %p444 = pneg %p135
        %p445 = pneg %p159
        %p446 = pneg %p156
        %p447 = pneg %p180
        %p448 = pneg %p177
        %p449 = pneg %p201
        %p450 = pneg %p198
        %p451 = pneg %p222
        %p452 = pneg %p219
        %p453 = pneg %p243
        %p454 = pneg %p240
        %p455 = pneg %p264
        %p456 = pneg %p261
        %p457 = pneg %p285
        %p458 = pneg %p282
        %p459 = pneg %p306
        %p460 = pneg %p303
        %p461 = pneg %p327
        %p462 = pneg %p324
        %p463 = pneg %p353
        %p464 = pneg %p350
        %s465 = sand.u32 %s340, 1
        %s466 = scalar_lea.sflag [#allocation3], %s465
        %s467 = sand.u32 %s340, 1
        %s468 = smul.addr %s467, 8
        %s469 = scalar_lea.vmem [#allocation2], %s468
        %p470 = scmp.lt.s32.totalorder %s28, 1
        %s471 = scalar_select %p470, %s28, 1
        %s472 = smul.addr %s471, 8
        %s473 = scalar_lea.vmem %s0, %s472
        %p474 = scmp.lt.s32.totalorder %s28, 1
        %s475 = scalar_select %p474, %s28, 1
        %s476 = scalar_lea.vmem %s1, %s475
        %v478 = vld [vmem:[%s473] sm:$0xff]
        %vm479 = vcmask 261120
        %v480 = vsel %vm479, %v478, 0.0
        %481 = vadd.xlane.f32.xlu0 %v480
        %v482 = vpop.xlane.xlu0 %481
        %v483 = vrcp.pop 32.0
        %v484 = vmul.f32 32.0, %v483
        %v485 = vsub.f32 1.0, %v484
        %v486 = vmul.f32 %v483, %v485
        %v487 = vadd.f32 %v483, %v486
        %vm488 = vweird.f32 %v483
        %v489 = vsel %vm488, %v483, %v487
        %v490 = vmul.f32 %v482, %v489
        %v491 = vsub.f32 %v478, %v490
        %v492 = vmul.f32 %v491, %v491
        %v493 = vsel %vm479, %v492, 0.0
        %494 = vadd.xlane.f32.xlu0 %v493
        %v495 = vpop.xlane.xlu0 %494
        %v496 = vmul.f32 %v495, %v489
        %v497 = vadd.f32 %v496, 1e-05
        %v498 = vrsqrt.pop %v497
        %v499 = vmul.f32 %v498, %v497
        %v500 = vmul.f32 %v499, %v498
        %v501 = vmul.f32 0.5, %v500
        %v502 = vsub.f32 1.5, %v501
        %v503 = vmul.f32 %v498, %v502
        %vm504 = vweird.f32 %v497
        %vm505 = vweird.f32 %v498
        %vm506 = vmor %vm504, %vm505
        %v507 = vsel %vm506, %v498, %v503
        %v508 = vmul.f32 %v491, %v507
        %v509 = vld [vmem:[%s2] sm:$0x1]
        %v511 = vperm.slane %v509, 0
        %v513 = vmul.f32 %v508, %v511
        %v514 = vld [vmem:[%s3] sm:$0x1]
        %v516 = vperm.slane %v514, 0
        %v518 = vadd.f32 %v513, %v516
        %v519 = vpack.c.bf16 %v518, %v518
        %v520 = vld [vmem:[%s4] sm:$0xf]
        %v521 = vld [vmem:[%s4 + $0x4] sm:$0xf]
        %v522 = vld [vmem:[%s4 + $0x8] sm:$0xf]
        %v523 = vld [vmem:[%s4 + $0xc] sm:$0xf]
        %v524 = vld [vmem:[%s5] sm:$0x1]
        %v526 = vperm.slane %v524, 0
        %v532 = vunpack.c.l.b16 %v520
        %v533 = vunpack.c.l.b16 %v521
        %v534 = vunpack.c.l.b16 %v522
        %v535 = vunpack.c.l.b16 %v523
        %v536 = vpack.c.b16 %v533, %v532
        %v537 = vpack.c.b16 %v535, %v534
        %v541 = vsel %vm479, %v519, 0
        %543 = vmatpush.bf16.msra.mxu0 0
        %544 = vmatpush.bf16.msra.mxu0 0
        %545 = vmatpush.bf16.msra.mxu0 0
        %546 = vmatpush.bf16.msra.mxu0 0
        %547 = vmatpush.bf16.msra.mxu0 0
        %548 = vmatpush.bf16.msra.mxu0 0
        %549 = vmatpush.bf16.msra.mxu0 %v537
        %550 = vmatpush.bf16.msra.mxu0 %v536
        %551 = vmatmul.bf16.gmra.mxu0 %v541
        %v552 = vpop.f32.mrf.mxu0
        %v553 = vadd.f32 %v526, %v552
        %v554 = vpop.f32.mrf.mxu0
        %555 = vdwg.mxu0
        %v556 = vlaneseq
        %v557 = vshrl.u32 %v556, 7
        %v558 = vlaneseq
        %v559 = vand.u32 %v558, 127
        %vm560 = vcmp.gt.s32.totalorder %v559, %v557
        %v561 = vsel %vm560, -1e+30, 0.0
        %v562 = vld [vmem:[%s476] sm:$0x1]
        %v564 = vperm.slane %v562, 0
        %v566 = vadd.f32 %v564, %v561
        %v567 = vpack.c.bf16 %v553, %v553
        %v569 = vunpack.c.l.b16 %v567
        %v570 = vpack.c.b16 %v569, %v569
        %571 = vrot.lane.b32.xlu0 %v570, 96
        %v572 = vpop.permute.xlu0 %571
        %vm573 = vcmask 64512
        %v575 = vsel %vm573, %v567, 0
        %v578 = vsel %vm573, %v572, 0
        %580 = vmatpush.bf16.xpose.msra.mxu0 0
        %581 = vmatpush.bf16.xpose.msra.mxu0 0
        %582 = vmatpush.bf16.xpose.msra.mxu0 0
        %583 = vmatpush.bf16.xpose.msra.mxu0 0
        %584 = vmatpush.bf16.xpose.msra.mxu0 0
        %585 = vmatpush.bf16.xpose.msra.mxu0 0
        %586 = vmatpush.bf16.xpose.msra.mxu0 0
        %587 = vmatpush.bf16.xpose.msra.mxu0 %v578
        %588 = vmatmul.bf16.gmra.mxu0 %v575
        %v589 = vpop.f32.mrf.mxu0
        %v590 = vadd.f32 0.0, %v589
        %v591 = vpop.f32.mrf.mxu0
        %592 = vdwg.mxu0
        %v593 = vmul.f32 %v590, 0.35355338
        %v594 = vadd.f32 %v593, %v566
        %v595 = vsel %vm573, %v594, -inf
        %596 = vmax.xlane.f32.xlu0 %v595
        %v597 = vpop.xlane.xlu0 %596
        %v598 = vsub.f32 %v594, %v597
        %v599 = vmul.f32 %v598, 1.442695
        %v600 = vpow.pop %v599
        %v601 = vsel %vm573, %v600, 0.0
        %602 = vadd.xlane.f32.xlu0 %v601
        %v603 = vpop.xlane.xlu0 %602
        %v604 = vrcp.pop %v603
        %v605 = vmul.f32 %v600, %v604
        %v606 = vpack.c.bf16 %v605, %v605
        %607 = vrot.lane.b32.xlu0 %v570, 64
        %v608 = vpop.permute.xlu0 %607
        %v610 = vsel %vm573, %v606, 0
        %vm612 = vcmask 1043456
        %v614 = vsel %vm612, %v608, 0
        %616 = vmatpush.bf16.msra.mxu0 0
        %617 = vmatpush.bf16.msra.mxu0 0
        %618 = vmatpush.bf16.msra.mxu0 0
        %619 = vmatpush.bf16.msra.mxu0 0
        %620 = vmatpush.bf16.msra.mxu0 0
        %621 = vmatpush.bf16.msra.mxu0 0
        %622 = vmatpush.bf16.msra.mxu0 0
        %623 = vmatpush.bf16.msra.mxu0 %v614
        %624 = vmatmul.bf16.gmra.mxu0 %v610
        %v625 = vpop.f32.mrf.mxu0
        %v626 = vadd.f32 0.0, %v625
        %v627 = vpop.f32.mrf.mxu0
        %628 = vdwg.mxu0
        %629 = vrot.lane.b32.xlu0 %v570, 120
        %v630 = vpop.permute.xlu0 %629
        %631 = vrot.lane.b32.xlu0 %v570, 88
        %v632 = vpop.permute.xlu0 %631
        %v634 = vsel %vm573, %v630, 0
        %v637 = vsel %vm573, %v632, 0
        %639 = vmatpush.bf16.xpose.msra.mxu0 0
        %640 = vmatpush.bf16.xpose.msra.mxu0 0
        %641 = vmatpush.bf16.xpose.msra.mxu0 0
        %642 = vmatpush.bf16.xpose.msra.mxu0 0
        %643 = vmatpush.bf16.xpose.msra.mxu0 0
        %644 = vmatpush.bf16.xpose.msra.mxu0 0
        %645 = vmatpush.bf16.xpose.msra.mxu0 0
        %646 = vmatpush.bf16.xpose.msra.mxu0 %v637
        %647 = vmatmul.bf16.gmra.mxu0 %v634
        %v648 = vpop.f32.mrf.mxu0
        %v649 = vadd.f32 0.0, %v648
        %v650 = vpop.f32.mrf.mxu0
        %651 = vdwg.mxu0
        %v652 = vmul.f32 %v649, 0.35355338
        %v653 = vadd.f32 %v652, %v566
        %v654 = vsel %vm573, %v653, -inf
        %655 = vmax.xlane.f32.xlu0 %v654
        %v656 = vpop.xlane.xlu0 %655
        %v657 = vsub.f32 %v653, %v656
        %v658 = vmul.f32 %v657, 1.442695
        %v659 = vpow.pop %v658
        %v660 = vsel %vm573, %v659, 0.0
        %661 = vadd.xlane.f32.xlu0 %v660
        %v662 = vpop.xlane.xlu0 %661
        %v663 = vrcp.pop %v662
        %v664 = vmul.f32 %v659, %v663
        %v665 = vpack.c.bf16 %v664, %v664
        %666 = vrot.lane.b32.xlu0 %v570, 56
        %v667 = vpop.permute.xlu0 %666
        %v669 = vsel %vm573, %v665, 0
        %v672 = vsel %vm612, %v667, 0
        %674 = vmatpush.bf16.msra.mxu0 0
        %675 = vmatpush.bf16.msra.mxu0 0
        %676 = vmatpush.bf16.msra.mxu0 0
        %677 = vmatpush.bf16.msra.mxu0 0
        %678 = vmatpush.bf16.msra.mxu0 0
        %679 = vmatpush.bf16.msra.mxu0 0
        %680 = vmatpush.bf16.msra.mxu0 0
        %681 = vmatpush.bf16.msra.mxu0 %v672
        %682 = vmatmul.bf16.gmra.mxu0 %v669
        %v683 = vpop.f32.mrf.mxu0
        %v684 = vadd.f32 0.0, %v683
        %v685 = vpop.f32.mrf.mxu0
        %686 = vdwg.mxu0
        %687 = vrot.lane.b32.xlu0 %v570, 112
        %v688 = vpop.permute.xlu0 %687
        %689 = vrot.lane.b32.xlu0 %v570, 80
        %v690 = vpop.permute.xlu0 %689
        %v692 = vsel %vm573, %v688, 0
        %v695 = vsel %vm573, %v690, 0
        %697 = vmatpush.bf16.xpose.msra.mxu0 0
        %698 = vmatpush.bf16.xpose.msra.mxu0 0
        %699 = vmatpush.bf16.xpose.msra.mxu0 0
        %700 = vmatpush.bf16.xpose.msra.mxu0 0
        %701 = vmatpush.bf16.xpose.msra.mxu0 0
        %702 = vmatpush.bf16.xpose.msra.mxu0 0
        %703 = vmatpush.bf16.xpose.msra.mxu0 0
        %704 = vmatpush.bf16.xpose.msra.mxu0 %v695
        %705 = vmatmul.bf16.gmra.mxu0 %v692
        %v706 = vpop.f32.mrf.mxu0
        %v707 = vadd.f32 0.0, %v706
        %v708 = vpop.f32.mrf.mxu0
        %709 = vdwg.mxu0
        %v710 = vmul.f32 %v707, 0.35355338
        %v711 = vadd.f32 %v710, %v566
        %v712 = vsel %vm573, %v711, -inf
        %713 = vmax.xlane.f32.xlu0 %v712
        %v714 = vpop.xlane.xlu0 %713
        %v715 = vsub.f32 %v711, %v714
        %v716 = vmul.f32 %v715, 1.442695
        %v717 = vpow.pop %v716
        %v718 = vsel %vm573, %v717, 0.0
        %719 = vadd.xlane.f32.xlu0 %v718
        %v720 = vpop.xlane.xlu0 %719
        %v721 = vrcp.pop %v720
        %v722 = vmul.f32 %v717, %v721
        %v723 = vpack.c.bf16 %v722, %v722
        %724 = vrot.lane.b32.xlu0 %v570, 48
        %v725 = vpop.permute.xlu0 %724
        %v727 = vsel %vm573, %v723, 0
        %v730 = vsel %vm612, %v725, 0
        %732 = vmatpush.bf16.msra.mxu0 0
        %733 = vmatpush.bf16.msra.mxu0 0
        %734 = vmatpush.bf16.msra.mxu0 0
        %735 = vmatpush.bf16.msra.mxu0 0
        %736 = vmatpush.bf16.msra.mxu0 0
        %737 = vmatpush.bf16.msra.mxu0 0
        %738 = vmatpush.bf16.msra.mxu0 0
        %739 = vmatpush.bf16.msra.mxu0 %v730
        %740 = vmatmul.bf16.gmra.mxu0 %v727
        %v741 = vpop.f32.mrf.mxu0
        %v742 = vadd.f32 0.0, %v741
        %v743 = vpop.f32.mrf.mxu0
        %744 = vdwg.mxu0
        %745 = vrot.lane.b32.xlu0 %v570, 104
        %v746 = vpop.permute.xlu0 %745
        %747 = vrot.lane.b32.xlu0 %v570, 72
        %v748 = vpop.permute.xlu0 %747
        %v750 = vsel %vm573, %v746, 0
        %v753 = vsel %vm573, %v748, 0
        %755 = vmatpush.bf16.xpose.msra.mxu0 0
        %756 = vmatpush.bf16.xpose.msra.mxu0 0
        %757 = vmatpush.bf16.xpose.msra.mxu0 0
        %758 = vmatpush.bf16.xpose.msra.mxu0 0
        %759 = vmatpush.bf16.xpose.msra.mxu0 0
        %760 = vmatpush.bf16.xpose.msra.mxu0 0
        %761 = vmatpush.bf16.xpose.msra.mxu0 0
        %762 = vmatpush.bf16.xpose.msra.mxu0 %v753
        %763 = vmatmul.bf16.gmra.mxu0 %v750
        %v764 = vpop.f32.mrf.mxu0
        %v765 = vadd.f32 0.0, %v764
        %v766 = vpop.f32.mrf.mxu0
        %767 = vdwg.mxu0
        %v768 = vmul.f32 %v765, 0.35355338
        %v769 = vadd.f32 %v768, %v566
        %v770 = vsel %vm573, %v769, -inf
        %771 = vmax.xlane.f32.xlu0 %v770
        %v772 = vpop.xlane.xlu0 %771
        %v773 = vsub.f32 %v769, %v772
        %v774 = vmul.f32 %v773, 1.442695
        %v775 = vpow.pop %v774
        %v776 = vsel %vm573, %v775, 0.0
        %777 = vadd.xlane.f32.xlu0 %v776
        %v778 = vpop.xlane.xlu0 %777
        %v779 = vrcp.pop %v778
        %v780 = vmul.f32 %v775, %v779
        %v781 = vpack.c.bf16 %v780, %v780
        %782 = vrot.lane.b32.xlu0 %v570, 40
        %v783 = vpop.permute.xlu0 %782
        %v785 = vsel %vm573, %v781, 0
        %v788 = vsel %vm612, %v783, 0
        %790 = vmatpush.bf16.msra.mxu0 0
        %791 = vmatpush.bf16.msra.mxu0 0
        %792 = vmatpush.bf16.msra.mxu0 0
        %793 = vmatpush.bf16.msra.mxu0 0
        %794 = vmatpush.bf16.msra.mxu0 0
        %795 = vmatpush.bf16.msra.mxu0 0
        %796 = vmatpush.bf16.msra.mxu0 0
        %797 = vmatpush.bf16.msra.mxu0 %v788
        %798 = vmatmul.bf16.gmra.mxu0 %v785
        %v799 = vpop.f32.mrf.mxu0
        %v800 = vadd.f32 0.0, %v799
        %v801 = vpop.f32.mrf.mxu0
        %802 = vdwg.mxu0
        %804 = vrot.lane.b32.xlu0 %v684, 8
        %v805 = vpop.permute.xlu0 %804
        %808 = vrot.lane.b32.xlu0 %v742, 16
        %v809 = vpop.permute.xlu0 %808
        %812 = vrot.lane.b32.xlu0 %v800, 24
        %v813 = vpop.permute.xlu0 %812
        %v815 = vsel %vm573, %v626, %v805
        %vm816 = vcmask 130048
        %v817 = vsel %vm816, %v815, %v809
        %vm818 = vcmask 195584
        %v819 = vsel %vm818, %v817, %v813
        %v820 = vpack.c.bf16 %v819, %v819
        %v821 = vld [vmem:[%s6] sm:$0xf]
        %v822 = vld [vmem:[%s6 + $0x4] sm:$0xf]
        %v823 = vld [vmem:[%s6 + $0x8] sm:$0xf]
        %v824 = vld [vmem:[%s6 + $0xc] sm:$0xf]
        %v825 = vld [vmem:[%s7] sm:$0x1]
        %v827 = vperm.slane %v825, 0
        %v833 = vunpack.c.l.b16 %v821
        %v834 = vunpack.c.l.b16 %v822
        %v835 = vunpack.c.l.b16 %v823
        %v836 = vunpack.c.l.b16 %v824
        %v837 = vpack.c.b16 %v834, %v833
        %v838 = vpack.c.b16 %v836, %v835
        %v842 = vsel %vm479, %v820, 0
        %844 = vmatpush.bf16.msra.mxu0 0
        %845 = vmatpush.bf16.msra.mxu0 0
        %846 = vmatpush.bf16.msra.mxu0 0
        %847 = vmatpush.bf16.msra.mxu0 0
        %848 = vmatpush.bf16.msra.mxu0 0
        %849 = vmatpush.bf16.msra.mxu0 0
        %850 = vmatpush.bf16.msra.mxu0 %v838
        %851 = vmatpush.bf16.msra.mxu0 %v837
        %852 = vmatmul.bf16.gmra.mxu0 %v842
        %v853 = vpop.f32.mrf.mxu0
        %v854 = vadd.f32 %v827, %v853
        %v855 = vpop.f32.mrf.mxu0
        %856 = vdwg.mxu0
        %v857 = vadd.f32 %v478, %v854
        %v858 = vsel %vm479, %v857, 0.0
        %859 = vadd.xlane.f32.xlu0 %v858
        %v860 = vpop.xlane.xlu0 %859
        %v861 = vmul.f32 %v860, %v489
        %v862 = vsub.f32 %v857, %v861
        %v863 = vmul.f32 %v862, %v862
        %v864 = vsel %vm479, %v863, 0.0
        %865 = vadd.xlane.f32.xlu0 %v864
        %v866 = vpop.xlane.xlu0 %865
        %v867 = vmul.f32 %v866, %v489
        %v868 = vadd.f32 %v867, 1e-05
        %v869 = vrsqrt.pop %v868
        %v870 = vmul.f32 %v869, %v868
        %v871 = vmul.f32 %v870, %v869
        %v872 = vmul.f32 0.5, %v871
        %v873 = vsub.f32 1.5, %v872
        %v874 = vmul.f32 %v869, %v873
        %vm875 = vweird.f32 %v868
        %vm876 = vweird.f32 %v869
        %vm877 = vmor %vm875, %vm876
        %v878 = vsel %vm877, %v869, %v874
        %v879 = vmul.f32 %v862, %v878
        %v880 = vld [vmem:[%s8] sm:$0x1]
        %v882 = vperm.slane %v880, 0
        %v884 = vmul.f32 %v879, %v882
        %v885 = vld [vmem:[%s9] sm:$0x1]
        %v887 = vperm.slane %v885, 0
        %v889 = vadd.f32 %v884, %v887
        %v890 = vpack.c.bf16 %v889, %v889
        %v891 = vld [vmem:[%s10] sm:$0xf]
        %v892 = vld [vmem:[%s10 + $0x4] sm:$0xf]
        %v893 = vld [vmem:[%s10 + $0x8] sm:$0xf]
        %v894 = vld [vmem:[%s10 + $0xc] sm:$0xf]
        %v895 = vld [vmem:[%s11] sm:$0x1]
        %v897 = vperm.slane %v895, 0
        %v903 = vunpack.c.l.b16 %v891
        %v904 = vunpack.c.l.b16 %v892
        %v905 = vunpack.c.l.b16 %v893
        %v906 = vunpack.c.l.b16 %v894
        %v907 = vpack.c.b16 %v904, %v903
        %v908 = vpack.c.b16 %v906, %v905
        %v912 = vsel %vm479, %v890, 0
        %914 = vmatpush.bf16.msra.mxu0 0
        %915 = vmatpush.bf16.msra.mxu0 0
        %916 = vmatpush.bf16.msra.mxu0 0
        %917 = vmatpush.bf16.msra.mxu0 0
        %918 = vmatpush.bf16.msra.mxu0 0
        %919 = vmatpush.bf16.msra.mxu0 0
        %920 = vmatpush.bf16.msra.mxu0 %v908
        %921 = vmatpush.bf16.msra.mxu0 %v907
        %922 = vmatmul.bf16.gmra.mxu0 %v912
        %v923 = vpop.f32.mrf.mxu0
        %v924 = vadd.f32 %v897, %v923
        %v925 = vpop.f32.mrf.mxu0
        %926 = vdwg.mxu0
        %v927 = vmul.f32 %v924, 0.5
        %v928 = vmul.f32 %v924, 0.70710677
        %v929 = vand.u32 2147483647, %v928
        %v930 = vmul.f32 %v929, 0.3275911
        %v931 = vadd.f32 %v930, 1.0
        %v932 = vrcp.pop %v931
        %v933 = vmul.f32 %v931, %v932
        %v934 = vsub.f32 1.0, %v933
        %v935 = vmul.f32 %v932, %v934
        %v936 = vadd.f32 %v932, %v935
        %vm937 = vweird.f32 %v931
        %vm938 = vweird.f32 %v932
        %vm939 = vmor %vm937, %vm938
        %v940 = vsel %vm939, %v932, %v936
        %v941 = vand.u32 2147483647, %v931
        %vm942 = vcmp.eq.f32.partialorder %v941, 8.507059e+37
        %v943 = vand.u32 %v931, 2147483648
        %v944 = vor.u32 1.1754944e-38, %v943
        %v945 = vsel %vm942, %v944, %v940
        %v946 = vmul.f32 1.0, %v945
        %v947 = vmul.f32 %v946, 1.0614054
        %v948 = vadd.f32 %v947, -1.4531521
        %v949 = vmul.f32 %v948, %v946
        %v950 = vadd.f32 %v949, 1.4214138
        %v951 = vmul.f32 %v950, %v946
        %v952 = vadd.f32 %v951, -0.28449672
        %v953 = vmul.f32 %v952, %v946
        %v954 = vadd.f32 %v953, 0.2548296
        %v955 = vmul.f32 %v954, %v946
        %v956 = vsub.f32 0.0, %v929
        %v957 = vmul.f32 %v956, %v929
        %v958 = vmul.f32 %v957, 1.442695
        %v959 = vpow.pop %v958
        %v960 = vmul.f32 %v955, %v959
        %v961 = vsub.f32 1.0, %v960
        %vm962 = vcmp.lt.f32.partialorder %v928, 0.0
        %v963 = vsub.f32 0.0, %v961
        %v964 = vsel %vm962, %v963, %v961
        %v965 = vadd.f32 %v964, 1.0
        %v966 = vmul.f32 %v927, %v965
        %v967 = vpack.c.bf16 %v966, %v966
        %v968 = vld [vmem:[%s12] sm:$0xf]
        %v969 = vld [vmem:[%s12 + $0x4] sm:$0xf]
        %v970 = vld [vmem:[%s12 + $0x8] sm:$0xf]
        %v971 = vld [vmem:[%s12 + $0xc] sm:$0xf]
        %v972 = vld [vmem:[%s12 + $0x10] sm:$0xf]
        %v973 = vld [vmem:[%s12 + $0x14] sm:$0xf]
        %v974 = vld [vmem:[%s12 + $0x18] sm:$0xf]
        %v975 = vld [vmem:[%s12 + $0x1c] sm:$0xf]
        %v976 = vld [vmem:[%s12 + $0x20] sm:$0xf]
        %v977 = vld [vmem:[%s12 + $0x24] sm:$0xf]
        %v978 = vld [vmem:[%s12 + $0x28] sm:$0xf]
        %v979 = vld [vmem:[%s12 + $0x2c] sm:$0xf]
        %v980 = vld [vmem:[%s12 + $0x30] sm:$0xf]
        %v981 = vld [vmem:[%s12 + $0x34] sm:$0xf]
        %v982 = vld [vmem:[%s12 + $0x38] sm:$0xf]
        %v983 = vld [vmem:[%s12 + $0x3c] sm:$0xf]
        %v984 = vld [vmem:[%s13] sm:$0x1]
        %v986 = vperm.slane %v984, 0
        %v1004 = vunpack.c.l.b16 %v968
        %v1005 = vunpack.c.l.b16 %v969
        %v1006 = vunpack.c.l.b16 %v970
        %v1007 = vunpack.c.l.b16 %v971
        %v1008 = vunpack.c.l.b16 %v972
        %v1009 = vunpack.c.l.b16 %v973
        %v1010 = vunpack.c.l.b16 %v974
        %v1011 = vunpack.c.l.b16 %v975
        %v1012 = vunpack.c.l.b16 %v976
        %v1013 = vunpack.c.l.b16 %v977
        %v1014 = vunpack.c.l.b16 %v978
        %v1015 = vunpack.c.l.b16 %v979
        %v1016 = vunpack.c.l.b16 %v980
        %v1017 = vunpack.c.l.b16 %v981
        %v1018 = vunpack.c.l.b16 %v982
        %v1019 = vunpack.c.l.b16 %v983
        %v1020 = vpack.c.b16 %v1005, %v1004
        %v1021 = vpack.c.b16 %v1007, %v1006
        %v1022 = vpack.c.b16 %v1009, %v1008
        %v1023 = vpack.c.b16 %v1011, %v1010
        %v1024 = vpack.c.b16 %v1013, %v1012
        %v1025 = vpack.c.b16 %v1015, %v1014
        %v1026 = vpack.c.b16 %v1017, %v1016
        %v1027 = vpack.c.b16 %v1019, %v1018
        %1036 = vmatpush.bf16.msra.mxu0 %v1027
        %1037 = vmatpush.bf16.msra.mxu0 %v1026
        %1038 = vmatpush.bf16.msra.mxu0 %v1025
        %1039 = vmatpush.bf16.msra.mxu0 %v1024
        %1040 = vmatpush.bf16.msra.mxu0 %v1023
        %1041 = vmatpush.bf16.msra.mxu0 %v1022
        %1042 = vmatpush.bf16.msra.mxu0 %v1021
        %1043 = vmatpush.bf16.msra.mxu0 %v1020
        %1044 = vmatmul.bf16.gmra.mxu0 %v967
        %v1045 = vpop.f32.mrf.mxu0
        %v1046 = vadd.f32 %v986, %v1045
        %v1047 = vpop.f32.mrf.mxu0
        %1048 = vdwg.mxu0
        %v1049 = vadd.f32 %v857, %v1046
        %1050 = vst.msk [vmem:[%s469] sm:$0xff] %vm479, %v1049
        %s1051 = sand.u32 %s340, 1
        %s1052 = scalar_lea.sflag [#allocation3], %s1051
        %s1053 = sand.u32 %s340, 1
        %s1054 = smul.addr %s1053, 8
        %s1055 = scalar_lea.vmem [#allocation2], %s1054
        // Predicated region
        $region77: #{tpu_custom_call.1} parent=75 // pred_check
          %p1056 = pneg %p350
        $region78: #{tpu_custom_call.1} parent=75 // pred_check_branch
          %1058 = sbr.rel (%p1056) target = $region80
        $region79: #{tpu_custom_call.1} parent=75 // pred_region
          %1060 = vsyncadd %s1052, 0
          %s1061 = smul.addr %s28, 8
          %s1062 = scalar_lea.hbm %s14, %s1061
          %s1064 = sshll.u32 %s1055, 4
          %s1065 = int_to_ptr.vmem [resolvable:$true] %s1064
          %s1066 = sshll.u32 %s1062, 4
          %s1067 = int_to_ptr.hbm [resolvable:$true] %s1066
          %1069 = dma.vmem_to_hbm [thread:$0]  %s1065, 128, %s1067, %s1052
        $region80: #{tpu_custom_call.1} parent=75 // pred_fallthru
          _
      $region76: #{tpu_custom_call.1} parent=5 // pred_fallthru
        _
      %p1070 = scmp.le.s32.totalorder 2, %s23
      // Predicated region
      $region81: #{tpu_custom_call.1} parent=5 // pred_check
        %p1071 = pneg %p1070
      $region82: #{tpu_custom_call.1} parent=5 // pred_check_branch
        %1073 = sbr.rel (%p1071) target = $region84
      $region83: #{tpu_custom_call.1} parent=5 // pred_region
        %s1074 = ssub.s32 %s23, 2
        // Predicated region
        $region85: #{tpu_custom_call.1} parent=83 // pred_check
          %p1075 = pneg %p356
        $region86: #{tpu_custom_call.1} parent=83 // pred_check_branch
          %1077 = sbr.rel (%p1075) target = $region88
        $region87: #{tpu_custom_call.1} parent=83 // pred_region
          %s1078 = sand.u32 %s341, 1
          %s1079 = scalar_lea.sflag [#allocation3], %s1078
          %s1080 = sand.u32 %s341, 1
          %s1081 = smul.addr %s1080, 8
          %s1082 = scalar_lea.vmem [#allocation2], %s1081
          %1084 = dma.done %s1079, 128
        $region88: #{tpu_custom_call.1} parent=83 // pred_fallthru
          _
      $region84: #{tpu_custom_call.1} parent=5 // pred_fallthru
        _
    $region6: #{tpu_custom_call.1} parent=1 // loop_footer
      %s27 = sadd.s32 1, %s23
    $region7: #{tpu_custom_call.1} parent=1 // loop_footer_branch
      %22 = sbr.rel target = $region3
    $region8: #{tpu_custom_call.1} parent=1 // loop_exit
      _
    %1085 = vsyncpa [#allocation3], 1
    %s1086 = scalar_lea.sflag [#allocation3], 1
    %1087 = vsyncpa %s1086, 1

// kernel: tpu_custom_call.1
$region0: #{tpu_custom_call.1}
  #allocation0 [shape = 'u32[]', space=smem, size = 0x4, offset = 0x4, fixed_abs, tag = 'smem constant byte address 0x4 - core index']
  #allocation1 [shape = 'u32[72,128]{1,0:T(1,128)}', space=vmem, size = 0x9000, scoped, tag = 'internal scratch']
  %s0 = inlined_call_operand.vmem [shape: f32[16,32], index: 0, kind: input, shape index: {}]
  %s1 = inlined_call_operand.vmem [shape: f32[2,1,8], index: 1, kind: input, shape index: {}]
  %s2 = inlined_call_operand.vmem [shape: f32[1,32], index: 2, kind: input, shape index: {}]
  %s3 = inlined_call_operand.vmem [shape: f32[1,32], index: 3, kind: input, shape index: {}]
  %s4 = inlined_call_operand.vmem [shape: bf16[32,96], index: 4, kind: input, shape index: {}]
  %s5 = inlined_call_operand.vmem [shape: f32[1,96], index: 5, kind: input, shape index: {}]
  %s6 = inlined_call_operand.vmem [shape: bf16[32,32], index: 6, kind: input, shape index: {}]
  %s7 = inlined_call_operand.vmem [shape: f32[1,32], index: 7, kind: input, shape index: {}]
  %s8 = inlined_call_operand.vmem [shape: f32[1,32], index: 8, kind: input, shape index: {}]
  %s9 = inlined_call_operand.vmem [shape: f32[1,32], index: 9, kind: input, shape index: {}]
  %s10 = inlined_call_operand.vmem [shape: bf16[32,128], index: 10, kind: input, shape index: {}]
  %s11 = inlined_call_operand.vmem [shape: f32[1,128], index: 11, kind: input, shape index: {}]
  %s12 = inlined_call_operand.vmem [shape: bf16[128,32], index: 12, kind: input, shape index: {}]
  %s13 = inlined_call_operand.vmem [shape: f32[1,32], index: 13, kind: input, shape index: {}]
  %s14 = inlined_call_operand.hbm [shape: f32[16,32], index: 14, kind: output, shape index: {}]
  %s15 = sld [smem:[#allocation0]]
  $region89: #{tpu_custom_call.1} parent=0
    _
  %s17 = ssub.s32 1, %s15
  %s18 = scalar_select 0, %s17, %s15
  $region1: #{tpu_custom_call.1} parent=0
    #allocation2 [shape = 'u8[8192]{0}', space=vmem, size = 0x2000, scoped, tag = 'output window, operand 0']
    #allocation3 [shape = 's32[2]{0}', space=sflag, size = 0x8, scoped, tag = 'scoped memory for tpu_custom_call.1']
    %19 = vsyncpa [#allocation3], 0
    %s20 = scalar_lea.sflag [#allocation3], 1
    %21 = vsyncpa %s20, 0
    loop: start=0, step=1, limit=4
    $region2: #{tpu_custom_call.1} parent=1 // loop_pre_header
      _
    $region3: #{tpu_custom_call.1} parent=1 // loop_header
      %s23 = sphi 0, %s27
      %p24 = scmp.ge.s32.totalorder %s23, 4
      %s33 = sphi 0, %s35
      %s36 = sphi 0, %s33
      %s37 = sphi 0, %s36
      %s53 = sphi 0, %s37
      %s59 = sphi 0, %s61
      %s62 = sphi 0, %s59
      %s63 = sphi 0, %s62
      %s79 = sphi 0, %s63
      %s83 = sphi 0, %s83
      %s85 = sphi 0, %s83
      %s86 = sphi 0, %s85
      %s100 = sphi 0, %s86
      %s104 = sphi 0, %s104
      %s106 = sphi 0, %s104
      %s107 = sphi 0, %s106
      %s121 = sphi 0, %s107
      %s125 = sphi 0, %s125
      %s127 = sphi 0, %s125
      %s128 = sphi 0, %s127
      %s142 = sphi 0, %s128
      %s146 = sphi 0, %s146
      %s148 = sphi 0, %s146
      %s149 = sphi 0, %s148
      %s163 = sphi 0, %s149
      %s167 = sphi 0, %s167
      %s169 = sphi 0, %s167
      %s170 = sphi 0, %s169
      %s184 = sphi 0, %s170
      %s188 = sphi 0, %s188
      %s190 = sphi 0, %s188
      %s191 = sphi 0, %s190
      %s205 = sphi 0, %s191
      %s209 = sphi 0, %s209
      %s211 = sphi 0, %s209
      %s212 = sphi 0, %s211
      %s226 = sphi 0, %s212
      %s230 = sphi 0, %s230
      %s232 = sphi 0, %s230
      %s233 = sphi 0, %s232
      %s247 = sphi 0, %s233
      %s251 = sphi 0, %s251
      %s253 = sphi 0, %s251
      %s254 = sphi 0, %s253
      %s268 = sphi 0, %s254
      %s272 = sphi 0, %s272
      %s274 = sphi 0, %s272
      %s275 = sphi 0, %s274
      %s289 = sphi 0, %s275
      %s293 = sphi 0, %s293
      %s295 = sphi 0, %s293
      %s296 = sphi 0, %s295
      %s310 = sphi 0, %s296
      %s314 = sphi 0, %s314
      %s316 = sphi 0, %s314
      %s317 = sphi 0, %s316
      %s331 = sphi 0, %s317
      %s337 = sphi 0, %s339
      %s340 = sphi 0, %s337
      %s341 = sphi 0, %s340
      %s357 = sphi 0, %s341
    $region4: #{tpu_custom_call.1} parent=1 // loop_header_branch
      %26 = sbr.rel (%p24) target = $region8
    $region5: #{tpu_custom_call.1} parent=1 // loop_body
      %s28 = ssub.s32 %s23, 1
      %s29 = ssub.s32 %s23, 2
      %s30 = sadd.s32 %s23, 1
      %s31 = ssub.s32 %s23, %s30
      %p32 = scmp.eq.s32.totalorder %s31, 0
      %s34 = sadd.s32 %s33, 1
      %s35 = scalar_select %p32, %s33, %s34
      %p38 = pneg %p32
      %p39 = scmp.eq.s32.totalorder %s23, 1
      %p40 = por %p38, %p39
      %p41 = scmp.ne.s32.totalorder %s33, %s36
      %p42 = scmp.eq.s32.totalorder %s23, 0
      %p43 = por %p41, %p42
      %p44 = scmp.ne.s32.totalorder %s33, %s36
      %p45 = scmp.eq.s32.totalorder %s28, 1
      %p46 = por %p44, %p45
      %p47 = scmp.ne.s32.totalorder %s36, %s37
      %p48 = scmp.eq.s32.totalorder %s28, 0
      %p49 = por %p47, %p48
      %p50 = scmp.ne.s32.totalorder %s36, %s37
      %p51 = scmp.eq.s32.totalorder %s29, 1
      %p52 = por %p50, %p51
      %p54 = scmp.ne.s32.totalorder %s37, %s53
      %p55 = scmp.eq.s32.totalorder %s29, 0
      %p56 = por %p54, %p55
      %s57 = ssub.s32 %s23, %s30
      %p58 = scmp.eq.s32.totalorder %s57, 0
      %s60 = sadd.s32 %s59, 1
      %s61 = scalar_select %p58, %s59, %s60
      %p64 = pneg %p58
      %p65 = scmp.eq.s32.totalorder %s23, 1
      %p66 = por %p64, %p65
      %p67 = scmp.ne.s32.totalorder %s59, %s62
      %p68 = scmp.eq.s32.totalorder %s23, 0
      %p69 = por %p67, %p68
      %p70 = scmp.ne.s32.totalorder %s59, %s62
      %p71 = scmp.eq.s32.totalorder %s28, 1
      %p72 = por %p70, %p71
      %p73 = scmp.ne.s32.totalorder %s62, %s63
      %p74 = scmp.eq.s32.totalorder %s28, 0
      %p75 = por %p73, %p74
      %p76 = scmp.ne.s32.totalorder %s62, %s63
      %p77 = scmp.eq.s32.totalorder %s29, 1
      %p78 = por %p76, %p77
      %p80 = scmp.ne.s32.totalorder %s63, %s79
      %p81 = scmp.eq.s32.totalorder %s29, 0
      %p82 = por %p80, %p81
      %s84 = sadd.s32 %s83, 1
      %p87 = scmp.eq.s32.totalorder %s23, 1
      %p88 = scmp.ne.s32.totalorder %s83, %s85
      %p89 = scmp.eq.s32.totalorder %s23, 0
      %p90 = por %p88, %p89
      %p91 = scmp.ne.s32.totalorder %s83, %s85
      %p92 = scmp.eq.s32.totalorder %s28, 1
      %p93 = por %p91, %p92
      %p94 = scmp.ne.s32.totalorder %s85, %s86
      %p95 = scmp.eq.s32.totalorder %s28, 0
      %p96 = por %p94, %p95
      %p97 = scmp.ne.s32.totalorder %s85, %s86
      %p98 = scmp.eq.s32.totalorder %s29, 1
      %p99 = por %p97, %p98
      %p101 = scmp.ne.s32.totalorder %s86, %s100
      %p102 = scmp.eq.s32.totalorder %s29, 0
      %p103 = por %p101, %p102
      %s105 = sadd.s32 %s104, 1
      %p108 = scmp.eq.s32.totalorder %s23, 1
      %p109 = scmp.ne.s32.totalorder %s104, %s106
      %p110 = scmp.eq.s32.totalorder %s23, 0
      %p111 = por %p109, %p110
      %p112 = scmp.ne.s32.totalorder %s104, %s106
      %p113 = scmp.eq.s32.totalorder %s28, 1
      %p114 = por %p112, %p113
      %p115 = scmp.ne.s32.totalorder %s106, %s107
      %p116 = scmp.eq.s32.totalorder %s28, 0
      %p117 = por %p115, %p116
      %p118 = scmp.ne.s32.totalorder %s106, %s107
      %p119 = scmp.eq.s32.totalorder %s29, 1
      %p120 = por %p118, %p119
      %p122 = scmp.ne.s32.totalorder %s107, %s121
      %p123 = scmp.eq.s32.totalorder %s29, 0
      %p124 = por %p122, %p123
      %s126 = sadd.s32 %s125, 1
      %p129 = scmp.eq.s32.totalorder %s23, 1
      %p130 = scmp.ne.s32.totalorder %s125, %s127
      %p131 = scmp.eq.s32.totalorder %s23, 0
      %p132 = por %p130, %p131
      %p133 = scmp.ne.s32.totalorder %s125, %s127
      %p134 = scmp.eq.s32.totalorder %s28, 1
      %p135 = por %p133, %p134
      %p136 = scmp.ne.s32.totalorder %s127, %s128
      %p137 = scmp.eq.s32.totalorder %s28, 0
      %p138 = por %p136, %p137
      %p139 = scmp.ne.s32.totalorder %s127, %s128
      %p140 = scmp.eq.s32.totalorder %s29, 1
      %p141 = por %p139, %p140
      %p143 = scmp.ne.s32.totalorder %s128, %s142
      %p144 = scmp.eq.s32.totalorder %s29, 0
      %p145 = por %p143, %p144
      %s147 = sadd.s32 %s146, 1
      %p150 = scmp.eq.s32.totalorder %s23, 1
      %p151 = scmp.ne.s32.totalorder %s146, %s148
      %p152 = scmp.eq.s32.totalorder %s23, 0
      %p153 = por %p151, %p152
      %p154 = scmp.ne.s32.totalorder %s146, %s148
      %p155 = scmp.eq.s32.totalorder %s28, 1
      %p156 = por %p154, %p155
      %p157 = scmp.ne.s32.totalorder %s148, %s149
      %p158 = scmp.eq.s32.totalorder %s28, 0
      %p159 = por %p157, %p158
      %p160 = scmp.ne.s32.totalorder %s148, %s149
      %p161 = scmp.eq.s32.totalorder %s29, 1
      %p162 = por %p160, %p161
      %p164 = scmp.ne.s32.totalorder %s149, %s163
      %p165 = scmp.eq.s32.totalorder %s29, 0
      %p166 = por %p164, %p165
      %s168 = sadd.s32 %s167, 1
      %p171 = scmp.eq.s32.totalorder %s23, 1
      %p172 = scmp.ne.s32.totalorder %s167, %s169
      %p173 = scmp.eq.s32.totalorder %s23, 0
      %p174 = por %p172, %p173
      %p175 = scmp.ne.s32.totalorder %s167, %s169
      %p176 = scmp.eq.s32.totalorder %s28, 1
      %p177 = por %p175, %p176
      %p178 = scmp.ne.s32.totalorder %s169, %s170
      %p179 = scmp.eq.s32.totalorder %s28, 0
      %p180 = por %p178, %p179
      %p181 = scmp.ne.s32.totalorder %s169, %s170
      %p182 = scmp.eq.s32.totalorder %s29, 1
      %p183 = por %p181, %p182
      %p185 = scmp.ne.s32.totalorder %s170, %s184
      %p186 = scmp.eq.s32.totalorder %s29, 0
      %p187 = por %p185, %p186
      %s189 = sadd.s32 %s188, 1
      %p192 = scmp.eq.s32.totalorder %s23, 1
      %p193 = scmp.ne.s32.totalorder %s188, %s190
      %p194 = scmp.eq.s32.totalorder %s23, 0
      %p195 = por %p193, %p194
      %p196 = scmp.ne.s32.totalorder %s188, %s190
      %p197 = scmp.eq.s32.totalorder %s28, 1
      %p198 = por %p196, %p197
      %p199 = scmp.ne.s32.totalorder %s190, %s191
      %p200 = scmp.eq.s32.totalorder %s28, 0
      %p201 = por %p199, %p200
      %p202 = scmp.ne.s32.totalorder %s190, %s191
      %p203 = scmp.eq.s32.totalorder %s29, 1
      %p204 = por %p202, %p203
      %p206 = scmp.ne.s32.totalorder %s191, %s205
      %p207 = scmp.eq.s32.totalorder %s29, 0
      %p208 = por %p206, %p207
      %s210 = sadd.s32 %s209, 1
      %p213 = scmp.eq.s32.totalorder %s23, 1
      %p214 = scmp.ne.s32.totalorder %s209, %s211
      %p215 = scmp.eq.s32.totalorder %s23, 0
      %p216 = por %p214, %p215
      %p217 = scmp.ne.s32.totalorder %s209, %s211
      %p218 = scmp.eq.s32.totalorder %s28, 1
      %p219 = por %p217, %p218
      %p220 = scmp.ne.s32.totalorder %s211, %s212
      %p221 = scmp.eq.s32.totalorder %s28, 0
      %p222 = por %p220, %p221
      %p223 = scmp.ne.s32.totalorder %s211, %s212
      %p224 = scmp.eq.s32.totalorder %s29, 1
      %p225 = por %p223, %p224
      %p227 = scmp.ne.s32.totalorder %s212, %s226
      %p228 = scmp.eq.s32.totalorder %s29, 0
      %p229 = por %p227, %p228
      %s231 = sadd.s32 %s230, 1
      %p234 = scmp.eq.s32.totalorder %s23, 1
      %p235 = scmp.ne.s32.totalorder %s230, %s232
      %p236 = scmp.eq.s32.totalorder %s23, 0
      %p237 = por %p235, %p236
      %p238 = scmp.ne.s32.totalorder %s230, %s232
      %p239 = scmp.eq.s32.totalorder %s28, 1
      %p240 = por %p238, %p239
      %p241 = scmp.ne.s32.totalorder %s232, %s233
      %p242 = scmp.eq.s32.totalorder %s28, 0
      %p243 = por %p241, %p242
      %p244 = scmp.ne.s32.totalorder %s232, %s233
      %p245 = scmp.eq.s32.totalorder %s29, 1
      %p246 = por %p244, %p245
      %p248 = scmp.ne.s32.totalorder %s233, %s247
      %p249 = scmp.eq.s32.totalorder %s29, 0
      %p250 = por %p248, %p249
      %s252 = sadd.s32 %s251, 1
      %p255 = scmp.eq.s32.totalorder %s23, 1
      %p256 = scmp.ne.s32.totalorder %s251, %s253
      %p257 = scmp.eq.s32.totalorder %s23, 0
      %p258 = por %p256, %p257
      %p259 = scmp.ne.s32.totalorder %s251, %s253
      %p260 = scmp.eq.s32.totalorder %s28, 1
      %p261 = por %p259, %p260
      %p262 = scmp.ne.s32.totalorder %s253, %s254
      %p263 = scmp.eq.s32.totalorder %s28, 0
      %p264 = por %p262, %p263
      %p265 = scmp.ne.s32.totalorder %s253, %s254
      %p266 = scmp.eq.s32.totalorder %s29, 1
      %p267 = por %p265, %p266
      %p269 = scmp.ne.s32.totalorder %s254, %s268
      %p270 = scmp.eq.s32.totalorder %s29, 0
      %p271 = por %p269, %p270
      %s273 = sadd.s32 %s272, 1
      %p276 = scmp.eq.s32.totalorder %s23, 1
      %p277 = scmp.ne.s32.totalorder %s272, %s274
      %p278 = scmp.eq.s32.totalorder %s23, 0
      %p279 = por %p277, %p278
      %p280 = scmp.ne.s32.totalorder %s272, %s274
      %p281 = scmp.eq.s32.totalorder %s28, 1
      %p282 = por %p280, %p281
      %p283 = scmp.ne.s32.totalorder %s274, %s275
      %p284 = scmp.eq.s32.totalorder %s28, 0
      %p285 = por %p283, %p284
      %p286 = scmp.ne.s32.totalorder %s274, %s275
      %p287 = scmp.eq.s32.totalorder %s29, 1
      %p288 = por %p286, %p287
      %p290 = scmp.ne.s32.totalorder %s275, %s289
      %p291 = scmp.eq.s32.totalorder %s29, 0
      %p292 = por %p290, %p291
      %s294 = sadd.s32 %s293, 1
      %p297 = scmp.eq.s32.totalorder %s23, 1
      %p298 = scmp.ne.s32.totalorder %s293, %s295
      %p299 = scmp.eq.s32.totalorder %s23, 0
      %p300 = por %p298, %p299
      %p301 = scmp.ne.s32.totalorder %s293, %s295
      %p302 = scmp.eq.s32.totalorder %s28, 1
      %p303 = por %p301, %p302
      %p304 = scmp.ne.s32.totalorder %s295, %s296
      %p305 = scmp.eq.s32.totalorder %s28, 0
      %p306 = por %p304, %p305
      %p307 = scmp.ne.s32.totalorder %s295, %s296
      %p308 = scmp.eq.s32.totalorder %s29, 1
      %p309 = por %p307, %p308
      %p311 = scmp.ne.s32.totalorder %s296, %s310
      %p312 = scmp.eq.s32.totalorder %s29, 0
      %p313 = por %p311, %p312
      %s315 = sadd.s32 %s314, 1
      %p318 = scmp.eq.s32.totalorder %s23, 1
      %p319 = scmp.ne.s32.totalorder %s314, %s316
      %p320 = scmp.eq.s32.totalorder %s23, 0
      %p321 = por %p319, %p320
      %p322 = scmp.ne.s32.totalorder %s314, %s316
      %p323 = scmp.eq.s32.totalorder %s28, 1
      %p324 = por %p322, %p323
      %p325 = scmp.ne.s32.totalorder %s316, %s317
      %p326 = scmp.eq.s32.totalorder %s28, 0
      %p327 = por %p325, %p326
      %p328 = scmp.ne.s32.totalorder %s316, %s317
      %p329 = scmp.eq.s32.totalorder %s29, 1
      %p330 = por %p328, %p329
      %p332 = scmp.ne.s32.totalorder %s317, %s331
      %p333 = scmp.eq.s32.totalorder %s29, 0
      %p334 = por %p332, %p333
      %s335 = ssub.s32 %s23, %s30
      %p336 = scmp.eq.s32.totalorder %s335, 0
      %s338 = sadd.s32 %s337, 1
      %s339 = scalar_select %p336, %s337, %s338
      %p342 = pneg %p336
      %p343 = scmp.eq.s32.totalorder %s23, 1
      %p344 = por %p342, %p343
      %p345 = scmp.ne.s32.totalorder %s337, %s340
      %p346 = scmp.eq.s32.totalorder %s23, 0
      %p347 = por %p345, %p346
      %p348 = scmp.ne.s32.totalorder %s337, %s340
      %p349 = scmp.eq.s32.totalorder %s28, 1
      %p350 = por %p348, %p349
      %p351 = scmp.ne.s32.totalorder %s340, %s341
      %p352 = scmp.eq.s32.totalorder %s28, 0
      %p353 = por %p351, %p352
      %p354 = scmp.ne.s32.totalorder %s340, %s341
      %p355 = scmp.eq.s32.totalorder %s29, 1
      %p356 = por %p354, %p355
      %p358 = scmp.ne.s32.totalorder %s341, %s357
      %p359 = scmp.eq.s32.totalorder %s29, 0
      %p360 = por %p358, %p359
      %p361 = scmp.le.s32.totalorder 1, %s23
      %p362 = scmp.lt.s32.totalorder %s23, 3
      %p363 = pnand %p361, %p362
      %p364 = pneg %p363
      // Predicated region
      $region9: #{tpu_custom_call.1} parent=5 // pred_check
        _
      $region10: #{tpu_custom_call.1} parent=5 // pred_check_branch
        %366 = sbr.rel (%p363) target = $region12
      $region11: #{tpu_custom_call.1} parent=5 // pred_region
        %s367 = ssub.s32 %s23, 1
        // Predicated region
        $region13: #{tpu_custom_call.1} parent=11 // pred_check
          %p368 = pneg %p96
        $region14: #{tpu_custom_call.1} parent=11 // pred_check_branch
          %370 = sbr.rel (%p368) target = $region16
        $region15: #{tpu_custom_call.1} parent=11 // pred_region
          _
        $region16: #{tpu_custom_call.1} parent=11 // pred_fallthru
          _
        // Predicated region
        $region17: #{tpu_custom_call.1} parent=11 // pred_check
          %p371 = pneg %p117
        $region18: #{tpu_custom_call.1} parent=11 // pred_check_branch
          %373 = sbr.rel (%p371) target = $region20
        $region19: #{tpu_custom_call.1} parent=11 // pred_region
          _
        $region20: #{tpu_custom_call.1} parent=11 // pred_fallthru
          _
        // Predicated region
        $region21: #{tpu_custom_call.1} parent=11 // pred_check
          %p374 = pneg %p138
        $region22: #{tpu_custom_call.1} parent=11 // pred_check_branch
          %376 = sbr.rel (%p374) target = $region24
        $region23: #{tpu_custom_call.1} parent=11 // pred_region
          _
        $region24: #{tpu_custom_call.1} parent=11 // pred_fallthru
          _
        // Predicated region
        $region25: #{tpu_custom_call.1} parent=11 // pred_check
          %p377 = pneg %p159
        $region26: #{tpu_custom_call.1} parent=11 // pred_check_branch
          %379 = sbr.rel (%p377) target = $region28
        $region27: #{tpu_custom_call.1} parent=11 // pred_region
          _
        $region28: #{tpu_custom_call.1} parent=11 // pred_fallthru
          _
        // Predicated region
        $region29: #{tpu_custom_call.1} parent=11 // pred_check
          %p380 = pneg %p180
        $region30: #{tpu_custom_call.1} parent=11 // pred_check_branch
          %382 = sbr.rel (%p380) target = $region32
        $region31: #{tpu_custom_call.1} parent=11 // pred_region
          _
        $region32: #{tpu_custom_call.1} parent=11 // pred_fallthru
          _
        // Predicated region
        $region33: #{tpu_custom_call.1} parent=11 // pred_check
          %p383 = pneg %p201
        $region34: #{tpu_custom_call.1} parent=11 // pred_check_branch
          %385 = sbr.rel (%p383) target = $region36
        $region35: #{tpu_custom_call.1} parent=11 // pred_region
          _
        $region36: #{tpu_custom_call.1} parent=11 // pred_fallthru
          _
        // Predicated region
        $region37: #{tpu_custom_call.1} parent=11 // pred_check
          %p386 = pneg %p222
        $region38: #{tpu_custom_call.1} parent=11 // pred_check_branch
          %388 = sbr.rel (%p386) target = $region40
        $region39: #{tpu_custom_call.1} parent=11 // pred_region
          _
        $region40: #{tpu_custom_call.1} parent=11 // pred_fallthru
          _
        // Predicated region
        $region41: #{tpu_custom_call.1} parent=11 // pred_check
          %p389 = pneg %p243
        $region42: #{tpu_custom_call.1} parent=11 // pred_check_branch
          %391 = sbr.rel (%p389) target = $region44
        $region43: #{tpu_custom_call.1} parent=11 // pred_region
          _
        $region44: #{tpu_custom_call.1} parent=11 // pred_fallthru
          _
        // Predicated region
        $region45: #{tpu_custom_call.1} parent=11 // pred_check
          %p392 = pneg %p264
        $region46: #{tpu_custom_call.1} parent=11 // pred_check_branch
          %394 = sbr.rel (%p392) target = $region48
        $region47: #{tpu_custom_call.1} parent=11 // pred_region
          _
        $region48: #{tpu_custom_call.1} parent=11 // pred_fallthru
          _
        // Predicated region
        $region49: #{tpu_custom_call.1} parent=11 // pred_check
          %p395 = pneg %p285
        $region50: #{tpu_custom_call.1} parent=11 // pred_check_branch
          %397 = sbr.rel (%p395) target = $region52
        $region51: #{tpu_custom_call.1} parent=11 // pred_region
          _
        $region52: #{tpu_custom_call.1} parent=11 // pred_fallthru
          _
        // Predicated region
        $region53: #{tpu_custom_call.1} parent=11 // pred_check
          %p398 = pneg %p306
        $region54: #{tpu_custom_call.1} parent=11 // pred_check_branch
          %400 = sbr.rel (%p398) target = $region56
        $region55: #{tpu_custom_call.1} parent=11 // pred_region
          _
        $region56: #{tpu_custom_call.1} parent=11 // pred_fallthru
          _
        // Predicated region
        $region57: #{tpu_custom_call.1} parent=11 // pred_check
          %p401 = pneg %p327
        $region58: #{tpu_custom_call.1} parent=11 // pred_check_branch
          %403 = sbr.rel (%p401) target = $region60
        $region59: #{tpu_custom_call.1} parent=11 // pred_region
          _
        $region60: #{tpu_custom_call.1} parent=11 // pred_fallthru
          _
      $region12: #{tpu_custom_call.1} parent=5 // pred_fallthru
        _
      %p404 = scmp.lt.s32.totalorder %s23, 2
      // Predicated region
      $region61: #{tpu_custom_call.1} parent=5 // pred_check
        %p405 = pneg %p404
      $region62: #{tpu_custom_call.1} parent=5 // pred_check_branch
        %407 = sbr.rel (%p405) target = $region64
      $region63: #{tpu_custom_call.1} parent=5 // pred_region
        // Predicated region
        $region65: #{tpu_custom_call.1} parent=63 // pred_check
          %p408 = pneg %p43
        $region66: #{tpu_custom_call.1} parent=63 // pred_check_branch
          %410 = sbr.rel (%p408) target = $region68
        $region67: #{tpu_custom_call.1} parent=63 // pred_region
          %p411 = scmp.lt.s32.totalorder %s23, 1
          %s412 = scalar_select %p411, %s23, 1
          %s413 = smul.addr %s412, 8
          %s414 = scalar_lea.vmem %s0, %s413
        $region68: #{tpu_custom_call.1} parent=63 // pred_fallthru
          _
        // Predicated region
        $region69: #{tpu_custom_call.1} parent=63 // pred_check
          %p415 = pneg %p69
        $region70: #{tpu_custom_call.1} parent=63 // pred_check_branch
          %417 = sbr.rel (%p415) target = $region72
        $region71: #{tpu_custom_call.1} parent=63 // pred_region
          %p418 = scmp.lt.s32.totalorder %s23, 1
          %s419 = scalar_select %p418, %s23, 1
          %s420 = scalar_lea.vmem %s1, %s419
        $region72: #{tpu_custom_call.1} parent=63 // pred_fallthru
          _
      $region64: #{tpu_custom_call.1} parent=5 // pred_fallthru
        _
      %p421 = scmp.le.s32.totalorder 1, %s23
      %p422 = scmp.lt.s32.totalorder %s23, 3
      %p423 = pnand %p421, %p422
      %p424 = pneg %p423
      // Predicated region
      $region73: #{tpu_custom_call.1} parent=5 // pred_check
        _
      $region74: #{tpu_custom_call.1} parent=5 // pred_check_branch
        %426 = sbr.rel (%p423) target = $region76
      $region75: #{tpu_custom_call.1} parent=5 // pred_region
        %s427 = ssub.s32 %s23, 1
        %p428 = scmp.lt.s32.totalorder %s28, 1
        %s429 = scalar_select %p428, %s28, 1
        %s430 = smul.addr %s429, 8
        %s431 = scalar_lea.vmem %s0, %s430
        %p432 = pneg %p49
        %p433 = pneg %p46
        %p434 = scmp.lt.s32.totalorder %s28, 1
        %s435 = scalar_select %p434, %s28, 1
        %s436 = scalar_lea.vmem %s1, %s435
        %p437 = pneg %p75
        %p438 = pneg %p72
        %p439 = pneg %p96
        %p440 = pneg %p93
        %p441 = pneg %p117
        %p442 = pneg %p114
        %p443 = pneg %p138
        %p444 = pneg %p135
        %p445 = pneg %p159
        %p446 = pneg %p156
        %p447 = pneg %p180
        %p448 = pneg %p177
        %p449 = pneg %p201
        %p450 = pneg %p198
        %p451 = pneg %p222
        %p452 = pneg %p219
        %p453 = pneg %p243
        %p454 = pneg %p240
        %p455 = pneg %p264
        %p456 = pneg %p261
        %p457 = pneg %p285
        %p458 = pneg %p282
        %p459 = pneg %p306
        %p460 = pneg %p303
        %p461 = pneg %p327
        %p462 = pneg %p324
        %p463 = pneg %p353
        %p464 = pneg %p350
        %s465 = sand.u32 %s340, 1
        %s466 = scalar_lea.sflag [#allocation3], %s465
        %s467 = sand.u32 %s340, 1
        %s468 = smul.addr %s467, 8
        %s469 = scalar_lea.vmem [#allocation2], %s468
        %p470 = scmp.lt.s32.totalorder %s28, 1
        %s471 = scalar_select %p470, %s28, 1
        %s472 = smul.addr %s471, 8
        %s473 = scalar_lea.vmem %s0, %s472
        %p474 = scmp.lt.s32.totalorder %s28, 1
        %s475 = scalar_select %p474, %s28, 1
        %s476 = scalar_lea.vmem %s1, %s475
        %v478 = vld [vmem:[%s473] sm:$0xff]
        %vm479 = vcmask 261120
        %v480 = vsel %vm479, %v478, 0.0
        %481 = vadd.xlane.f32.xlu0 %v480
        %v482 = vpop.xlane.xlu0 %481
        %v483 = vrcp.pop 32.0
        %v484 = vmul.f32 32.0, %v483
        %v485 = vsub.f32 1.0, %v484
        %v486 = vmul.f32 %v483, %v485
        %v487 = vadd.f32 %v483, %v486
        %vm488 = vweird.f32 %v483
        %v489 = vsel %vm488, %v483, %v487
        %v490 = vmul.f32 %v482, %v489
        %v491 = vsub.f32 %v478, %v490
        %v492 = vmul.f32 %v491, %v491
        %v493 = vsel %vm479, %v492, 0.0
        %494 = vadd.xlane.f32.xlu0 %v493
        %v495 = vpop.xlane.xlu0 %494
        %v496 = vmul.f32 %v495, %v489
        %v497 = vadd.f32 %v496, 1e-05
        %v498 = vrsqrt.pop %v497
        %v499 = vmul.f32 %v498, %v497
        %v500 = vmul.f32 %v499, %v498
        %v501 = vmul.f32 0.5, %v500
        %v502 = vsub.f32 1.5, %v501
        %v503 = vmul.f32 %v498, %v502
        %vm504 = vweird.f32 %v497
        %vm505 = vweird.f32 %v498
        %vm506 = vmor %vm504, %vm505
        %v507 = vsel %vm506, %v498, %v503
        %v508 = vmul.f32 %v491, %v507
        %v509 = vld [vmem:[%s2] sm:$0x1]
        %v511 = vperm.slane %v509, 0
        %v513 = vmul.f32 %v508, %v511
        %v514 = vld [vmem:[%s3] sm:$0x1]
        %v516 = vperm.slane %v514, 0
        %v518 = vadd.f32 %v513, %v516
        %v519 = vpack.c.bf16 %v518, %v518
        %v520 = vld [vmem:[%s4] sm:$0xf]
        %v521 = vld [vmem:[%s4 + $0x4] sm:$0xf]
        %v522 = vld [vmem:[%s4 + $0x8] sm:$0xf]
        %v523 = vld [vmem:[%s4 + $0xc] sm:$0xf]
        %v524 = vld [vmem:[%s5] sm:$0x1]
        %v526 = vperm.slane %v524, 0
        %v532 = vunpack.c.l.b16 %v520
        %v533 = vunpack.c.l.b16 %v521
        %v534 = vunpack.c.l.b16 %v522
        %v535 = vunpack.c.l.b16 %v523
        %v536 = vpack.c.b16 %v533, %v532
        %v537 = vpack.c.b16 %v535, %v534
        %v541 = vsel %vm479, %v519, 0
        %543 = vmatpush.bf16.msra.mxu0 0
        %544 = vmatpush.bf16.msra.mxu0 0
        %545 = vmatpush.bf16.msra.mxu0 0
        %546 = vmatpush.bf16.msra.mxu0 0
        %547 = vmatpush.bf16.msra.mxu0 0
        %548 = vmatpush.bf16.msra.mxu0 0
        %549 = vmatpush.bf16.msra.mxu0 %v537
        %550 = vmatpush.bf16.msra.mxu0 %v536
        %551 = vmatmul.bf16.gmra.mxu0 %v541
        %v552 = vpop.f32.mrf.mxu0
        %v553 = vadd.f32 %v526, %v552
        %v554 = vpop.f32.mrf.mxu0
        %555 = vdwg.mxu0
        %v556 = vlaneseq
        %v557 = vshrl.u32 %v556, 7
        %v558 = vlaneseq
        %v559 = vand.u32 %v558, 127
        %vm560 = vcmp.gt.s32.totalorder %v559, %v557
        %v561 = vsel %vm560, -1e+30, 0.0
        %v562 = vld [vmem:[%s476] sm:$0x1]
        %v564 = vperm.slane %v562, 0
        %v566 = vadd.f32 %v564, %v561
        %v567 = vpack.c.bf16 %v553, %v553
        %v569 = vunpack.c.l.b16 %v567
        %v570 = vpack.c.b16 %v569, %v569
        %571 = vrot.lane.b32.xlu0 %v570, 96
        %v572 = vpop.permute.xlu0 %571
        %vm573 = vcmask 64512
        %v575 = vsel %vm573, %v567, 0
        %v578 = vsel %vm573, %v572, 0
        %580 = vmatpush.bf16.xpose.msra.mxu0 0
        %581 = vmatpush.bf16.xpose.msra.mxu0 0
        %582 = vmatpush.bf16.xpose.msra.mxu0 0
        %583 = vmatpush.bf16.xpose.msra.mxu0 0
        %584 = vmatpush.bf16.xpose.msra.mxu0 0
        %585 = vmatpush.bf16.xpose.msra.mxu0 0
        %586 = vmatpush.bf16.xpose.msra.mxu0 0
        %587 = vmatpush.bf16.xpose.msra.mxu0 %v578
        %588 = vmatmul.bf16.gmra.mxu0 %v575
        %v589 = vpop.f32.mrf.mxu0
        %v590 = vadd.f32 0.0, %v589
        %v591 = vpop.f32.mrf.mxu0
        %592 = vdwg.mxu0
        %v593 = vmul.f32 %v590, 0.35355338
        %v594 = vadd.f32 %v593, %v566
        %v595 = vsel %vm573, %v594, -inf
        %596 = vmax.xlane.f32.xlu0 %v595
        %v597 = vpop.xlane.xlu0 %596
        %v598 = vsub.f32 %v594, %v597
        %v599 = vmul.f32 %v598, 1.442695
        %v600 = vpow.pop %v599
        %v601 = vsel %vm573, %v600, 0.0
        %602 = vadd.xlane.f32.xlu0 %v601
        %v603 = vpop.xlane.xlu0 %602
        %v604 = vrcp.pop %v603
        %v605 = vmul.f32 %v600, %v604
        %v606 = vpack.c.bf16 %v605, %v605
        %607 = vrot.lane.b32.xlu0 %v570, 64
        %v608 = vpop.permute.xlu0 %607
        %v610 = vsel %vm573, %v606, 0
        %vm612 = vcmask 1043456
        %v614 = vsel %vm612, %v608, 0
        %616 = vmatpush.bf16.msra.mxu0 0
        %617 = vmatpush.bf16.msra.mxu0 0
        %618 = vmatpush.bf16.msra.mxu0 0
        %619 = vmatpush.bf16.msra.mxu0 0
        %620 = vmatpush.bf16.msra.mxu0 0
        %621 = vmatpush.bf16.msra.mxu0 0
        %622 = vmatpush.bf16.msra.mxu0 0
        %623 = vmatpush.bf16.msra.mxu0 %v614
        %624 = vmatmul.bf16.gmra.mxu0 %v610
        %v625 = vpop.f32.mrf.mxu0
        %v626 = vadd.f32 0.0, %v625
        %v627 = vpop.f32.mrf.mxu0
        %628 = vdwg.mxu0
        %629 = vrot.lane.b32.xlu0 %v570, 120
        %v630 = vpop.permute.xlu0 %629
        %631 = vrot.lane.b32.xlu0 %v570, 88
        %v632 = vpop.permute.xlu0 %631
        %v634 = vsel %vm573, %v630, 0
        %v637 = vsel %vm573, %v632, 0
        %639 = vmatpush.bf16.xpose.msra.mxu0 0
        %640 = vmatpush.bf16.xpose.msra.mxu0 0
        %641 = vmatpush.bf16.xpose.msra.mxu0 0
        %642 = vmatpush.bf16.xpose.msra.mxu0 0
        %643 = vmatpush.bf16.xpose.msra.mxu0 0
        %644 = vmatpush.bf16.xpose.msra.mxu0 0
        %645 = vmatpush.bf16.xpose.msra.mxu0 0
        %646 = vmatpush.bf16.xpose.msra.mxu0 %v637
        %647 = vmatmul.bf16.gmra.mxu0 %v634
        %v648 = vpop.f32.mrf.mxu0
        %v649 = vadd.f32 0.0, %v648
        %v650 = vpop.f32.mrf.mxu0
        %651 = vdwg.mxu0
        %v652 = vmul.f32 %v649, 0.35355338
        %v653 = vadd.f32 %v652, %v566
        %v654 = vsel %vm573, %v653, -inf
        %655 = vmax.xlane.f32.xlu0 %v654
        %v656 = vpop.xlane.xlu0 %655
        %v657 = vsub.f32 %v653, %v656
        %v658 = vmul.f32 %v657, 1.442695
        %v659 = vpow.pop %v658
        %v660 = vsel %vm573, %v659, 0.0
        %661 = vadd.xlane.f32.xlu0 %v660
        %v662 = vpop.xlane.xlu0 %661
        %v663 = vrcp.pop %v662
        %v664 = vmul.f32 %v659, %v663
        %v665 = vpack.c.bf16 %v664, %v664
        %666 = vrot.lane.b32.xlu0 %v570, 56
        %v667 = vpop.permute.xlu0 %666
        %v669 = vsel %vm573, %v665, 0
        %v672 = vsel %vm612, %v667, 0
        %674 = vmatpush.bf16.msra.mxu0 0
        %675 = vmatpush.bf16.msra.mxu0 0
        %676 = vmatpush.bf16.msra.mxu0 0
        %677 = vmatpush.bf16.msra.mxu0 0
        %678 = vmatpush.bf16.msra.mxu0 0
        %679 = vmatpush.bf16.msra.mxu0 0
        %680 = vmatpush.bf16.msra.mxu0 0
        %681 = vmatpush.bf16.msra.mxu0 %v672
        %682 = vmatmul.bf16.gmra.mxu0 %v669
        %v683 = vpop.f32.mrf.mxu0
        %v684 = vadd.f32 0.0, %v683
        %v685 = vpop.f32.mrf.mxu0
        %686 = vdwg.mxu0
        %687 = vrot.lane.b32.xlu0 %v570, 112
        %v688 = vpop.permute.xlu0 %687
        %689 = vrot.lane.b32.xlu0 %v570, 80
        %v690 = vpop.permute.xlu0 %689
        %v692 = vsel %vm573, %v688, 0
        %v695 = vsel %vm573, %v690, 0
        %697 = vmatpush.bf16.xpose.msra.mxu0 0
        %698 = vmatpush.bf16.xpose.msra.mxu0 0
        %699 = vmatpush.bf16.xpose.msra.mxu0 0
        %700 = vmatpush.bf16.xpose.msra.mxu0 0
        %701 = vmatpush.bf16.xpose.msra.mxu0 0
        %702 = vmatpush.bf16.xpose.msra.mxu0 0
        %703 = vmatpush.bf16.xpose.msra.mxu0 0
        %704 = vmatpush.bf16.xpose.msra.mxu0 %v695
        %705 = vmatmul.bf16.gmra.mxu0 %v692
        %v706 = vpop.f32.mrf.mxu0
        %v707 = vadd.f32 0.0, %v706
        %v708 = vpop.f32.mrf.mxu0
        %709 = vdwg.mxu0
        %v710 = vmul.f32 %v707, 0.35355338
        %v711 = vadd.f32 %v710, %v566
        %v712 = vsel %vm573, %v711, -inf
        %713 = vmax.xlane.f32.xlu0 %v712
        %v714 = vpop.xlane.xlu0 %713
        %v715 = vsub.f32 %v711, %v714
        %v716 = vmul.f32 %v715, 1.442695
        %v717 = vpow.pop %v716
        %v718 = vsel %vm573, %v717, 0.0
        %719 = vadd.xlane.f32.xlu0 %v718
        %v720 = vpop.xlane.xlu0 %719
        %v721 = vrcp.pop %v720
        %v722 = vmul.f32 %v717, %v721
        %v723 = vpack.c.bf16 %v722, %v722
        %724 = vrot.lane.b32.xlu0 %v570, 48
        %v725 = vpop.permute.xlu0 %724
        %v727 = vsel %vm573, %v723, 0
        %v730 = vsel %vm612, %v725, 0
        %732 = vmatpush.bf16.msra.mxu0 0
        %733 = vmatpush.bf16.msra.mxu0 0
        %734 = vmatpush.bf16.msra.mxu0 0
        %735 = vmatpush.bf16.msra.mxu0 0
        %736 = vmatpush.bf16.msra.mxu0 0
        %737 = vmatpush.bf16.msra.mxu0 0
        %738 = vmatpush.bf16.msra.mxu0 0
        %739 = vmatpush.bf16.msra.mxu0 %v730
        %740 = vmatmul.bf16.gmra.mxu0 %v727
        %v741 = vpop.f32.mrf.mxu0
        %v742 = vadd.f32 0.0, %v741
        %v743 = vpop.f32.mrf.mxu0
        %744 = vdwg.mxu0
        %745 = vrot.lane.b32.xlu0 %v570, 104
        %v746 = vpop.permute.xlu0 %745
        %747 = vrot.lane.b32.xlu0 %v570, 72
        %v748 = vpop.permute.xlu0 %747
        %v750 = vsel %vm573, %v746, 0
        %v753 = vsel %vm573, %v748, 0
        %755 = vmatpush.bf16.xpose.msra.mxu0 0
        %756 = vmatpush.bf16.xpose.msra.mxu0 0
        %757 = vmatpush.bf16.xpose.msra.mxu0 0
        %758 = vmatpush.bf16.xpose.msra.mxu0 0
        %759 = vmatpush.bf16.xpose.msra.mxu0 0
        %760 = vmatpush.bf16.xpose.msra.mxu0 0
        %761 = vmatpush.bf16.xpose.msra.mxu0 0
        %762 = vmatpush.bf16.xpose.msra.mxu0 %v753
        %763 = vmatmul.bf16.gmra.mxu0 %v750
        %v764 = vpop.f32.mrf.mxu0
        %v765 = vadd.f32 0.0, %v764
        %v766 = vpop.f32.mrf.mxu0
        %767 = vdwg.mxu0
        %v768 = vmul.f32 %v765, 0.35355338
        %v769 = vadd.f32 %v768, %v566
        %v770 = vsel %vm573, %v769, -inf
        %771 = vmax.xlane.f32.xlu0 %v770
        %v772 = vpop.xlane.xlu0 %771
        %v773 = vsub.f32 %v769, %v772
        %v774 = vmul.f32 %v773, 1.442695
        %v775 = vpow.pop %v774
        %v776 = vsel %vm573, %v775, 0.0
        %777 = vadd.xlane.f32.xlu0 %v776
        %v778 = vpop.xlane.xlu0 %777
        %v779 = vrcp.pop %v778
        %v780 = vmul.f32 %v775, %v779
        %v781 = vpack.c.bf16 %v780, %v780
        %782 = vrot.lane.b32.xlu0 %v570, 40
        %v783 = vpop.permute.xlu0 %782
        %v785 = vsel %vm573, %v781, 0
        %v788 = vsel %vm612, %v783, 0
        %790 = vmatpush.bf16.msra.mxu0 0
        %791 = vmatpush.bf16.msra.mxu0 0
        %792 = vmatpush.bf16.msra.mxu0 0
        %793 = vmatpush.bf16.msra.mxu0 0
        %794 = vmatpush.bf16.msra.mxu0 0
        %795 = vmatpush.bf16.msra.mxu0 0
        %796 = vmatpush.bf16.msra.mxu0 0
        %797 = vmatpush.bf16.msra.mxu0 %v788
        %798 = vmatmul.bf16.gmra.mxu0 %v785
        %v799 = vpop.f32.mrf.mxu0
        %v800 = vadd.f32 0.0, %v799
        %v801 = vpop.f32.mrf.mxu0
        %802 = vdwg.mxu0
        %804 = vrot.lane.b32.xlu0 %v684, 8
        %v805 = vpop.permute.xlu0 %804
        %808 = vrot.lane.b32.xlu0 %v742, 16
        %v809 = vpop.permute.xlu0 %808
        %812 = vrot.lane.b32.xlu0 %v800, 24
        %v813 = vpop.permute.xlu0 %812
        %v815 = vsel %vm573, %v626, %v805
        %vm816 = vcmask 130048
        %v817 = vsel %vm816, %v815, %v809
        %vm818 = vcmask 195584
        %v819 = vsel %vm818, %v817, %v813
        %v820 = vpack.c.bf16 %v819, %v819
        %v821 = vld [vmem:[%s6] sm:$0xf]
        %v822 = vld [vmem:[%s6 + $0x4] sm:$0xf]
        %v823 = vld [vmem:[%s6 + $0x8] sm:$0xf]
        %v824 = vld [vmem:[%s6 + $0xc] sm:$0xf]
        %v825 = vld [vmem:[%s7] sm:$0x1]
        %v827 = vperm.slane %v825, 0
        %v833 = vunpack.c.l.b16 %v821
        %v834 = vunpack.c.l.b16 %v822
        %v835 = vunpack.c.l.b16 %v823
        %v836 = vunpack.c.l.b16 %v824
        %v837 = vpack.c.b16 %v834, %v833
        %v838 = vpack.c.b16 %v836, %v835
        %v842 = vsel %vm479, %v820, 0
        %844 = vmatpush.bf16.msra.mxu0 0
        %845 = vmatpush.bf16.msra.mxu0 0
        %846 = vmatpush.bf16.msra.mxu0 0
        %847 = vmatpush.bf16.msra.mxu0 0
        %848 = vmatpush.bf16.msra.mxu0 0
        %849 = vmatpush.bf16.msra.mxu0 0
        %850 = vmatpush.bf16.msra.mxu0 %v838
        %851 = vmatpush.bf16.msra.mxu0 %v837
        %852 = vmatmul.bf16.gmra.mxu0 %v842
        %v853 = vpop.f32.mrf.mxu0
        %v854 = vadd.f32 %v827, %v853
        %v855 = vpop.f32.mrf.mxu0
        %856 = vdwg.mxu0
        %v857 = vadd.f32 %v478, %v854
        %v858 = vsel %vm479, %v857, 0.0
        %859 = vadd.xlane.f32.xlu0 %v858
        %v860 = vpop.xlane.xlu0 %859
        %v861 = vmul.f32 %v860, %v489
        %v862 = vsub.f32 %v857, %v861
        %v863 = vmul.f32 %v862, %v862
        %v864 = vsel %vm479, %v863, 0.0
        %865 = vadd.xlane.f32.xlu0 %v864
        %v866 = vpop.xlane.xlu0 %865
        %v867 = vmul.f32 %v866, %v489
        %v868 = vadd.f32 %v867, 1e-05
        %v869 = vrsqrt.pop %v868
        %v870 = vmul.f32 %v869, %v868
        %v871 = vmul.f32 %v870, %v869
        %v872 = vmul.f32 0.5, %v871
        %v873 = vsub.f32 1.5, %v872
        %v874 = vmul.f32 %v869, %v873
        %vm875 = vweird.f32 %v868
        %vm876 = vweird.f32 %v869
        %vm877 = vmor %vm875, %vm876
        %v878 = vsel %vm877, %v869, %v874
        %v879 = vmul.f32 %v862, %v878
        %v880 = vld [vmem:[%s8] sm:$0x1]
        %v882 = vperm.slane %v880, 0
        %v884 = vmul.f32 %v879, %v882
        %v885 = vld [vmem:[%s9] sm:$0x1]
        %v887 = vperm.slane %v885, 0
        %v889 = vadd.f32 %v884, %v887
        %v890 = vpack.c.bf16 %v889, %v889
        %v891 = vld [vmem:[%s10] sm:$0xf]
        %v892 = vld [vmem:[%s10 + $0x4] sm:$0xf]
        %v893 = vld [vmem:[%s10 + $0x8] sm:$0xf]
        %v894 = vld [vmem:[%s10 + $0xc] sm:$0xf]
        %v895 = vld [vmem:[%s11] sm:$0x1]
        %v897 = vperm.slane %v895, 0
        %v903 = vunpack.c.l.b16 %v891
        %v904 = vunpack.c.l.b16 %v892
        %v905 = vunpack.c.l.b16 %v893
        %v906 = vunpack.c.l.b16 %v894
        %v907 = vpack.c.b16 %v904, %v903
        %v908 = vpack.c.b16 %v906, %v905
        %v912 = vsel %vm479, %v890, 0
        %914 = vmatpush.bf16.msra.mxu0 0
        %915 = vmatpush.bf16.msra.mxu0 0
        %916 = vmatpush.bf16.msra.mxu0 0
        %917 = vmatpush.bf16.msra.mxu0 0
        %918 = vmatpush.bf16.msra.mxu0 0
        %919 = vmatpush.bf16.msra.mxu0 0
        %920 = vmatpush.bf16.msra.mxu0 %v908
        %921 = vmatpush.bf16.msra.mxu0 %v907
        %922 = vmatmul.bf16.gmra.mxu0 %v912
        %v923 = vpop.f32.mrf.mxu0
        %v924 = vadd.f32 %v897, %v923
        %v925 = vpop.f32.mrf.mxu0
        %926 = vdwg.mxu0
        %v927 = vmul.f32 %v924, 0.5
        %v928 = vmul.f32 %v924, 0.70710677
        %v929 = vand.u32 2147483647, %v928
        %v930 = vmul.f32 %v929, 0.3275911
        %v931 = vadd.f32 %v930, 1.0
        %v932 = vrcp.pop %v931
        %v933 = vmul.f32 %v931, %v932
        %v934 = vsub.f32 1.0, %v933
        %v935 = vmul.f32 %v932, %v934
        %v936 = vadd.f32 %v932, %v935
        %vm937 = vweird.f32 %v931
        %vm938 = vweird.f32 %v932
        %vm939 = vmor %vm937, %vm938
        %v940 = vsel %vm939, %v932, %v936
        %v941 = vand.u32 2147483647, %v931
        %vm942 = vcmp.eq.f32.partialorder %v941, 8.507059e+37
        %v943 = vand.u32 %v931, 2147483648
        %v944 = vor.u32 1.1754944e-38, %v943
        %v945 = vsel %vm942, %v944, %v940
        %v946 = vmul.f32 1.0, %v945
        %v947 = vmul.f32 %v946, 1.0614054
        %v948 = vadd.f32 %v947, -1.4531521
        %v949 = vmul.f32 %v948, %v946
        %v950 = vadd.f32 %v949, 1.4214138
        %v951 = vmul.f32 %v950, %v946
        %v952 = vadd.f32 %v951, -0.28449672
        %v953 = vmul.f32 %v952, %v946
        %v954 = vadd.f32 %v953, 0.2548296
        %v955 = vmul.f32 %v954, %v946
        %v956 = vsub.f32 0.0, %v929
        %v957 = vmul.f32 %v956, %v929
        %v958 = vmul.f32 %v957, 1.442695
        %v959 = vpow.pop %v958
        %v960 = vmul.f32 %v955, %v959
        %v961 = vsub.f32 1.0, %v960
        %vm962 = vcmp.lt.f32.partialorder %v928, 0.0
        %v963 = vsub.f32 0.0, %v961
        %v964 = vsel %vm962, %v963, %v961
        %v965 = vadd.f32 %v964, 1.0
        %v966 = vmul.f32 %v927, %v965
        %v967 = vpack.c.bf16 %v966, %v966
        %v968 = vld [vmem:[%s12] sm:$0xf]
        %v969 = vld [vmem:[%s12 + $0x4] sm:$0xf]
        %v970 = vld [vmem:[%s12 + $0x8] sm:$0xf]
        %v971 = vld [vmem:[%s12 + $0xc] sm:$0xf]
        %v972 = vld [vmem:[%s12 + $0x10] sm:$0xf]
        %v973 = vld [vmem:[%s12 + $0x14] sm:$0xf]
        %v974 = vld [vmem:[%s12 + $0x18] sm:$0xf]
        %v975 = vld [vmem:[%s12 + $0x1c] sm:$0xf]
        %v976 = vld [vmem:[%s12 + $0x20] sm:$0xf]
        %v977 = vld [vmem:[%s12 + $0x24] sm:$0xf]
        %v978 = vld [vmem:[%s12 + $0x28] sm:$0xf]
        %v979 = vld [vmem:[%s12 + $0x2c] sm:$0xf]
        %v980 = vld [vmem:[%s12 + $0x30] sm:$0xf]
        %v981 = vld [vmem:[%s12 + $0x34] sm:$0xf]
        %v982 = vld [vmem:[%s12 + $0x38] sm:$0xf]
        %v983 = vld [vmem:[%s12 + $0x3c] sm:$0xf]
        %v984 = vld [vmem:[%s13] sm:$0x1]
        %v986 = vperm.slane %v984, 0
        %v1004 = vunpack.c.l.b16 %v968
        %v1005 = vunpack.c.l.b16 %v969
        %v1006 = vunpack.c.l.b16 %v970
        %v1007 = vunpack.c.l.b16 %v971
        %v1008 = vunpack.c.l.b16 %v972
        %v1009 = vunpack.c.l.b16 %v973
        %v1010 = vunpack.c.l.b16 %v974
        %v1011 = vunpack.c.l.b16 %v975
        %v1012 = vunpack.c.l.b16 %v976
        %v1013 = vunpack.c.l.b16 %v977
        %v1014 = vunpack.c.l.b16 %v978
        %v1015 = vunpack.c.l.b16 %v979
        %v1016 = vunpack.c.l.b16 %v980
        %v1017 = vunpack.c.l.b16 %v981
        %v1018 = vunpack.c.l.b16 %v982
        %v1019 = vunpack.c.l.b16 %v983
        %v1020 = vpack.c.b16 %v1005, %v1004
        %v1021 = vpack.c.b16 %v1007, %v1006
        %v1022 = vpack.c.b16 %v1009, %v1008
        %v1023 = vpack.c.b16 %v1011, %v1010
        %v1024 = vpack.c.b16 %v1013, %v1012
        %v1025 = vpack.c.b16 %v1015, %v1014
        %v1026 = vpack.c.b16 %v1017, %v1016
        %v1027 = vpack.c.b16 %v1019, %v1018
        %1036 = vmatpush.bf16.msra.mxu0 %v1027
        %1037 = vmatpush.bf16.msra.mxu0 %v1026
        %1038 = vmatpush.bf16.msra.mxu0 %v1025
        %1039 = vmatpush.bf16.msra.mxu0 %v1024
        %1040 = vmatpush.bf16.msra.mxu0 %v1023
        %1041 = vmatpush.bf16.msra.mxu0 %v1022
        %1042 = vmatpush.bf16.msra.mxu0 %v1021
        %1043 = vmatpush.bf16.msra.mxu0 %v1020
        %1044 = vmatmul.bf16.gmra.mxu0 %v967
        %v1045 = vpop.f32.mrf.mxu0
        %v1046 = vadd.f32 %v986, %v1045
        %v1047 = vpop.f32.mrf.mxu0
        %1048 = vdwg.mxu0
        %v1049 = vadd.f32 %v857, %v1046
        %1050 = vst.msk [vmem:[%s469] sm:$0xff] %vm479, %v1049
        %s1051 = sand.u32 %s340, 1
        %s1052 = scalar_lea.sflag [#allocation3], %s1051
        %s1053 = sand.u32 %s340, 1
        %s1054 = smul.addr %s1053, 8
        %s1055 = scalar_lea.vmem [#allocation2], %s1054
        // Predicated region
        $region77: #{tpu_custom_call.1} parent=75 // pred_check
          %p1056 = pneg %p350
        $region78: #{tpu_custom_call.1} parent=75 // pred_check_branch
          %1058 = sbr.rel (%p1056) target = $region80
        $region79: #{tpu_custom_call.1} parent=75 // pred_region
          %1060 = vsyncadd %s1052, 0
          %s1061 = smul.addr %s28, 8
          %s1062 = scalar_lea.hbm %s14, %s1061
          %s1064 = sshll.u32 %s1055, 4
          %s1065 = int_to_ptr.vmem [resolvable:$true] %s1064
          %s1066 = sshll.u32 %s1062, 4
          %s1067 = int_to_ptr.hbm [resolvable:$true] %s1066
          %1069 = dma.vmem_to_hbm [thread:$0]  %s1065, 128, %s1067, %s1052
        $region80: #{tpu_custom_call.1} parent=75 // pred_fallthru
          _
      $region76: #{tpu_custom_call.1} parent=5 // pred_fallthru
        _
      %p1070 = scmp.le.s32.totalorder 2, %s23
      // Predicated region
      $region81: #{tpu_custom_call.1} parent=5 // pred_check
        %p1071 = pneg %p1070
      $region82: #{tpu_custom_call.1} parent=5 // pred_check_branch
        %1073 = sbr.rel (%p1071) target = $region84
      $region83: #{tpu_custom_call.1} parent=5 // pred_region
        %s1074 = ssub.s32 %s23, 2
        // Predicated region
        $region85: #{tpu_custom_call.1} parent=83 // pred_check
          %p1075 = pneg %p356
        $region86: #{tpu_custom_call.1} parent=83 // pred_check_branch
          %1077 = sbr.rel (%p1075) target = $region88
        $region87: #{tpu_custom_call.1} parent=83 // pred_region
          %s1078 = sand.u32 %s341, 1
          %s1079 = scalar_lea.sflag [#allocation3], %s1078
          %s1080 = sand.u32 %s341, 1
          %s1081 = smul.addr %s1080, 8
          %s1082 = scalar_lea.vmem [#allocation2], %s1081
          %1084 = dma.done %s1079, 128
        $region88: #{tpu_custom_call.1} parent=83 // pred_fallthru
          _
      $region84: #{tpu_custom_call.1} parent=5 // pred_fallthru
        _
    $region6: #{tpu_custom_call.1} parent=1 // loop_footer
      %s27 = sadd.s32 1, %s23
    $region7: #{tpu_custom_call.1} parent=1 // loop_footer_branch
      %22 = sbr.rel target = $region3
    $region8: #{tpu_custom_call.1} parent=1 // loop_exit
      _
    %1085 = vsyncpa [#allocation3], 1
    %s1086 = scalar_lea.sflag [#allocation3], 1
    %1087 = vsyncpa %s1086, 1

</llo_original>
